<compile_context>
chip_gen: v6e
topology: v6e:2x2x1
jax: 0.10.0
libtpu: 0.0.40
codegen_flags: <defaults>
</compile_context>

<pallas_src>
import math
from functools import lru_cache, partial

import jax
import jax.numpy as jnp
from jax.experimental import pallas as pl
from jax.experimental.pallas import tpu as pltpu


# --------------------------------------------------------------------------
# VMEM budget: generation-aware (128 MiB physical on v5e/v6e, 64 MiB on v7x).
# --------------------------------------------------------------------------
@lru_cache(maxsize=None)
def _vmem_limit_bytes():
    phys = 64 * 1024 * 1024
    try:
        phys = int(getattr(pltpu.get_tpu_info(), "vmem_capacity_bytes", phys))
    except Exception:   # query unavailable -> conservative default
        pass
    # leave ~25% headroom for compiler scratch / double-buffering slack
    return max(32 * 1024 * 1024, (phys * 3) // 4)


# --------------------------------------------------------------------------
# Bilinear interpolation matrices (align_corners=True == nn.UpsamplingBilinear2d)
# --------------------------------------------------------------------------
def _interp_matrix(n_in, n_out, dtype=jnp.float32):
    """Row-stochastic (n_out, n_in) bilinear interpolation matrix."""
    if n_out == 1:
        src = jnp.zeros((1,), jnp.float32)
    else:
        src = jnp.arange(n_out, dtype=jnp.float32) * ((n_in - 1) / (n_out - 1))
    lo = jnp.clip(jnp.floor(src).astype(jnp.int32), 0, n_in - 1)
    hi = jnp.clip(lo + 1, 0, n_in - 1)
    frac = src - lo.astype(jnp.float32)
    rows = jnp.arange(n_out)
    m = jnp.zeros((n_out, n_in), jnp.float32)
    m = m.at[rows, lo].add(1.0 - frac)
    m = m.at[rows, hi].add(frac)
    return m.astype(dtype)


def _kron_resize_matrix(h, w, hout, wout, dtype=jnp.bfloat16):
    """(h*w, hout*wout) matrix M such that x_flat @ M == bilinear resize.

    M[hi*w+wi, ho*wout+wo] = rh[ho, hi] * rw[wo, wi].
    """
    # TODO(synk): for very large h*w * hout*wout replace the kron matrix with a
    # separable two-pass resize to bound the matrix size.
    rh = _interp_matrix(h, hout)            # (hout, h)
    rw = _interp_matrix(w, wout)            # (wout, w)
    m = jnp.einsum('uh,vw->hwuv', rh, rw).reshape(h * w, hout * wout)
    return m.astype(dtype)


# --------------------------------------------------------------------------
# StyleLayer: (optional fused 2x upsample) + affine + modulated 3x3 conv
#             + noise + bias + LeakyReLU*sqrt(2)
# --------------------------------------------------------------------------
def _modconv_kernel(*refs, H, W, ks, demodulate, upsample):
    """One grid step == (sample n, Cout tile j).  H*W lives on the lane dim.

    refs (in order):
      x_ref    : (1, Cin, HWin)       input sample (pre-upsample if `upsample`)
      up_ref   : (HWin, HW) bf16      kron resize matrix (only if `upsample`)
      wlat_ref : (1, 1, w_dim)        latent w for this sample
      nz_ref   : (1, 1, HW) f32       noise * noise_strength
      masks_ref: (ks, HW) bf16        horizontal edge masks per kw
      afft_ref : (w_dim, Cin) f32     affine weights (w_gain applied), transposed
      affb_ref : (1, Cin) f32         affine bias
      w2_ref   : (tCout, Cin) f32     sum over taps of conv weight^2 (for demod)
      wflat_ref: (tCout, K) bf16      conv weights flattened (kh, kw, cin)
      b_ref    : (tCout, 1) f32       conv bias
      o_ref    : (1, tCout, HW)       output (lane-dense)
      xp_ref   : VMEM (Cin, (H+2*pad+2)*W) bf16   padded flat input scratch
      patch_ref: VMEM (K, HW) bf16                im2col slab scratch
    """
    if upsample:
        (x_ref, up_ref, wlat_ref, nz_ref, masks_ref, afft_ref, affb_ref,
         w2_ref, wflat_ref, b_ref, o_ref, xp_ref, patch_ref) = refs
    else:
        (x_ref, wlat_ref, nz_ref, masks_ref, afft_ref, affb_ref,
         w2_ref, wflat_ref, b_ref, o_ref, xp_ref, patch_ref) = refs
        up_ref = None

    HW = H * W
    pad = (ks - 1) // 2
    lead = (pad + 1) * W          # guard rows above/below the data region
    cin = xp_ref.shape[0]
    j = pl.program_id(1)

    # Build padded input + im2col patch slab once per sample (cached across
    # Cout tiles; j is an "arbitrary" inner axis so j==0 always runs first).
    @pl.when(j == 0)
    def _build():
        # zero only the guard regions - the data region is fully overwritten
        xp_ref[:, 0:lead] = jnp.zeros((cin, lead), xp_ref.dtype)
        xp_ref[:, lead + HW:lead + HW + lead] = jnp.zeros((cin, lead), xp_ref.dtype)
        if upsample:
            # fused 2x bilinear upsample: (Cin, HWin) @ (HWin, HW), bf16 MXU
            x_up = jnp.dot(x_ref[0].astype(jnp.bfloat16), up_ref[...],
                           preferred_element_type=jnp.float32)
            xp_ref[:, lead:lead + HW] = x_up.astype(xp_ref.dtype)
        else:
            xp_ref[:, lead:lead + HW] = x_ref[0].astype(xp_ref.dtype)
        for kh in range(ks):
            for kw in range(ks):
                # flat lane-shifted slice realizes tap (kh, kw); wrap-around
                # columns at the horizontal borders are zeroed by the edge mask.
                start = (kh + 1) * W + (kw - pad)
                tap = xp_ref[:, start:start + HW]                 # (Cin, HW) bf16
                if kw != pad:
                    tap = tap * masks_ref[kw:kw + 1, :]
                t = kh * ks + kw
                patch_ref[t * cin:(t + 1) * cin, :] = tap

    # --- affine: s = w_lat @ A^T + b  (FullyConnectedLayer, no activation) ---
    s = jnp.dot(wlat_ref[0], afft_ref[...],
                preferred_element_type=jnp.float32) + affb_ref[...]       # (1, Cin)

    # --- modulate / demodulate (demod via precomputed weight energy W2) ---
    wm = wflat_ref[...].astype(jnp.float32) * jnp.tile(s, (1, ks * ks))   # (tC, K)
    if demodulate:
        d = jax.lax.rsqrt(
            jnp.sum(w2_ref[...] * (s * s), axis=1, keepdims=True) + 1e-8)  # (tC, 1)
        wm = wm * d

    # --- single fused MXU contraction, bf16 operands / f32 accumulation ---
    acc = jnp.dot(wm.astype(jnp.bfloat16), patch_ref[...],
                  preferred_element_type=jnp.float32)                      # (tC, HW)

    # --- noise, bias, LeakyReLU(0.01) * sqrt(2) ---
    acc = acc + nz_ref[0]
    acc = acc + b_ref[...]
    acc = jnp.where(acc >= 0, acc, 0.01 * acc) * jnp.float32(math.sqrt(2.0))
    o_ref[0] = acc.astype(o_ref.dtype)


def style_layer(x, w_lat, aff_w, aff_b, conv_w, conv_b, noise, noise_strength,
                *, demodulate=True, upsample_to=None, out_dtype=jnp.bfloat16):
    """StyleLayer forward (optionally with a fused 2x bilinear pre-upsample).

    x: (N, Cin, Hin, Win) NCHW -> (N, Cout, H, W) with (H, W) = upsample_to or input.
    """
    N, Cin, Hin, Win = x.shape
    Cout, _, ks, _ = conv_w.shape
    assert ks % 2 == 1, "'same' padding implemented for odd kernels"
    pad = (ks - 1) // 2
    upsample = upsample_to is not None
    H, W = upsample_to if upsample else (Hin, Win)
    HW, HWin = H * W, Hin * Win
    wdim = w_lat.shape[1]
    K = ks * ks * Cin

    # free reshapes only (no transposes / pads of the activation in the wrapper)
    x_flat = x.reshape(N, Cin, HWin)
    wlat3 = w_lat.reshape(N, 1, wdim).astype(jnp.float32)
    nz = (noise.astype(jnp.float32) * noise_strength).reshape(N, 1, HW)

    # horizontal edge masks per kw offset (valid iff 0 <= w + (kw - pad) < W)
    col = jnp.arange(HW, dtype=jnp.int32) % W
    masks = jnp.stack([(col + (kw - pad) >= 0) & (col + (kw - pad) <= W - 1)
                       for kw in range(ks)]).astype(jnp.bfloat16)          # (ks, HW)

    # parameter preprocessing (tiny, one-time):
    afft = (aff_w.astype(jnp.float32) * (1.0 / math.sqrt(wdim))).T          # (wdim, Cin)
    affb = aff_b.reshape(1, Cin).astype(jnp.float32)                        # b_gain == 1
    # NOTE: ModulatedConv2D quirk - conv w_gain is NOT applied (matches reference).
    w32 = conv_w.astype(jnp.float32)
    wflat = jnp.transpose(w32, (0, 2, 3, 1)).reshape(Cout, K).astype(jnp.bfloat16)
    w2 = jnp.sum(w32 * w32, axis=(2, 3))                                    # (Cout, Cin)
    b2 = conv_b.reshape(Cout, 1).astype(jnp.float32)

    # Cout tiling: 256-wide result tiles fill the v6e/v7x 2x256^2 MXU.
    # TODO(synk): v5e prefers 128-wide tiles (4x128^2 MXU) - make generation-aware.
    if Cout <= 256:
        t_cout = Cout
    else:
        t_cout = 256 if Cout % 256 == 0 else 128
        assert Cout % t_cout == 0
    nj = Cout // t_cout

    in_specs = [pl.BlockSpec((1, Cin, HWin), lambda n, j: (n, 0, 0))]
    inputs = [x_flat]
    if upsample:
        up_m = _kron_resize_matrix(Hin, Win, H, W)                          # bf16
        in_specs.append(pl.BlockSpec((HWin, HW), lambda n, j: (0, 0)))
        inputs.append(up_m)
    in_specs += [
        pl.BlockSpec((1, 1, wdim), lambda n, j: (n, 0, 0)),
        pl.BlockSpec((1, 1, HW), lambda n, j: (n, 0, 0)),
        pl.BlockSpec((ks, HW), lambda n, j: (0, 0)),
        pl.BlockSpec((wdim, Cin), lambda n, j: (0, 0)),
        pl.BlockSpec((1, Cin), lambda n, j: (0, 0)),
        pl.BlockSpec((t_cout, Cin), lambda n, j: (j, 0)),
        pl.BlockSpec((t_cout, K), lambda n, j: (j, 0)),
        pl.BlockSpec((t_cout, 1), lambda n, j: (j, 0)),
    ]
    inputs += [wlat3, nz, masks, afft, affb, w2, wflat, b2]

    # TODO(synk): v7x - spatial H-row tiling (with halo) + manual DMA of x into
    # xp_ref (memory_space=pl.ANY) once Cin*HW slabs approach the 64 MiB VMEM budget.
    # TODO(synk): v7x with N < 2 - add a parallel Cout/row grid axis so the second
    # TensorCore gets work.
    kern = partial(_modconv_kernel, H=H, W=W, ks=ks,
                   demodulate=demodulate, upsample=upsample)
    out = pl.pallas_call(
        kern,
        out_shape=jax.ShapeDtypeStruct((N, Cout, HW), out_dtype),
        grid_spec=pltpu.PrefetchScalarGridSpec(
            num_scalar_prefetch=0,
            grid=(N, nj),
            in_specs=in_specs,
            out_specs=pl.BlockSpec((1, t_cout, HW), lambda n, j: (n, j, 0)),
            scratch_shapes=[
                pltpu.VMEM((Cin, (H + 2 * pad + 2) * W), jnp.bfloat16),
                pltpu.VMEM((K, HW), jnp.bfloat16),
            ],
        ),
        compiler_params=pltpu.CompilerParams(
            dimension_semantics=("parallel", "arbitrary"),
            vmem_limit_bytes=_vmem_limit_bytes()),
    )(*inputs)
    return out.reshape(N, Cout, H, W)


# --------------------------------------------------------------------------
# toRGB: 1x1 conv (w_gain applied, bias, gain=1) fused with final bilinear resize
# --------------------------------------------------------------------------
def _torgb_kernel(x_ref, w_ref, b_ref, m_ref, o_ref):
    rgb = jnp.dot(w_ref[...].astype(jnp.bfloat16), x_ref[0].astype(jnp.bfloat16),
                  preferred_element_type=jnp.float32)                       # (3, HW)
    rgb = rgb + b_ref[...]
    out = jnp.dot(rgb.astype(jnp.bfloat16), m_ref[...],
                  preferred_element_type=jnp.float32)                       # (3, R^2)
    o_ref[0] = out.astype(o_ref.dtype)


def to_rgb(x, w, b, final_resolution):
    """x: (N, C, H, W) -> (N, 3, final_resolution, final_resolution) f32."""
    N, C, H, W = x.shape
    Cout = w.shape[0]
    HW = H * W
    R = final_resolution
    R2 = R * R
    w_gain = 1.0 / math.sqrt(C * 1 * 1)
    wf = w[:, :, 0, 0].astype(jnp.float32) * w_gain                          # (3, C)
    m = _kron_resize_matrix(H, W, R, R)                                      # (HW, R2)
    out = pl.pallas_call(
        _torgb_kernel,
        out_shape=jax.ShapeDtypeStruct((N, Cout, R2), jnp.float32),
        grid_spec=pltpu.PrefetchScalarGridSpec(
            num_scalar_prefetch=0,
            grid=(N,),
            in_specs=[
                pl.BlockSpec((1, C, HW), lambda n: (n, 0, 0)),
                pl.BlockSpec((Cout, C), lambda n: (0, 0)),
                pl.BlockSpec((Cout, 1), lambda n: (0, 0)),
                pl.BlockSpec((HW, R2), lambda n: (0, 0)),
            ],
            out_specs=pl.BlockSpec((1, Cout, R2), lambda n: (n, 0, 0)),
        ),
        compiler_params=pltpu.CompilerParams(
            dimension_semantics=("parallel",),
            vmem_limit_bytes=_vmem_limit_bytes()),
    )(x.reshape(N, C, HW), wf, b.reshape(Cout, 1).astype(jnp.float32), m)
    return out.reshape(N, Cout, R, R)


# --------------------------------------------------------------------------
# StyleBlock forward
# --------------------------------------------------------------------------
def style_block_forward(x, w_lat, p, *, final_resolution):
    """x: (N, Cin, H, W); w_lat: (N, w_dim). Returns (x, x_rgb) in NCHW."""
    N, Cin, H, W = x.shape
    # StyleLayer0 with the 2x bilinear upsample fused into its kernel.
    # Intermediate activation carried in bf16 (halves HBM traffic between layers).
    x = style_layer(x, w_lat, p["aff0_w"], p["aff0_b"], p["conv0_w"], p["conv0_b"],
                    p["noise0"], p["ns0"], upsample_to=(2 * H, 2 * W),
                    out_dtype=jnp.bfloat16)
    # StyleLayer1 (user-facing output -> f32)
    x = style_layer(x, w_lat, p["aff1_w"], p["aff1_b"], p["conv1_w"], p["conv1_b"],
                    p["noise1"], p["ns1"], out_dtype=jnp.float32)
    # toRGB: 1x1 conv + bilinear resize to final_resolution, fused in one kernel
    rgb = to_rgb(x, p["rgb_w"], p["rgb_b"], final_resolution)
    return x, rgb


# --------------------------------------------------------------------------
# Pure-JAX reference (mirrors the PyTorch forward, all f32)
# --------------------------------------------------------------------------
def _ref_resize(x, hout, wout):
    rh = _interp_matrix(x.shape[2], hout)
    rw = _interp_matrix(x.shape[3], wout)
    return jnp.einsum('uh,nchw,vw->ncuv', rh, x, rw)


def _ref_modulated_conv(x, s, w, b, noise):
    N, Cin, H, W = x.shape
    Cout, _, kH, kW = w.shape
    wm = w[None] * s.reshape(N, 1, Cin, 1, 1)
    d = jax.lax.rsqrt(jnp.sum(wm * wm, axis=(2, 3, 4)) + 1e-8)
    wm = wm * d.reshape(N, Cout, 1, 1, 1)
    ph, pw = (kH - 1) // 2, (kW - 1) // 2
    xp = jnp.pad(x, ((0, 0), (0, 0), (ph, kH - 1 - ph), (pw, kW - 1 - pw)))
    out = jnp.zeros((N, Cout, H, W), jnp.float32)
    for kh in range(kH):
        for kw in range(kW):
            patch = xp[:, :, kh:kh + H, kw:kw + W]
            out = out + jnp.einsum('nchw,noc->nohw', patch, wm[:, :, :, kh, kw])
    out = out + noise
    out = out + b.reshape(1, Cout, 1, 1)
    return jnp.where(out >= 0, out, 0.01 * out) * jnp.float32(math.sqrt(2.0))


def _reference_forward(x, w_lat, p, *, final_resolution):
    wdim = w_lat.shape[1]
    x = _ref_resize(x, 2 * x.shape[2], 2 * x.shape[3])
    s0 = w_lat @ (p["aff0_w"] / math.sqrt(wdim)).T + p["aff0_b"]
    x = _ref_modulated_conv(x, s0, p["conv0_w"], p["conv0_b"], p["noise0"] * p["ns0"])
    s1 = w_lat @ (p["aff1_w"] / math.sqrt(wdim)).T + p["aff1_b"]
    x = _ref_modulated_conv(x, s1, p["conv1_w"], p["conv1_b"], p["noise1"] * p["ns1"])
    wr = p["rgb_w"][:, :, 0, 0] / math.sqrt(x.shape[1])
    rgb = jnp.einsum('nchw,oc->nohw', x, wr) + p["rgb_b"].reshape(1, 3, 1, 1)
    rgb = _ref_resize(rgb, final_resolution, final_resolution)
    return x, rgb


# --------------------------------------------------------------------------
if __name__ == "__main__":
    N, Cin, Cout, H, W = 2, 4, 8, 16, 16
    wdim, ks, final_res = 32, 3, 64

    key = jax.random.PRNGKey(0)
    k = jax.random.split(key, 10)
    x = jax.random.normal(k[0], (N, Cin, H, W), jnp.float32)
    w_lat = jax.random.normal(k[1], (N, wdim), jnp.float32)

    params = dict(
        # StyleLayer0: affine(w_dim -> Cin, bias_init=1), noise_strength=0, conv 3x3
        aff0_w=jax.random.normal(k[2], (Cin, wdim), jnp.float32),
        aff0_b=jnp.ones((Cin,), jnp.float32),
        ns0=jnp.float32(0.0),
        conv0_w=jax.random.normal(k[3], (Cout, Cin, ks, ks), jnp.float32),
        conv0_b=jnp.zeros((Cout,), jnp.float32),
        # StyleLayer1
        aff1_w=jax.random.normal(k[4], (Cout, wdim), jnp.float32),
        aff1_b=jnp.ones((Cout,), jnp.float32),
        ns1=jnp.float32(0.0),
        conv1_w=jax.random.normal(k[5], (Cout, Cout, ks, ks), jnp.float32),
        conv1_b=jnp.zeros((Cout,), jnp.float32),
        # toRGB
        rgb_w=jax.random.normal(k[6], (3, Cout, 1, 1), jnp.float32),
        rgb_b=jnp.zeros((3,), jnp.float32),
        # per-layer noise (torch.randn inside StyleLayer.forward in the module)
        noise0=jax.random.normal(k[7], (N, 1, 2 * H, 2 * W), jnp.float32),
        noise1=jax.random.normal(k[8], (N, 1, 2 * H, 2 * W), jnp.float32),
    )

    x_out, x_rgb = style_block_forward(x, w_lat, params, final_resolution=final_res)
    x_out, x_rgb = jax.block_until_ready((x_out, x_rgb))

    x_ref, rgb_ref = _reference_forward(x, w_lat, params, final_resolution=final_res)
    assert x_out.shape == (N, Cout, 2 * H, 2 * W)
    assert x_rgb.shape == (N, 3, final_res, final_res)
    # bf16 MXU operands, bf16 inter-layer activations and bf16 resize matrices
    # (f32 accumulation) -> loosened tolerance vs the all-f32 reference.
    err_x = float(jnp.max(jnp.abs(x_out.astype(jnp.float32) - x_ref)))
    err_r = float(jnp.max(jnp.abs(x_rgb - rgb_ref)))
    assert jnp.allclose(x_out.astype(jnp.float32), x_ref, atol=1e-1, rtol=1e-1), err_x
    assert jnp.allclose(x_rgb, rgb_ref, atol=1e-1, rtol=1e-1), err_r

    print("KERNEL_OK")
</pallas_src>

<mosaic_0001>
module attributes {stable_mosaic.version = 11 : i64} {
  func.func @_modconv_kernel(%arg0: i32, %arg1: i32, %arg2: memref<1x4x256xf32, #tpu.memory_space<vmem>>, %arg3: memref<256x1024xbf16, #tpu.memory_space<vmem>>, %arg4: memref<1x1x32xf32, #tpu.memory_space<vmem>>, %arg5: memref<1x1x1024xf32, #tpu.memory_space<vmem>>, %arg6: memref<3x1024xbf16, #tpu.memory_space<vmem>>, %arg7: memref<32x4xf32, #tpu.memory_space<vmem>>, %arg8: memref<1x4xf32, #tpu.memory_space<vmem>>, %arg9: memref<8x4xf32, #tpu.memory_space<vmem>>, %arg10: memref<8x36xbf16, #tpu.memory_space<vmem>>, %arg11: memref<8x1xf32, #tpu.memory_space<vmem>>, %arg12: memref<1x8x1024xbf16, #tpu.memory_space<vmem>>, %arg13: memref<4x1152xbf16, #tpu.memory_space<vmem>>, %arg14: memref<36x1024xbf16, #tpu.memory_space<vmem>>) attributes {dimension_semantics = [#tpu.dimension_semantics<parallel>, #tpu.dimension_semantics<arbitrary>], iteration_bounds = array<i64: 2, 1>, scalar_prefetch = 0 : i64, scratch_operands = 2 : i64, tpu.core_type = #tpu.core_type<tc>, window_params = [{transform_indices = @transform_0, window_bounds = array<i64: 1, 4, 256>}, {pipeline_mode = #tpu.pipeline_mode<synchronous>, transform_indices = @transform_1, window_bounds = array<i64: 256, 1024>}, {transform_indices = @transform_2, window_bounds = array<i64: 1, 1, 32>}, {transform_indices = @transform_3, window_bounds = array<i64: 1, 1, 1024>}, {pipeline_mode = #tpu.pipeline_mode<synchronous>, transform_indices = @transform_4, window_bounds = array<i64: 3, 1024>}, {pipeline_mode = #tpu.pipeline_mode<synchronous>, transform_indices = @transform_5, window_bounds = array<i64: 32, 4>}, {pipeline_mode = #tpu.pipeline_mode<synchronous>, transform_indices = @transform_6, window_bounds = array<i64: 1, 4>}, {transform_indices = @transform_7, window_bounds = array<i64: 8, 4>}, {transform_indices = @transform_8, window_bounds = array<i64: 8, 36>}, {transform_indices = @transform_9, window_bounds = array<i64: 8, 1>}, {transform_indices = @transform_10, window_bounds = array<i64: 1, 8, 1024>}]} {
    %c0_i32 = arith.constant 0 : i32
    %0 = arith.cmpi eq, %arg1, %c0_i32 : i32
    %1 = arith.extui %0 : i1 to i32
    %c0_i32_0 = arith.constant 0 : i32
    %2 = arith.cmpi ne, %1, %c0_i32_0 : i32
    scf.if %2 {
      %cst_27 = arith.constant 0.000000e+00 : bf16
      %46 = vector.broadcast %cst_27 : bf16 to vector<4x64xbf16>
      %c0_28 = arith.constant 0 : index
      %c0_29 = arith.constant 0 : index
      %47 = vector.load %arg13[%c0_28, %c0_29] : memref<4x1152xbf16, #tpu.memory_space<vmem>>, vector<4x64xbf16>
      tpu.vector_store %arg13[%c0_28, %c0_29], %46 {strides = array<i32>} : memref<4x1152xbf16, #tpu.memory_space<vmem>>, vector<4x64xbf16>,
      %cst_30 = arith.constant 0.000000e+00 : bf16
      %48 = vector.broadcast %cst_30 : bf16 to vector<4x64xbf16>
      %c0_31 = arith.constant 0 : index
      %c1088 = arith.constant 1088 : index
      %49 = vector.load %arg13[%c0_31, %c1088] : memref<4x1152xbf16, #tpu.memory_space<vmem>>, vector<4x64xbf16>
      tpu.vector_store %arg13[%c0_31, %c1088], %48 {strides = array<i32>} : memref<4x1152xbf16, #tpu.memory_space<vmem>>, vector<4x64xbf16>,
      %c0_32 = arith.constant 0 : index
      %c0_33 = arith.constant 0 : index
      %c0_34 = arith.constant 0 : index
      %50 = vector.load %arg2[%c0_32, %c0_33, %c0_34] : memref<1x4x256xf32, #tpu.memory_space<vmem>>, vector<1x4x256xf32>
      %51 = vector.shape_cast %50 : vector<1x4x256xf32> to vector<4x256xf32>
      %52 = arith.truncf %51 : vector<4x256xf32> to vector<4x256xbf16>
      %c0_35 = arith.constant 0 : index
      %c0_36 = arith.constant 0 : index
      %53 = vector.load %arg3[%c0_35, %c0_36] : memref<256x1024xbf16, #tpu.memory_space<vmem>>, vector<256x1024xbf16>
      %cst_37 = arith.constant dense<0.000000e+00> : vector<4x1024xf32>
      %54 = tpu.matmul %52, %53, %cst_37 {dimension_numbers = #tpu.dot_dimension_numbers<[1], [0], [0], [1], [0, 0, 1, 1], [], []>} : vector<4x256xbf16>, vector<256x1024xbf16>, vector<4x1024xf32> -> vector<4x1024xf32>
      %55 = arith.truncf %54 : vector<4x1024xf32> to vector<4x1024xbf16>
      %c0_38 = arith.constant 0 : index
      %c64 = arith.constant 64 : index
      %56 = vector.load %arg13[%c0_38, %c64] : memref<4x1152xbf16, #tpu.memory_space<vmem>>, vector<4x1024xbf16>
      tpu.vector_store %arg13[%c0_38, %c64], %55 {strides = array<i32>} : memref<4x1152xbf16, #tpu.memory_space<vmem>>, vector<4x1024xbf16>,
      %c0_39 = arith.constant 0 : index
      %c31 = arith.constant 31 : index
      %57 = vector.load %arg13[%c0_39, %c31] : memref<4x1152xbf16, #tpu.memory_space<vmem>>, vector<4x1024xbf16>
      %c0_40 = arith.constant 0 : index
      %c0_41 = arith.constant 0 : index
      %58 = vector.load %arg6[%c0_40, %c0_41] : memref<3x1024xbf16, #tpu.memory_space<vmem>>, vector<1x1024xbf16>
      %59 = vector.broadcast %58 : vector<1x1024xbf16> to vector<4x1024xbf16>
      %60 = arith.mulf %57, %59 : vector<4x1024xbf16>
      %c0_42 = arith.constant 0 : index
      %c0_43 = arith.constant 0 : index
      %61 = vector.load %arg14[%c0_42, %c0_43] : memref<36x1024xbf16, #tpu.memory_space<vmem>>, vector<4x1024xbf16>
      tpu.vector_store %arg14[%c0_42, %c0_43], %60 {strides = array<i32>} : memref<36x1024xbf16, #tpu.memory_space<vmem>>, vector<4x1024xbf16>,
      %c0_44 = arith.constant 0 : index
      %c32 = arith.constant 32 : index
      %62 = vector.load %arg13[%c0_44, %c32] : memref<4x1152xbf16, #tpu.memory_space<vmem>>, vector<4x1024xbf16>
      %c4 = arith.constant 4 : index
      %c0_45 = arith.constant 0 : index
      %63 = vector.load %arg14[%c4, %c0_45] : memref<36x1024xbf16, #tpu.memory_space<vmem>>, vector<4x1024xbf16>
      tpu.vector_store %arg14[%c4, %c0_45], %62 {strides = array<i32>} : memref<36x1024xbf16, #tpu.memory_space<vmem>>, vector<4x1024xbf16>,
      %c0_46 = arith.constant 0 : index
      %c33 = arith.constant 33 : index
      %64 = vector.load %arg13[%c0_46, %c33] : memref<4x1152xbf16, #tpu.memory_space<vmem>>, vector<4x1024xbf16>
      %c2 = arith.constant 2 : index
      %c0_47 = arith.constant 0 : index
      %65 = vector.load %arg6[%c2, %c0_47] : memref<3x1024xbf16, #tpu.memory_space<vmem>>, vector<1x1024xbf16>
      %66 = vector.broadcast %65 : vector<1x1024xbf16> to vector<4x1024xbf16>
      %67 = arith.mulf %64, %66 : vector<4x1024xbf16>
      %c8 = arith.constant 8 : index
      %c0_48 = arith.constant 0 : index
      %68 = vector.load %arg14[%c8, %c0_48] : memref<36x1024xbf16, #tpu.memory_space<vmem>>, vector<4x1024xbf16>
      tpu.vector_store %arg14[%c8, %c0_48], %67 {strides = array<i32>} : memref<36x1024xbf16, #tpu.memory_space<vmem>>, vector<4x1024xbf16>,
      %c0_49 = arith.constant 0 : index
      %c63 = arith.constant 63 : index
      %69 = vector.load %arg13[%c0_49, %c63] : memref<4x1152xbf16, #tpu.memory_space<vmem>>, vector<4x1024xbf16>
      %c0_50 = arith.constant 0 : index
      %c0_51 = arith.constant 0 : index
      %70 = vector.load %arg6[%c0_50, %c0_51] : memref<3x1024xbf16, #tpu.memory_space<vmem>>, vector<1x1024xbf16>
      %71 = vector.broadcast %70 : vector<1x1024xbf16> to vector<4x1024xbf16>
      %72 = arith.mulf %69, %71 : vector<4x1024xbf16>
      %c12 = arith.constant 12 : index
      %c0_52 = arith.constant 0 : index
      %73 = vector.load %arg14[%c12, %c0_52] : memref<36x1024xbf16, #tpu.memory_space<vmem>>, vector<4x1024xbf16>
      tpu.vector_store %arg14[%c12, %c0_52], %72 {strides = array<i32>} : memref<36x1024xbf16, #tpu.memory_space<vmem>>, vector<4x1024xbf16>,
      %c0_53 = arith.constant 0 : index
      %c64_54 = arith.constant 64 : index
      %74 = vector.load %arg13[%c0_53, %c64_54] : memref<4x1152xbf16, #tpu.memory_space<vmem>>, vector<4x1024xbf16>
      %c16 = arith.constant 16 : index
      %c0_55 = arith.constant 0 : index
      %75 = vector.load %arg14[%c16, %c0_55] : memref<36x1024xbf16, #tpu.memory_space<vmem>>, vector<4x1024xbf16>
      tpu.vector_store %arg14[%c16, %c0_55], %74 {strides = array<i32>} : memref<36x1024xbf16, #tpu.memory_space<vmem>>, vector<4x1024xbf16>,
      %c0_56 = arith.constant 0 : index
      %c65 = arith.constant 65 : index
      %76 = vector.load %arg13[%c0_56, %c65] : memref<4x1152xbf16, #tpu.memory_space<vmem>>, vector<4x1024xbf16>
      %c2_57 = arith.constant 2 : index
      %c0_58 = arith.constant 0 : index
      %77 = vector.load %arg6[%c2_57, %c0_58] : memref<3x1024xbf16, #tpu.memory_space<vmem>>, vector<1x1024xbf16>
      %78 = vector.broadcast %77 : vector<1x1024xbf16> to vector<4x1024xbf16>
      %79 = arith.mulf %76, %78 : vector<4x1024xbf16>
      %c20 = arith.constant 20 : index
      %c0_59 = arith.constant 0 : index
      %80 = vector.load %arg14[%c20, %c0_59] : memref<36x1024xbf16, #tpu.memory_space<vmem>>, vector<4x1024xbf16>
      tpu.vector_store %arg14[%c20, %c0_59], %79 {strides = array<i32>} : memref<36x1024xbf16, #tpu.memory_space<vmem>>, vector<4x1024xbf16>,
      %c0_60 = arith.constant 0 : index
      %c95 = arith.constant 95 : index
      %81 = vector.load %arg13[%c0_60, %c95] : memref<4x1152xbf16, #tpu.memory_space<vmem>>, vector<4x1024xbf16>
      %c0_61 = arith.constant 0 : index
      %c0_62 = arith.constant 0 : index
      %82 = vector.load %arg6[%c0_61, %c0_62] : memref<3x1024xbf16, #tpu.memory_space<vmem>>, vector<1x1024xbf16>
      %83 = vector.broadcast %82 : vector<1x1024xbf16> to vector<4x1024xbf16>
      %84 = arith.mulf %81, %83 : vector<4x1024xbf16>
      %c24 = arith.constant 24 : index
      %c0_63 = arith.constant 0 : index
      %85 = vector.load %arg14[%c24, %c0_63] : memref<36x1024xbf16, #tpu.memory_space<vmem>>, vector<4x1024xbf16>
      tpu.vector_store %arg14[%c24, %c0_63], %84 {strides = array<i32>} : memref<36x1024xbf16, #tpu.memory_space<vmem>>, vector<4x1024xbf16>,
      %c0_64 = arith.constant 0 : index
      %c96 = arith.constant 96 : index
      %86 = vector.load %arg13[%c0_64, %c96] : memref<4x1152xbf16, #tpu.memory_space<vmem>>, vector<4x1024xbf16>
      %c28 = arith.constant 28 : index
      %c0_65 = arith.constant 0 : index
      %87 = vector.load %arg14[%c28, %c0_65] : memref<36x1024xbf16, #tpu.memory_space<vmem>>, vector<4x1024xbf16>
      tpu.vector_store %arg14[%c28, %c0_65], %86 {strides = array<i32>} : memref<36x1024xbf16, #tpu.memory_space<vmem>>, vector<4x1024xbf16>,
      %c0_66 = arith.constant 0 : index
      %c97 = arith.constant 97 : index
      %88 = vector.load %arg13[%c0_66, %c97] : memref<4x1152xbf16, #tpu.memory_space<vmem>>, vector<4x1024xbf16>
      %c2_67 = arith.constant 2 : index
      %c0_68 = arith.constant 0 : index
      %89 = vector.load %arg6[%c2_67, %c0_68] : memref<3x1024xbf16, #tpu.memory_space<vmem>>, vector<1x1024xbf16>
      %90 = vector.broadcast %89 : vector<1x1024xbf16> to vector<4x1024xbf16>
      %91 = arith.mulf %88, %90 : vector<4x1024xbf16>
      %c32_69 = arith.constant 32 : index
      %c0_70 = arith.constant 0 : index
      %92 = vector.load %arg14[%c32_69, %c0_70] : memref<36x1024xbf16, #tpu.memory_space<vmem>>, vector<4x1024xbf16>
      tpu.vector_store %arg14[%c32_69, %c0_70], %91 {strides = array<i32>} : memref<36x1024xbf16, #tpu.memory_space<vmem>>, vector<4x1024xbf16>,
    } else {
    }
    %c0 = arith.constant 0 : index
    %c0_1 = arith.constant 0 : index
    %c0_2 = arith.constant 0 : index
    %3 = vector.load %arg4[%c0, %c0_1, %c0_2] : memref<1x1x32xf32, #tpu.memory_space<vmem>>, vector<1x1x32xf32>
    %4 = vector.shape_cast %3 : vector<1x1x32xf32> to vector<1x32xf32>
    %c0_3 = arith.constant 0 : index
    %c0_4 = arith.constant 0 : index
    %5 = vector.load %arg7[%c0_3, %c0_4] : memref<32x4xf32, #tpu.memory_space<vmem>>, vector<32x4xf32>
    %cst = arith.constant dense<0.000000e+00> : vector<1x4xf32>
    %6 = tpu.matmul %4, %5, %cst {dimension_numbers = #tpu.dot_dimension_numbers<[1], [0], [0], [1], [0, 0, 1, 1], [], []>} : vector<1x32xf32>, vector<32x4xf32>, vector<1x4xf32> -> vector<1x4xf32>
    %c0_5 = arith.constant 0 : index
    %c0_6 = arith.constant 0 : index
    %7 = vector.load %arg8[%c0_5, %c0_6] : memref<1x4xf32, #tpu.memory_space<vmem>>, vector<1x4xf32>
    %8 = arith.addf %6, %7 : vector<1x4xf32>
    %c0_7 = arith.constant 0 : index
    %c0_8 = arith.constant 0 : index
    %9 = vector.load %arg10[%c0_7, %c0_8] : memref<8x36xbf16, #tpu.memory_space<vmem>>, vector<8x36xbf16>
    %10 = arith.extf %9 : vector<8x36xbf16> to vector<8x36xf32>
    %11 = tpu.concatenate %8, %8, %8, %8, %8, %8, %8, %8, %8 in 1 : vector<1x4xf32>, vector<1x4xf32>, vector<1x4xf32>, vector<1x4xf32>, vector<1x4xf32>, vector<1x4xf32>, vector<1x4xf32>, vector<1x4xf32>, vector<1x4xf32> -> vector<1x36xf32>
    %12 = vector.broadcast %11 : vector<1x36xf32> to vector<8x36xf32>
    %13 = arith.mulf %10, %12 : vector<8x36xf32>
    %c0_9 = arith.constant 0 : index
    %c0_10 = arith.constant 0 : index
    %14 = vector.load %arg9[%c0_9, %c0_10] : memref<8x4xf32, #tpu.memory_space<vmem>>, vector<8x4xf32>
    %15 = arith.mulf %8, %8 : vector<1x4xf32>
    %16 = vector.broadcast %15 : vector<1x4xf32> to vector<8x4xf32>
    %17 = arith.mulf %14, %16 : vector<8x4xf32>
    %cst_11 = arith.constant dense<0.000000e+00> : vector<8xf32>
    %18 = vector.multi_reduction <add>, %17, %cst_11 [1] : vector<8x4xf32> to vector<8xf32>
    %19 = vector.shape_cast %18 : vector<8xf32> to vector<8x1xf32>
    %cst_12 = arith.constant 9.99999993E-9 : f32
    %20 = vector.broadcast %cst_12 : f32 to vector<8x1xf32>
    %21 = arith.addf %19, %20 : vector<8x1xf32>
    %22 = math.rsqrt %21 : vector<8x1xf32>
    %23 = vector.broadcast %22 : vector<8x1xf32> to vector<8x36xf32>
    %24 = arith.mulf %13, %23 : vector<8x36xf32>
    %25 = arith.truncf %24 : vector<8x36xf32> to vector<8x36xbf16>
    %c0_13 = arith.constant 0 : index
    %c0_14 = arith.constant 0 : index
    %26 = vector.load %arg14[%c0_13, %c0_14] : memref<36x1024xbf16, #tpu.memory_space<vmem>>, vector<36x1024xbf16>
    %cst_15 = arith.constant dense<0.000000e+00> : vector<8x1024xf32>
    %27 = tpu.matmul %25, %26, %cst_15 {dimension_numbers = #tpu.dot_dimension_numbers<[1], [0], [0], [1], [0, 0, 1, 1], [], []>} : vector<8x36xbf16>, vector<36x1024xbf16>, vector<8x1024xf32> -> vector<8x1024xf32>
    %c0_16 = arith.constant 0 : index
    %c0_17 = arith.constant 0 : index
    %c0_18 = arith.constant 0 : index
    %28 = vector.load %arg5[%c0_16, %c0_17, %c0_18] : memref<1x1x1024xf32, #tpu.memory_space<vmem>>, vector<1x1x1024xf32>
    %29 = vector.shape_cast %28 : vector<1x1x1024xf32> to vector<1x1024xf32>
    %30 = vector.broadcast %29 : vector<1x1024xf32> to vector<8x1024xf32>
    %31 = arith.addf %27, %30 : vector<8x1024xf32>
    %c0_19 = arith.constant 0 : index
    %c0_20 = arith.constant 0 : index
    %32 = vector.load %arg11[%c0_19, %c0_20] : memref<8x1xf32, #tpu.memory_space<vmem>>, vector<8x1xf32>
    %33 = vector.broadcast %32 : vector<8x1xf32> to vector<8x1024xf32>
    %34 = arith.addf %31, %33 : vector<8x1024xf32>
    %cst_21 = arith.constant 0.000000e+00 : f32
    %35 = vector.broadcast %cst_21 : f32 to vector<8x1024xf32>
    %36 = arith.cmpf oge, %34, %35 : vector<8x1024xf32>
    %cst_22 = arith.constant 0.00999999977 : f32
    %37 = vector.broadcast %cst_22 : f32 to vector<8x1024xf32>
    %38 = arith.mulf %37, %34 : vector<8x1024xf32>
    %39 = arith.select %36, %34, %38 : vector<8x1024xi1>, vector<8x1024xf32>
    %cst_23 = arith.constant 1.41421354 : f32
    %40 = vector.broadcast %cst_23 : f32 to vector<8x1024xf32>
    %41 = arith.mulf %39, %40 : vector<8x1024xf32>
    %42 = arith.truncf %41 : vector<8x1024xf32> to vector<8x1024xbf16>
    %c0_24 = arith.constant 0 : index
    %c0_25 = arith.constant 0 : index
    %c0_26 = arith.constant 0 : index
    %43 = vector.load %arg12[%c0_24, %c0_25, %c0_26] : memref<1x8x1024xbf16, #tpu.memory_space<vmem>>, vector<1x8x1024xbf16>
    %44 = vector.shape_cast %43 : vector<1x8x1024xbf16> to vector<8x1024xbf16>
    %45 = vector.shape_cast %42 : vector<8x1024xbf16> to vector<1x8x1024xbf16>
    tpu.vector_store %arg12[%c0_24, %c0_25, %c0_26], %45 {strides = array<i32>} : memref<1x8x1024xbf16, #tpu.memory_space<vmem>>, vector<1x8x1024xbf16>,
    return
  }
  func.func @transform_0(%arg0: i32, %arg1: i32) -> (i32, i32, i32) {
    %c0_i32 = arith.constant 0 : i32
    %c0_i32_0 = arith.constant 0 : i32
    %c0_i32_1 = arith.constant 0 : i32
    return %arg0, %c0_i32, %c0_i32_0 : i32, i32, i32
  }
  func.func @transform_1(%arg0: i32, %arg1: i32) -> (i32, i32) {
    %c0_i32 = arith.constant 0 : i32
    %c0_i32_0 = arith.constant 0 : i32
    %c0_i32_1 = arith.constant 0 : i32
    return %c0_i32, %c0_i32_0 : i32, i32
  }
  func.func @transform_2(%arg0: i32, %arg1: i32) -> (i32, i32, i32) {
    %c0_i32 = arith.constant 0 : i32
    %c0_i32_0 = arith.constant 0 : i32
    %c0_i32_1 = arith.constant 0 : i32
    return %arg0, %c0_i32, %c0_i32_0 : i32, i32, i32
  }
  func.func @transform_3(%arg0: i32, %arg1: i32) -> (i32, i32, i32) {
    %c0_i32 = arith.constant 0 : i32
    %c0_i32_0 = arith.constant 0 : i32
    %c0_i32_1 = arith.constant 0 : i32
    return %arg0, %c0_i32, %c0_i32_0 : i32, i32, i32
  }
  func.func @transform_4(%arg0: i32, %arg1: i32) -> (i32, i32) {
    %c0_i32 = arith.constant 0 : i32
    %c0_i32_0 = arith.constant 0 : i32
    %c0_i32_1 = arith.constant 0 : i32
    return %c0_i32, %c0_i32_0 : i32, i32
  }
  func.func @transform_5(%arg0: i32, %arg1: i32) -> (i32, i32) {
    %c0_i32 = arith.constant 0 : i32
    %c0_i32_0 = arith.constant 0 : i32
    %c0_i32_1 = arith.constant 0 : i32
    return %c0_i32, %c0_i32_0 : i32, i32
  }
  func.func @transform_6(%arg0: i32, %arg1: i32) -> (i32, i32) {
    %c0_i32 = arith.constant 0 : i32
    %c0_i32_0 = arith.constant 0 : i32
    %c0_i32_1 = arith.constant 0 : i32
    return %c0_i32, %c0_i32_0 : i32, i32
  }
  func.func @transform_7(%arg0: i32, %arg1: i32) -> (i32, i32) {
    %c0_i32 = arith.constant 0 : i32
    %c0_i32_0 = arith.constant 0 : i32
    return %arg1, %c0_i32 : i32, i32
  }
  func.func @transform_8(%arg0: i32, %arg1: i32) -> (i32, i32) {
    %c0_i32 = arith.constant 0 : i32
    %c0_i32_0 = arith.constant 0 : i32
    return %arg1, %c0_i32 : i32, i32
  }
  func.func @transform_9(%arg0: i32, %arg1: i32) -> (i32, i32) {
    %c0_i32 = arith.constant 0 : i32
    %c0_i32_0 = arith.constant 0 : i32
    return %arg1, %c0_i32 : i32, i32
  }
  func.func @transform_10(%arg0: i32, %arg1: i32) -> (i32, i32, i32) {
    %c0_i32 = arith.constant 0 : i32
    %c0_i32_0 = arith.constant 0 : i32
    return %arg0, %arg1, %c0_i32 : i32, i32, i32
  }
}

</mosaic_0001>

<llo_original>
// kernel: tpu_custom_call.1
$region0: #{tpu_custom_call.1}
  #allocation0 [shape = 'u32[]', space=smem, size = 0x4, offset = 0x4, fixed_abs, tag = 'smem constant byte address 0x4 - core index']
  #allocation1 [shape = 'u32[144,128]{1,0:T(1,128)}', space=vmem, size = 0x12000, scoped, tag = 'internal scratch']
  #allocation2 [shape = 'bf16[4,1152]{1,0:T(4,128)(2,1)}', space=vmem, size = 0x2400, scoped, tag = 'scratch operand']
  #allocation3 [shape = 'bf16[36,1024]{1,0:T(8,128)(2,1)}', space=vmem, size = 0x14000, scoped, tag = 'scratch operand']
  %s0 = inlined_call_operand.vmem [shape: f32[2,4,256], index: 0, kind: input, shape index: {}]
  %s1 = inlined_call_operand.hbm [shape: bf16[256,1024], index: 1, kind: input, shape index: {}]
  %s2 = inlined_call_operand.vmem [shape: f32[2,1,32], index: 2, kind: input, shape index: {}]
  %s3 = inlined_call_operand.vmem [shape: f32[2,1,1024], index: 3, kind: input, shape index: {}]
  %s4 = inlined_call_operand.vmem [shape: bf16[3,1024], index: 4, kind: input, shape index: {}]
  %s5 = inlined_call_operand.vmem [shape: f32[32,4], index: 5, kind: input, shape index: {}]
  %s6 = inlined_call_operand.vmem [shape: f32[1,4], index: 6, kind: input, shape index: {}]
  %s7 = inlined_call_operand.vmem [shape: f32[8,4], index: 7, kind: input, shape index: {}]
  %s8 = inlined_call_operand.vmem [shape: bf16[8,36], index: 8, kind: input, shape index: {}]
  %s9 = inlined_call_operand.vmem [shape: f32[8,1], index: 9, kind: input, shape index: {}]
  %s10 = inlined_call_operand.hbm [shape: bf16[2,8,1024], index: 10, kind: output, shape index: {}]
  %s11 = sld [smem:[#allocation0]]
  $region81: #{tpu_custom_call.1} parent=0
    _
  %s13 = ssub.s32 1, %s11
  %s14 = scalar_select 0, %s13, %s11
  $region1: #{tpu_custom_call.1} parent=0
    #allocation4 [shape = 'u8[524288]{0}', space=vmem, size = 0x80000, scoped, tag = 'input window, operand 1, single buffered']
    #allocation5 [shape = 's32[2]{0}', space=sflag, size = 0x8, scoped, tag = 'scoped memory for tpu_custom_call.1']
    #allocation6 [shape = 's32[2]{0}', space=sflag, size = 0x8, scoped, tag = 'scoped memory for tpu_custom_call.1']
    #allocation7 [shape = 'u8[32768]{0}', space=vmem, size = 0x8000, scoped, tag = 'output window, operand 0']
    %15 = vsyncpa [#allocation5], 0
    %16 = vsyncpa [#allocation6], 0
    %s17 = scalar_lea.sflag [#allocation6], 1
    %18 = vsyncpa %s17, 0
    loop: start=0, step=1, limit=4
    $region2: #{tpu_custom_call.1} parent=1 // loop_pre_header
      _
    $region3: #{tpu_custom_call.1} parent=1 // loop_header
      %s20 = sphi 0, %s24
      %p21 = scmp.ge.s32.totalorder %s20, 4
      %s27 = sphi 0, %s39
      %s28 = sphi 0, %s35
      %s29 = sphi 0, %s27
      %s30 = sphi 0, %s28
      %s31 = sphi 0, %s29
      %s32 = sphi 0, %s30
      %s42 = sphi 0, %s44
      %s45 = sphi 0, %s42
      %s46 = sphi 0, %s45
      %s62 = sphi 0, %s46
      %s66 = sphi 0, %s66
      %s68 = sphi 0, %s66
      %s69 = sphi 0, %s68
      %s83 = sphi 0, %s69
      %s89 = sphi 0, %s91
      %s92 = sphi 0, %s89
      %s93 = sphi 0, %s92
      %s109 = sphi 0, %s93
      %s115 = sphi 0, %s117
      %s118 = sphi 0, %s115
      %s119 = sphi 0, %s118
      %s135 = sphi 0, %s119
      %s139 = sphi 0, %s139
      %s141 = sphi 0, %s139
      %s142 = sphi 0, %s141
      %s156 = sphi 0, %s142
      %s160 = sphi 0, %s160
      %s162 = sphi 0, %s160
      %s163 = sphi 0, %s162
      %s177 = sphi 0, %s163
      %s181 = sphi 0, %s181
      %s183 = sphi 0, %s181
      %s184 = sphi 0, %s183
      %s198 = sphi 0, %s184
      %s204 = sphi 0, %s206
      %s207 = sphi 0, %s204
      %s208 = sphi 0, %s207
      %s224 = sphi 0, %s208
      %s230 = sphi 0, %s232
      %s233 = sphi 0, %s230
      %s234 = sphi 0, %s233
      %s250 = sphi 0, %s234
      %s256 = sphi 0, %s258
      %s259 = sphi 0, %s256
      %s260 = sphi 0, %s259
      %s276 = sphi 0, %s260
      %s284 = sphi 0, %s286
      %s287 = sphi 0, %s284
      %s288 = sphi 0, %s287
      %s304 = sphi 0, %s288
    $region4: #{tpu_custom_call.1} parent=1 // loop_header_branch
      %23 = sbr.rel (%p21) target = $region8
    $region5: #{tpu_custom_call.1} parent=1 // loop_body
      %s25 = ssub.s32 %s20, 1
      %s26 = ssub.s32 %s20, 2
      %s33 = sadd.s32 1, %s28
      %p34 = scmp.ge.s32.totalorder %s33, 1
      %s35 = scalar_select %p34, 0, %s33
      %s36 = sadd.s32 1, %s27
      %s37 = scalar_select %p34, %s36, %s27
      %p38 = scmp.ge.s32.totalorder %s37, 2
      %s39 = scalar_select %p38, 0, %s37
      %s40 = ssub.s32 %s27, %s39
      %p41 = scmp.eq.s32.totalorder %s40, 0
      %s43 = sadd.s32 %s42, 1
      %s44 = scalar_select %p41, %s42, %s43
      %p47 = pneg %p41
      %p48 = scmp.eq.s32.totalorder %s20, 1
      %p49 = por %p47, %p48
      %p50 = scmp.ne.s32.totalorder %s42, %s45
      %p51 = scmp.eq.s32.totalorder %s20, 0
      %p52 = por %p50, %p51
      %p53 = scmp.ne.s32.totalorder %s42, %s45
      %p54 = scmp.eq.s32.totalorder %s25, 1
      %p55 = por %p53, %p54
      %p56 = scmp.ne.s32.totalorder %s45, %s46
      %p57 = scmp.eq.s32.totalorder %s25, 0
      %p58 = por %p56, %p57
      %p59 = scmp.ne.s32.totalorder %s45, %s46
      %p60 = scmp.eq.s32.totalorder %s26, 1
      %p61 = por %p59, %p60
      %p63 = scmp.ne.s32.totalorder %s46, %s62
      %p64 = scmp.eq.s32.totalorder %s26, 0
      %p65 = por %p63, %p64
      %s67 = sadd.s32 %s66, 1
      %p70 = scmp.eq.s32.totalorder %s20, 1
      %p71 = scmp.ne.s32.totalorder %s66, %s68
      %p72 = scmp.eq.s32.totalorder %s20, 0
      %p73 = por %p71, %p72
      %p74 = scmp.ne.s32.totalorder %s66, %s68
      %p75 = scmp.eq.s32.totalorder %s25, 1
      %p76 = por %p74, %p75
      %p77 = scmp.ne.s32.totalorder %s68, %s69
      %p78 = scmp.eq.s32.totalorder %s25, 0
      %p79 = por %p77, %p78
      %p80 = scmp.ne.s32.totalorder %s68, %s69
      %p81 = scmp.eq.s32.totalorder %s26, 1
      %p82 = por %p80, %p81
      %p84 = scmp.ne.s32.totalorder %s69, %s83
      %p85 = scmp.eq.s32.totalorder %s26, 0
      %p86 = por %p84, %p85
      %s87 = ssub.s32 %s27, %s39
      %p88 = scmp.eq.s32.totalorder %s87, 0
      %s90 = sadd.s32 %s89, 1
      %s91 = scalar_select %p88, %s89, %s90
      %p94 = pneg %p88
      %p95 = scmp.eq.s32.totalorder %s20, 1
      %p96 = por %p94, %p95
      %p97 = scmp.ne.s32.totalorder %s89, %s92
      %p98 = scmp.eq.s32.totalorder %s20, 0
      %p99 = por %p97, %p98
      %p100 = scmp.ne.s32.totalorder %s89, %s92
      %p101 = scmp.eq.s32.totalorder %s25, 1
      %p102 = por %p100, %p101
      %p103 = scmp.ne.s32.totalorder %s92, %s93
      %p104 = scmp.eq.s32.totalorder %s25, 0
      %p105 = por %p103, %p104
      %p106 = scmp.ne.s32.totalorder %s92, %s93
      %p107 = scmp.eq.s32.totalorder %s26, 1
      %p108 = por %p106, %p107
      %p110 = scmp.ne.s32.totalorder %s93, %s109
      %p111 = scmp.eq.s32.totalorder %s26, 0
      %p112 = por %p110, %p111
      %s113 = ssub.s32 %s27, %s39
      %p114 = scmp.eq.s32.totalorder %s113, 0
      %s116 = sadd.s32 %s115, 1
      %s117 = scalar_select %p114, %s115, %s116
      %p120 = pneg %p114
      %p121 = scmp.eq.s32.totalorder %s20, 1
      %p122 = por %p120, %p121
      %p123 = scmp.ne.s32.totalorder %s115, %s118
      %p124 = scmp.eq.s32.totalorder %s20, 0
      %p125 = por %p123, %p124
      %p126 = scmp.ne.s32.totalorder %s115, %s118
      %p127 = scmp.eq.s32.totalorder %s25, 1
      %p128 = por %p126, %p127
      %p129 = scmp.ne.s32.totalorder %s118, %s119
      %p130 = scmp.eq.s32.totalorder %s25, 0
      %p131 = por %p129, %p130
      %p132 = scmp.ne.s32.totalorder %s118, %s119
      %p133 = scmp.eq.s32.totalorder %s26, 1
      %p134 = por %p132, %p133
      %p136 = scmp.ne.s32.totalorder %s119, %s135
      %p137 = scmp.eq.s32.totalorder %s26, 0
      %p138 = por %p136, %p137
      %s140 = sadd.s32 %s139, 1
      %p143 = scmp.eq.s32.totalorder %s20, 1
      %p144 = scmp.ne.s32.totalorder %s139, %s141
      %p145 = scmp.eq.s32.totalorder %s20, 0
      %p146 = por %p144, %p145
      %p147 = scmp.ne.s32.totalorder %s139, %s141
      %p148 = scmp.eq.s32.totalorder %s25, 1
      %p149 = por %p147, %p148
      %p150 = scmp.ne.s32.totalorder %s141, %s142
      %p151 = scmp.eq.s32.totalorder %s25, 0
      %p152 = por %p150, %p151
      %p153 = scmp.ne.s32.totalorder %s141, %s142
      %p154 = scmp.eq.s32.totalorder %s26, 1
      %p155 = por %p153, %p154
      %p157 = scmp.ne.s32.totalorder %s142, %s156
      %p158 = scmp.eq.s32.totalorder %s26, 0
      %p159 = por %p157, %p158
      %s161 = sadd.s32 %s160, 1
      %p164 = scmp.eq.s32.totalorder %s20, 1
      %p165 = scmp.ne.s32.totalorder %s160, %s162
      %p166 = scmp.eq.s32.totalorder %s20, 0
      %p167 = por %p165, %p166
      %p168 = scmp.ne.s32.totalorder %s160, %s162
      %p169 = scmp.eq.s32.totalorder %s25, 1
      %p170 = por %p168, %p169
      %p171 = scmp.ne.s32.totalorder %s162, %s163
      %p172 = scmp.eq.s32.totalorder %s25, 0
      %p173 = por %p171, %p172
      %p174 = scmp.ne.s32.totalorder %s162, %s163
      %p175 = scmp.eq.s32.totalorder %s26, 1
      %p176 = por %p174, %p175
      %p178 = scmp.ne.s32.totalorder %s163, %s177
      %p179 = scmp.eq.s32.totalorder %s26, 0
      %p180 = por %p178, %p179
      %s182 = sadd.s32 %s181, 1
      %p185 = scmp.eq.s32.totalorder %s20, 1
      %p186 = scmp.ne.s32.totalorder %s181, %s183
      %p187 = scmp.eq.s32.totalorder %s20, 0
      %p188 = por %p186, %p187
      %p189 = scmp.ne.s32.totalorder %s181, %s183
      %p190 = scmp.eq.s32.totalorder %s25, 1
      %p191 = por %p189, %p190
      %p192 = scmp.ne.s32.totalorder %s183, %s184
      %p193 = scmp.eq.s32.totalorder %s25, 0
      %p194 = por %p192, %p193
      %p195 = scmp.ne.s32.totalorder %s183, %s184
      %p196 = scmp.eq.s32.totalorder %s26, 1
      %p197 = por %p195, %p196
      %p199 = scmp.ne.s32.totalorder %s184, %s198
      %p200 = scmp.eq.s32.totalorder %s26, 0
      %p201 = por %p199, %p200
      %s202 = ssub.s32 %s28, %s35
      %p203 = scmp.eq.s32.totalorder %s202, 0
      %s205 = sadd.s32 %s204, 1
      %s206 = scalar_select %p203, %s204, %s205
      %p209 = pneg %p203
      %p210 = scmp.eq.s32.totalorder %s20, 1
      %p211 = por %p209, %p210
      %p212 = scmp.ne.s32.totalorder %s204, %s207
      %p213 = scmp.eq.s32.totalorder %s20, 0
      %p214 = por %p212, %p213
      %p215 = scmp.ne.s32.totalorder %s204, %s207
      %p216 = scmp.eq.s32.totalorder %s25, 1
      %p217 = por %p215, %p216
      %p218 = scmp.ne.s32.totalorder %s207, %s208
      %p219 = scmp.eq.s32.totalorder %s25, 0
      %p220 = por %p218, %p219
      %p221 = scmp.ne.s32.totalorder %s207, %s208
      %p222 = scmp.eq.s32.totalorder %s26, 1
      %p223 = por %p221, %p222
      %p225 = scmp.ne.s32.totalorder %s208, %s224
      %p226 = scmp.eq.s32.totalorder %s26, 0
      %p227 = por %p225, %p226
      %s228 = ssub.s32 %s28, %s35
      %p229 = scmp.eq.s32.totalorder %s228, 0
      %s231 = sadd.s32 %s230, 1
      %s232 = scalar_select %p229, %s230, %s231
      %p235 = pneg %p229
      %p236 = scmp.eq.s32.totalorder %s20, 1
      %p237 = por %p235, %p236
      %p238 = scmp.ne.s32.totalorder %s230, %s233
      %p239 = scmp.eq.s32.totalorder %s20, 0
      %p240 = por %p238, %p239
      %p241 = scmp.ne.s32.totalorder %s230, %s233
      %p242 = scmp.eq.s32.totalorder %s25, 1
      %p243 = por %p241, %p242
      %p244 = scmp.ne.s32.totalorder %s233, %s234
      %p245 = scmp.eq.s32.totalorder %s25, 0
      %p246 = por %p244, %p245
      %p247 = scmp.ne.s32.totalorder %s233, %s234
      %p248 = scmp.eq.s32.totalorder %s26, 1
      %p249 = por %p247, %p248
      %p251 = scmp.ne.s32.totalorder %s234, %s250
      %p252 = scmp.eq.s32.totalorder %s26, 0
      %p253 = por %p251, %p252
      %s254 = ssub.s32 %s28, %s35
      %p255 = scmp.eq.s32.totalorder %s254, 0
      %s257 = sadd.s32 %s256, 1
      %s258 = scalar_select %p255, %s256, %s257
      %p261 = pneg %p255
      %p262 = scmp.eq.s32.totalorder %s20, 1
      %p263 = por %p261, %p262
      %p264 = scmp.ne.s32.totalorder %s256, %s259
      %p265 = scmp.eq.s32.totalorder %s20, 0
      %p266 = por %p264, %p265
      %p267 = scmp.ne.s32.totalorder %s256, %s259
      %p268 = scmp.eq.s32.totalorder %s25, 1
      %p269 = por %p267, %p268
      %p270 = scmp.ne.s32.totalorder %s259, %s260
      %p271 = scmp.eq.s32.totalorder %s25, 0
      %p272 = por %p270, %p271
      %p273 = scmp.ne.s32.totalorder %s259, %s260
      %p274 = scmp.eq.s32.totalorder %s26, 1
      %p275 = por %p273, %p274
      %p277 = scmp.ne.s32.totalorder %s260, %s276
      %p278 = scmp.eq.s32.totalorder %s26, 0
      %p279 = por %p277, %p278
      %s280 = ssub.s32 %s27, %s39
      %s281 = ssub.s32 %s28, %s35
      %s282 = sor.u32 %s280, %s281
      %p283 = scmp.eq.s32.totalorder %s282, 0
      %s285 = sadd.s32 %s284, 1
      %s286 = scalar_select %p283, %s284, %s285
      %p289 = pneg %p283
      %p290 = scmp.eq.s32.totalorder %s20, 1
      %p291 = por %p289, %p290
      %p292 = scmp.ne.s32.totalorder %s284, %s287
      %p293 = scmp.eq.s32.totalorder %s20, 0
      %p294 = por %p292, %p293
      %p295 = scmp.ne.s32.totalorder %s284, %s287
      %p296 = scmp.eq.s32.totalorder %s25, 1
      %p297 = por %p295, %p296
      %p298 = scmp.ne.s32.totalorder %s287, %s288
      %p299 = scmp.eq.s32.totalorder %s25, 0
      %p300 = por %p298, %p299
      %p301 = scmp.ne.s32.totalorder %s287, %s288
      %p302 = scmp.eq.s32.totalorder %s26, 1
      %p303 = por %p301, %p302
      %p305 = scmp.ne.s32.totalorder %s288, %s304
      %p306 = scmp.eq.s32.totalorder %s26, 0
      %p307 = por %p305, %p306
      %p308 = scmp.le.s32.totalorder 1, %s20
      %p309 = scmp.lt.s32.totalorder %s20, 3
      %p310 = pnand %p308, %p309
      %p311 = pneg %p310
      // Predicated region
      $region9: #{tpu_custom_call.1} parent=5 // pred_check
        _
      $region10: #{tpu_custom_call.1} parent=5 // pred_check_branch
        %313 = sbr.rel (%p310) target = $region12
      $region11: #{tpu_custom_call.1} parent=5 // pred_region
        %s314 = ssub.s32 %s20, 1
        // Predicated region
        $region13: #{tpu_custom_call.1} parent=11 // pred_check
          %p315 = pneg %p79
        $region14: #{tpu_custom_call.1} parent=11 // pred_check_branch
          %317 = sbr.rel (%p315) target = $region16
        $region15: #{tpu_custom_call.1} parent=11 // pred_region
          %s319 = ssub.s32 16384, 16384
          %320 = vsyncadd [#allocation5], %s319
          %s321 = sshll.u32 [#allocation4], 4
          %s322 = int_to_ptr.vmem [resolvable:$true] %s321
          %327 = dma.hbm_to_vmem [thread:$0]  %s1, 16384, %s322, [#allocation5], 512, 512, 32
        $region16: #{tpu_custom_call.1} parent=11 // pred_fallthru
          _
        // Predicated region
        $region17: #{tpu_custom_call.1} parent=11 // pred_check
          %p328 = pneg %p152
        $region18: #{tpu_custom_call.1} parent=11 // pred_check_branch
          %330 = sbr.rel (%p328) target = $region20
        $region19: #{tpu_custom_call.1} parent=11 // pred_region
          _
        $region20: #{tpu_custom_call.1} parent=11 // pred_fallthru
          _
        // Predicated region
        $region21: #{tpu_custom_call.1} parent=11 // pred_check
          %p331 = pneg %p173
        $region22: #{tpu_custom_call.1} parent=11 // pred_check_branch
          %333 = sbr.rel (%p331) target = $region24
        $region23: #{tpu_custom_call.1} parent=11 // pred_region
          _
        $region24: #{tpu_custom_call.1} parent=11 // pred_fallthru
          _
        // Predicated region
        $region25: #{tpu_custom_call.1} parent=11 // pred_check
          %p334 = pneg %p194
        $region26: #{tpu_custom_call.1} parent=11 // pred_check_branch
          %336 = sbr.rel (%p334) target = $region28
        $region27: #{tpu_custom_call.1} parent=11 // pred_region
          _
        $region28: #{tpu_custom_call.1} parent=11 // pred_fallthru
          _
        // Predicated region
        $region29: #{tpu_custom_call.1} parent=11 // pred_check
          %p337 = pneg %p220
        $region30: #{tpu_custom_call.1} parent=11 // pred_check_branch
          %339 = sbr.rel (%p337) target = $region32
        $region31: #{tpu_custom_call.1} parent=11 // pred_region
          %p340 = scmp.lt.s32.totalorder %s30, 0
          %s341 = scalar_select %p340, %s30, 0
          %s342 = smul.addr %s341, 8
          %s343 = scalar_lea.vmem %s7, %s342
        $region32: #{tpu_custom_call.1} parent=11 // pred_fallthru
          _
        // Predicated region
        $region33: #{tpu_custom_call.1} parent=11 // pred_check
          %p344 = pneg %p246
        $region34: #{tpu_custom_call.1} parent=11 // pred_check_branch
          %346 = sbr.rel (%p344) target = $region36
        $region35: #{tpu_custom_call.1} parent=11 // pred_region
          %p347 = scmp.lt.s32.totalorder %s30, 0
          %s348 = scalar_select %p347, %s30, 0
          %s349 = smul.addr %s348, 4
          %s350 = scalar_lea.vmem %s8, %s349
        $region36: #{tpu_custom_call.1} parent=11 // pred_fallthru
          _
        // Predicated region
        $region37: #{tpu_custom_call.1} parent=11 // pred_check
          %p351 = pneg %p272
        $region38: #{tpu_custom_call.1} parent=11 // pred_check_branch
          %353 = sbr.rel (%p351) target = $region40
        $region39: #{tpu_custom_call.1} parent=11 // pred_region
          %p354 = scmp.lt.s32.totalorder %s30, 0
          %s355 = scalar_select %p354, %s30, 0
          %s356 = smul.addr %s355, 8
          %s357 = scalar_lea.vmem %s9, %s356
        $region40: #{tpu_custom_call.1} parent=11 // pred_fallthru
          _
      $region12: #{tpu_custom_call.1} parent=5 // pred_fallthru
        _
      %p358 = scmp.lt.s32.totalorder %s20, 2
      // Predicated region
      $region41: #{tpu_custom_call.1} parent=5 // pred_check
        %p359 = pneg %p358
      $region42: #{tpu_custom_call.1} parent=5 // pred_check_branch
        %361 = sbr.rel (%p359) target = $region44
      $region43: #{tpu_custom_call.1} parent=5 // pred_region
        // Predicated region
        $region45: #{tpu_custom_call.1} parent=43 // pred_check
          %p362 = pneg %p52
        $region46: #{tpu_custom_call.1} parent=43 // pred_check_branch
          %364 = sbr.rel (%p362) target = $region48
        $region47: #{tpu_custom_call.1} parent=43 // pred_region
          %p365 = scmp.lt.s32.totalorder %s27, 1
          %s366 = scalar_select %p365, %s27, 1
          %s367 = smul.addr %s366, 2
          %s368 = smul.addr %s367, 4
          %s369 = scalar_lea.vmem %s0, %s368
        $region48: #{tpu_custom_call.1} parent=43 // pred_fallthru
          _
        // Predicated region
        $region49: #{tpu_custom_call.1} parent=43 // pred_check
          %p370 = pneg %p99
        $region50: #{tpu_custom_call.1} parent=43 // pred_check_branch
          %372 = sbr.rel (%p370) target = $region52
        $region51: #{tpu_custom_call.1} parent=43 // pred_region
          %p373 = scmp.lt.s32.totalorder %s27, 1
          %s374 = scalar_select %p373, %s27, 1
          %s375 = scalar_lea.vmem %s2, %s374
        $region52: #{tpu_custom_call.1} parent=43 // pred_fallthru
          _
        // Predicated region
        $region53: #{tpu_custom_call.1} parent=43 // pred_check
          %p376 = pneg %p125
        $region54: #{tpu_custom_call.1} parent=43 // pred_check_branch
          %378 = sbr.rel (%p376) target = $region56
        $region55: #{tpu_custom_call.1} parent=43 // pred_region
          %p379 = scmp.lt.s32.totalorder %s27, 1
          %s380 = scalar_select %p379, %s27, 1
          %s381 = smul.addr %s380, 8
          %s382 = scalar_lea.vmem %s3, %s381
        $region56: #{tpu_custom_call.1} parent=43 // pred_fallthru
          _
      $region44: #{tpu_custom_call.1} parent=5 // pred_fallthru
        _
      %p383 = scmp.le.s32.totalorder 1, %s20
      %p384 = scmp.lt.s32.totalorder %s20, 3
      %p385 = pnand %p383, %p384
      %p386 = pneg %p385
      // Predicated region
      $region57: #{tpu_custom_call.1} parent=5 // pred_check
        _
      $region58: #{tpu_custom_call.1} parent=5 // pred_check_branch
        %388 = sbr.rel (%p385) target = $region60
      $region59: #{tpu_custom_call.1} parent=5 // pred_region
        %s389 = ssub.s32 %s20, 1
        // Predicated region
        $region61: #{tpu_custom_call.1} parent=59 // pred_check
          %p390 = pneg %p79
        $region62: #{tpu_custom_call.1} parent=59 // pred_check_branch
          %392 = sbr.rel (%p390) target = $region64
        $region63: #{tpu_custom_call.1} parent=59 // pred_region
          %393 = dma.done [#allocation5], 16384
        $region64: #{tpu_custom_call.1} parent=59 // pred_fallthru
          _
        %p394 = scmp.lt.s32.totalorder %s29, 1
        %s395 = scalar_select %p394, %s29, 1
        %s396 = smul.addr %s395, 2
        %s397 = smul.addr %s396, 4
        %s398 = scalar_lea.vmem %s0, %s397
        %p399 = pneg %p58
        %p400 = pneg %p55
        %p401 = pneg %p79
        %p402 = pneg %p76
        %p403 = scmp.lt.s32.totalorder %s29, 1
        %s404 = scalar_select %p403, %s29, 1
        %s405 = scalar_lea.vmem %s2, %s404
        %p406 = pneg %p105
        %p407 = pneg %p102
        %p408 = scmp.lt.s32.totalorder %s29, 1
        %s409 = scalar_select %p408, %s29, 1
        %s410 = smul.addr %s409, 8
        %s411 = scalar_lea.vmem %s3, %s410
        %p412 = pneg %p131
        %p413 = pneg %p128
        %p414 = pneg %p152
        %p415 = pneg %p149
        %p416 = pneg %p173
        %p417 = pneg %p170
        %p418 = pneg %p194
        %p419 = pneg %p191
        %p420 = scmp.lt.s32.totalorder %s30, 0
        %s421 = scalar_select %p420, %s30, 0
        %s422 = smul.addr %s421, 8
        %s423 = scalar_lea.vmem %s7, %s422
        %p424 = pneg %p220
        %p425 = pneg %p217
        %p426 = scmp.lt.s32.totalorder %s30, 0
        %s427 = scalar_select %p426, %s30, 0
        %s428 = smul.addr %s427, 4
        %s429 = scalar_lea.vmem %s8, %s428
        %p430 = pneg %p246
        %p431 = pneg %p243
        %p432 = scmp.lt.s32.totalorder %s30, 0
        %s433 = scalar_select %p432, %s30, 0
        %s434 = smul.addr %s433, 8
        %s435 = scalar_lea.vmem %s9, %s434
        %p436 = pneg %p272
        %p437 = pneg %p269
        %p438 = pneg %p300
        %p439 = pneg %p297
        %s440 = sand.u32 %s287, 1
        %s441 = scalar_lea.sflag [#allocation6], %s440
        %s442 = sand.u32 %s287, 1
        %s443 = smul.addr %s442, 32
        %s444 = scalar_lea.vmem [#allocation7], %s443
        %p445 = scmp.lt.s32.totalorder %s29, 1
        %s446 = scalar_select %p445, %s29, 1
        %s447 = smul.addr %s446, 2
        %s448 = smul.addr %s447, 4
        %s449 = scalar_lea.vmem %s0, %s448
        %p450 = scmp.lt.s32.totalorder %s29, 1
        %s451 = scalar_select %p450, %s29, 1
        %s452 = scalar_lea.vmem %s2, %s451
        %p453 = scmp.lt.s32.totalorder %s29, 1
        %s454 = scalar_select %p453, %s29, 1
        %s455 = smul.addr %s454, 8
        %s456 = scalar_lea.vmem %s3, %s455
        %p457 = scmp.lt.s32.totalorder %s30, 0
        %s458 = scalar_select %p457, %s30, 0
        %s459 = smul.addr %s458, 8
        %s460 = scalar_lea.vmem %s7, %s459
        %p461 = scmp.lt.s32.totalorder %s30, 0
        %s462 = scalar_select %p461, %s30, 0
        %s463 = smul.addr %s462, 4
        %s464 = scalar_lea.vmem %s8, %s463
        %p465 = scmp.lt.s32.totalorder %s30, 0
        %s466 = scalar_select %p465, %s30, 0
        %s467 = smul.addr %s466, 8
        %s468 = scalar_lea.vmem %s9, %s467
        %p470 = scmp.eq.s32.totalorder %s30, 0
        // Predicated region
        $region65: #{tpu_custom_call.1} parent=59 // pred_check
          %p471 = pneg %p470
        $region66: #{tpu_custom_call.1} parent=59 // pred_check_branch
          %473 = sbr.rel (%p471) target = $region68
        $region67: #{tpu_custom_call.1} parent=59 // pred_region
          %vm474 = vcmask 517120
          %475 = vst.msk [vmem:[#allocation2] sm:$0x3] %vm474, 0
          %vm476 = vcmask 1041920
          %477 = vst.msk [vmem:[#allocation2 + $0x10] sm:$0x3] %vm476, 0
          %v478 = vld [vmem:[%s449] sm:$0xff]
          %v480 = vcombine.high %v478, %v478
          %v482 = vpack.c.bf16 %v478, %v478
          %v483 = vpack.c.bf16 %v480, %v480
          %v484 = vld [vmem:[#allocation4] sm:$0xff]
          %v485 = vld [vmem:[#allocation4 + $0x8] sm:$0xff]
          %v486 = vld [vmem:[#allocation4 + $0x10] sm:$0xff]
          %v487 = vld [vmem:[#allocation4 + $0x18] sm:$0xff]
          %v488 = vld [vmem:[#allocation4 + $0x20] sm:$0xff]
          %v489 = vld [vmem:[#allocation4 + $0x28] sm:$0xff]
          %v490 = vld [vmem:[#allocation4 + $0x30] sm:$0xff]
          %v491 = vld [vmem:[#allocation4 + $0x38] sm:$0xff]
          %v492 = vld [vmem:[#allocation4 + $0x40] sm:$0xff]
          %v493 = vld [vmem:[#allocation4 + $0x48] sm:$0xff]
          %v494 = vld [vmem:[#allocation4 + $0x50] sm:$0xff]
          %v495 = vld [vmem:[#allocation4 + $0x58] sm:$0xff]
          %v496 = vld [vmem:[#allocation4 + $0x60] sm:$0xff]
          %v497 = vld [vmem:[#allocation4 + $0x68] sm:$0xff]
          %v498 = vld [vmem:[#allocation4 + $0x70] sm:$0xff]
          %v499 = vld [vmem:[#allocation4 + $0x78] sm:$0xff]
          %v500 = vld [vmem:[#allocation4 + $0x80] sm:$0xff]
          %v501 = vld [vmem:[#allocation4 + $0x88] sm:$0xff]
          %v502 = vld [vmem:[#allocation4 + $0x90] sm:$0xff]
          %v503 = vld [vmem:[#allocation4 + $0x98] sm:$0xff]
          %v504 = vld [vmem:[#allocation4 + $0xa0] sm:$0xff]
          %v505 = vld [vmem:[#allocation4 + $0xa8] sm:$0xff]
          %v506 = vld [vmem:[#allocation4 + $0xb0] sm:$0xff]
          %v507 = vld [vmem:[#allocation4 + $0xb8] sm:$0xff]
          %v508 = vld [vmem:[#allocation4 + $0xc0] sm:$0xff]
          %v509 = vld [vmem:[#allocation4 + $0xc8] sm:$0xff]
          %v510 = vld [vmem:[#allocation4 + $0xd0] sm:$0xff]
          %v511 = vld [vmem:[#allocation4 + $0xd8] sm:$0xff]
          %v512 = vld [vmem:[#allocation4 + $0xe0] sm:$0xff]
          %v513 = vld [vmem:[#allocation4 + $0xe8] sm:$0xff]
          %v514 = vld [vmem:[#allocation4 + $0xf0] sm:$0xff]
          %v515 = vld [vmem:[#allocation4 + $0xf8] sm:$0xff]
          %v516 = vld [vmem:[#allocation4 + $0x100] sm:$0xff]
          %v517 = vld [vmem:[#allocation4 + $0x108] sm:$0xff]
          %v518 = vld [vmem:[#allocation4 + $0x110] sm:$0xff]
          %v519 = vld [vmem:[#allocation4 + $0x118] sm:$0xff]
          %v520 = vld [vmem:[#allocation4 + $0x120] sm:$0xff]
          %v521 = vld [vmem:[#allocation4 + $0x128] sm:$0xff]
          %v522 = vld [vmem:[#allocation4 + $0x130] sm:$0xff]
          %v523 = vld [vmem:[#allocation4 + $0x138] sm:$0xff]
          %v524 = vld [vmem:[#allocation4 + $0x140] sm:$0xff]
          %v525 = vld [vmem:[#allocation4 + $0x148] sm:$0xff]
          %v526 = vld [vmem:[#allocation4 + $0x150] sm:$0xff]
          %v527 = vld [vmem:[#allocation4 + $0x158] sm:$0xff]
          %v528 = vld [vmem:[#allocation4 + $0x160] sm:$0xff]
          %v529 = vld [vmem:[#allocation4 + $0x168] sm:$0xff]
          %v530 = vld [vmem:[#allocation4 + $0x170] sm:$0xff]
          %v531 = vld [vmem:[#allocation4 + $0x178] sm:$0xff]
          %v532 = vld [vmem:[#allocation4 + $0x180] sm:$0xff]
          %v533 = vld [vmem:[#allocation4 + $0x188] sm:$0xff]
          %v534 = vld [vmem:[#allocation4 + $0x190] sm:$0xff]
          %v535 = vld [vmem:[#allocation4 + $0x198] sm:$0xff]
          %v536 = vld [vmem:[#allocation4 + $0x1a0] sm:$0xff]
          %v537 = vld [vmem:[#allocation4 + $0x1a8] sm:$0xff]
          %v538 = vld [vmem:[#allocation4 + $0x1b0] sm:$0xff]
          %v539 = vld [vmem:[#allocation4 + $0x1b8] sm:$0xff]
          %v540 = vld [vmem:[#allocation4 + $0x1c0] sm:$0xff]
          %v541 = vld [vmem:[#allocation4 + $0x1c8] sm:$0xff]
          %v542 = vld [vmem:[#allocation4 + $0x1d0] sm:$0xff]
          %v543 = vld [vmem:[#allocation4 + $0x1d8] sm:$0xff]
          %v544 = vld [vmem:[#allocation4 + $0x1e0] sm:$0xff]
          %v545 = vld [vmem:[#allocation4 + $0x1e8] sm:$0xff]
          %v546 = vld [vmem:[#allocation4 + $0x1f0] sm:$0xff]
          %v547 = vld [vmem:[#allocation4 + $0x1f8] sm:$0xff]
          %v548 = vld [vmem:[#allocation4 + $0x200] sm:$0xff]
          %v549 = vld [vmem:[#allocation4 + $0x208] sm:$0xff]
          %v550 = vld [vmem:[#allocation4 + $0x210] sm:$0xff]
          %v551 = vld [vmem:[#allocation4 + $0x218] sm:$0xff]
          %v552 = vld [vmem:[#allocation4 + $0x220] sm:$0xff]
          %v553 = vld [vmem:[#allocation4 + $0x228] sm:$0xff]
          %v554 = vld [vmem:[#allocation4 + $0x230] sm:$0xff]
          %v555 = vld [vmem:[#allocation4 + $0x238] sm:$0xff]
          %v556 = vld [vmem:[#allocation4 + $0x240] sm:$0xff]
          %v557 = vld [vmem:[#allocation4 + $0x248] sm:$0xff]
          %v558 = vld [vmem:[#allocation4 + $0x250] sm:$0xff]
          %v559 = vld [vmem:[#allocation4 + $0x258] sm:$0xff]
          %v560 = vld [vmem:[#allocation4 + $0x260] sm:$0xff]
          %v561 = vld [vmem:[#allocation4 + $0x268] sm:$0xff]
          %v562 = vld [vmem:[#allocation4 + $0x270] sm:$0xff]
          %v563 = vld [vmem:[#allocation4 + $0x278] sm:$0xff]
          %v564 = vld [vmem:[#allocation4 + $0x280] sm:$0xff]
          %v565 = vld [vmem:[#allocation4 + $0x288] sm:$0xff]
          %v566 = vld [vmem:[#allocation4 + $0x290] sm:$0xff]
          %v567 = vld [vmem:[#allocation4 + $0x298] sm:$0xff]
          %v568 = vld [vmem:[#allocation4 + $0x2a0] sm:$0xff]
          %v569 = vld [vmem:[#allocation4 + $0x2a8] sm:$0xff]
          %v570 = vld [vmem:[#allocation4 + $0x2b0] sm:$0xff]
          %v571 = vld [vmem:[#allocation4 + $0x2b8] sm:$0xff]
          %v572 = vld [vmem:[#allocation4 + $0x2c0] sm:$0xff]
          %v573 = vld [vmem:[#allocation4 + $0x2c8] sm:$0xff]
          %v574 = vld [vmem:[#allocation4 + $0x2d0] sm:$0xff]
          %v575 = vld [vmem:[#allocation4 + $0x2d8] sm:$0xff]
          %v576 = vld [vmem:[#allocation4 + $0x2e0] sm:$0xff]
          %v577 = vld [vmem:[#allocation4 + $0x2e8] sm:$0xff]
          %v578 = vld [vmem:[#allocation4 + $0x2f0] sm:$0xff]
          %v579 = vld [vmem:[#allocation4 + $0x2f8] sm:$0xff]
          %v580 = vld [vmem:[#allocation4 + $0x300] sm:$0xff]
          %v581 = vld [vmem:[#allocation4 + $0x308] sm:$0xff]
          %v582 = vld [vmem:[#allocation4 + $0x310] sm:$0xff]
          %v583 = vld [vmem:[#allocation4 + $0x318] sm:$0xff]
          %v584 = vld [vmem:[#allocation4 + $0x320] sm:$0xff]
          %v585 = vld [vmem:[#allocation4 + $0x328] sm:$0xff]
          %v586 = vld [vmem:[#allocation4 + $0x330] sm:$0xff]
          %v587 = vld [vmem:[#allocation4 + $0x338] sm:$0xff]
          %v588 = vld [vmem:[#allocation4 + $0x340] sm:$0xff]
          %v589 = vld [vmem:[#allocation4 + $0x348] sm:$0xff]
          %v590 = vld [vmem:[#allocation4 + $0x350] sm:$0xff]
          %v591 = vld [vmem:[#allocation4 + $0x358] sm:$0xff]
          %v592 = vld [vmem:[#allocation4 + $0x360] sm:$0xff]
          %v593 = vld [vmem:[#allocation4 + $0x368] sm:$0xff]
          %v594 = vld [vmem:[#allocation4 + $0x370] sm:$0xff]
          %v595 = vld [vmem:[#allocation4 + $0x378] sm:$0xff]
          %v596 = vld [vmem:[#allocation4 + $0x380] sm:$0xff]
          %v597 = vld [vmem:[#allocation4 + $0x388] sm:$0xff]
          %v598 = vld [vmem:[#allocation4 + $0x390] sm:$0xff]
          %v599 = vld [vmem:[#allocation4 + $0x398] sm:$0xff]
          %v600 = vld [vmem:[#allocation4 + $0x3a0] sm:$0xff]
          %v601 = vld [vmem:[#allocation4 + $0x3a8] sm:$0xff]
          %v602 = vld [vmem:[#allocation4 + $0x3b0] sm:$0xff]
          %v603 = vld [vmem:[#allocation4 + $0x3b8] sm:$0xff]
          %v604 = vld [vmem:[#allocation4 + $0x3c0] sm:$0xff]
          %v605 = vld [vmem:[#allocation4 + $0x3c8] sm:$0xff]
          %v606 = vld [vmem:[#allocation4 + $0x3d0] sm:$0xff]
          %v607 = vld [vmem:[#allocation4 + $0x3d8] sm:$0xff]
          %v608 = vld [vmem:[#allocation4 + $0x3e0] sm:$0xff]
          %v609 = vld [vmem:[#allocation4 + $0x3e8] sm:$0xff]
          %v610 = vld [vmem:[#allocation4 + $0x3f0] sm:$0xff]
          %v611 = vld [vmem:[#allocation4 + $0x3f8] sm:$0xff]
          %v740 = vunpack.c.l.b16 %v484
          %v741 = vunpack.c.h.b16 %v484
          %v742 = vunpack.c.l.b16 %v485
          %v743 = vunpack.c.h.b16 %v485
          %v744 = vunpack.c.l.b16 %v486
          %v745 = vunpack.c.h.b16 %v486
          %v746 = vunpack.c.l.b16 %v487
          %v747 = vunpack.c.h.b16 %v487
          %v748 = vunpack.c.l.b16 %v488
          %v749 = vunpack.c.h.b16 %v488
          %v750 = vunpack.c.l.b16 %v489
          %v751 = vunpack.c.h.b16 %v489
          %v752 = vunpack.c.l.b16 %v490
          %v753 = vunpack.c.h.b16 %v490
          %v754 = vunpack.c.l.b16 %v491
          %v755 = vunpack.c.h.b16 %v491
          %v756 = vunpack.c.l.b16 %v492
          %v757 = vunpack.c.h.b16 %v492
          %v758 = vunpack.c.l.b16 %v493
          %v759 = vunpack.c.h.b16 %v493
          %v760 = vunpack.c.l.b16 %v494
          %v761 = vunpack.c.h.b16 %v494
          %v762 = vunpack.c.l.b16 %v495
          %v763 = vunpack.c.h.b16 %v495
          %v764 = vunpack.c.l.b16 %v496
          %v765 = vunpack.c.h.b16 %v496
          %v766 = vunpack.c.l.b16 %v497
          %v767 = vunpack.c.h.b16 %v497
          %v768 = vunpack.c.l.b16 %v498
          %v769 = vunpack.c.h.b16 %v498
          %v770 = vunpack.c.l.b16 %v499
          %v771 = vunpack.c.h.b16 %v499
          %v772 = vunpack.c.l.b16 %v500
          %v773 = vunpack.c.h.b16 %v500
          %v774 = vunpack.c.l.b16 %v501
          %v775 = vunpack.c.h.b16 %v501
          %v776 = vunpack.c.l.b16 %v502
          %v777 = vunpack.c.h.b16 %v502
          %v778 = vunpack.c.l.b16 %v503
          %v779 = vunpack.c.h.b16 %v503
          %v780 = vunpack.c.l.b16 %v504
          %v781 = vunpack.c.h.b16 %v504
          %v782 = vunpack.c.l.b16 %v505
          %v783 = vunpack.c.h.b16 %v505
          %v784 = vunpack.c.l.b16 %v506
          %v785 = vunpack.c.h.b16 %v506
          %v786 = vunpack.c.l.b16 %v507
          %v787 = vunpack.c.h.b16 %v507
          %v788 = vunpack.c.l.b16 %v508
          %v789 = vunpack.c.h.b16 %v508
          %v790 = vunpack.c.l.b16 %v509
          %v791 = vunpack.c.h.b16 %v509
          %v792 = vunpack.c.l.b16 %v510
          %v793 = vunpack.c.h.b16 %v510
          %v794 = vunpack.c.l.b16 %v511
          %v795 = vunpack.c.h.b16 %v511
          %v796 = vunpack.c.l.b16 %v512
          %v797 = vunpack.c.h.b16 %v512
          %v798 = vunpack.c.l.b16 %v513
          %v799 = vunpack.c.h.b16 %v513
          %v800 = vunpack.c.l.b16 %v514
          %v801 = vunpack.c.h.b16 %v514
          %v802 = vunpack.c.l.b16 %v515
          %v803 = vunpack.c.h.b16 %v515
          %v804 = vunpack.c.l.b16 %v516
          %v805 = vunpack.c.h.b16 %v516
          %v806 = vunpack.c.l.b16 %v517
          %v807 = vunpack.c.h.b16 %v517
          %v808 = vunpack.c.l.b16 %v518
          %v809 = vunpack.c.h.b16 %v518
          %v810 = vunpack.c.l.b16 %v519
          %v811 = vunpack.c.h.b16 %v519
          %v812 = vunpack.c.l.b16 %v520
          %v813 = vunpack.c.h.b16 %v520
          %v814 = vunpack.c.l.b16 %v521
          %v815 = vunpack.c.h.b16 %v521
          %v816 = vunpack.c.l.b16 %v522
          %v817 = vunpack.c.h.b16 %v522
          %v818 = vunpack.c.l.b16 %v523
          %v819 = vunpack.c.h.b16 %v523
          %v820 = vunpack.c.l.b16 %v524
          %v821 = vunpack.c.h.b16 %v524
          %v822 = vunpack.c.l.b16 %v525
          %v823 = vunpack.c.h.b16 %v525
          %v824 = vunpack.c.l.b16 %v526
          %v825 = vunpack.c.h.b16 %v526
          %v826 = vunpack.c.l.b16 %v527
          %v827 = vunpack.c.h.b16 %v527
          %v828 = vunpack.c.l.b16 %v528
          %v829 = vunpack.c.h.b16 %v528
          %v830 = vunpack.c.l.b16 %v529
          %v831 = vunpack.c.h.b16 %v529
          %v832 = vunpack.c.l.b16 %v530
          %v833 = vunpack.c.h.b16 %v530
          %v834 = vunpack.c.l.b16 %v531
          %v835 = vunpack.c.h.b16 %v531
          %v836 = vunpack.c.l.b16 %v532
          %v837 = vunpack.c.h.b16 %v532
          %v838 = vunpack.c.l.b16 %v533
          %v839 = vunpack.c.h.b16 %v533
          %v840 = vunpack.c.l.b16 %v534
          %v841 = vunpack.c.h.b16 %v534
          %v842 = vunpack.c.l.b16 %v535
          %v843 = vunpack.c.h.b16 %v535
          %v844 = vunpack.c.l.b16 %v536
          %v845 = vunpack.c.h.b16 %v536
          %v846 = vunpack.c.l.b16 %v537
          %v847 = vunpack.c.h.b16 %v537
          %v848 = vunpack.c.l.b16 %v538
          %v849 = vunpack.c.h.b16 %v538
          %v850 = vunpack.c.l.b16 %v539
          %v851 = vunpack.c.h.b16 %v539
          %v852 = vunpack.c.l.b16 %v540
          %v853 = vunpack.c.h.b16 %v540
          %v854 = vunpack.c.l.b16 %v541
          %v855 = vunpack.c.h.b16 %v541
          %v856 = vunpack.c.l.b16 %v542
          %v857 = vunpack.c.h.b16 %v542
          %v858 = vunpack.c.l.b16 %v543
          %v859 = vunpack.c.h.b16 %v543
          %v860 = vunpack.c.l.b16 %v544
          %v861 = vunpack.c.h.b16 %v544
          %v862 = vunpack.c.l.b16 %v545
          %v863 = vunpack.c.h.b16 %v545
          %v864 = vunpack.c.l.b16 %v546
          %v865 = vunpack.c.h.b16 %v546
          %v866 = vunpack.c.l.b16 %v547
          %v867 = vunpack.c.h.b16 %v547
          %v868 = vunpack.c.l.b16 %v548
          %v869 = vunpack.c.h.b16 %v548
          %v870 = vunpack.c.l.b16 %v549
          %v871 = vunpack.c.h.b16 %v549
          %v872 = vunpack.c.l.b16 %v550
          %v873 = vunpack.c.h.b16 %v550
          %v874 = vunpack.c.l.b16 %v551
          %v875 = vunpack.c.h.b16 %v551
          %v876 = vunpack.c.l.b16 %v552
          %v877 = vunpack.c.h.b16 %v552
          %v878 = vunpack.c.l.b16 %v553
          %v879 = vunpack.c.h.b16 %v553
          %v880 = vunpack.c.l.b16 %v554
          %v881 = vunpack.c.h.b16 %v554
          %v882 = vunpack.c.l.b16 %v555
          %v883 = vunpack.c.h.b16 %v555
          %v884 = vunpack.c.l.b16 %v556
          %v885 = vunpack.c.h.b16 %v556
          %v886 = vunpack.c.l.b16 %v557
          %v887 = vunpack.c.h.b16 %v557
          %v888 = vunpack.c.l.b16 %v558
          %v889 = vunpack.c.h.b16 %v558
          %v890 = vunpack.c.l.b16 %v559
          %v891 = vunpack.c.h.b16 %v559
          %v892 = vunpack.c.l.b16 %v560
          %v893 = vunpack.c.h.b16 %v560
          %v894 = vunpack.c.l.b16 %v561
          %v895 = vunpack.c.h.b16 %v561
          %v896 = vunpack.c.l.b16 %v562
          %v897 = vunpack.c.h.b16 %v562
          %v898 = vunpack.c.l.b16 %v563
          %v899 = vunpack.c.h.b16 %v563
          %v900 = vunpack.c.l.b16 %v564
          %v901 = vunpack.c.h.b16 %v564
          %v902 = vunpack.c.l.b16 %v565
          %v903 = vunpack.c.h.b16 %v565
          %v904 = vunpack.c.l.b16 %v566
          %v905 = vunpack.c.h.b16 %v566
          %v906 = vunpack.c.l.b16 %v567
          %v907 = vunpack.c.h.b16 %v567
          %v908 = vunpack.c.l.b16 %v568
          %v909 = vunpack.c.h.b16 %v568
          %v910 = vunpack.c.l.b16 %v569
          %v911 = vunpack.c.h.b16 %v569
          %v912 = vunpack.c.l.b16 %v570
          %v913 = vunpack.c.h.b16 %v570
          %v914 = vunpack.c.l.b16 %v571
          %v915 = vunpack.c.h.b16 %v571
          %v916 = vunpack.c.l.b16 %v572
          %v917 = vunpack.c.h.b16 %v572
          %v918 = vunpack.c.l.b16 %v573
          %v919 = vunpack.c.h.b16 %v573
          %v920 = vunpack.c.l.b16 %v574
          %v921 = vunpack.c.h.b16 %v574
          %v922 = vunpack.c.l.b16 %v575
          %v923 = vunpack.c.h.b16 %v575
          %v924 = vunpack.c.l.b16 %v576
          %v925 = vunpack.c.h.b16 %v576
          %v926 = vunpack.c.l.b16 %v577
          %v927 = vunpack.c.h.b16 %v577
          %v928 = vunpack.c.l.b16 %v578
          %v929 = vunpack.c.h.b16 %v578
          %v930 = vunpack.c.l.b16 %v579
          %v931 = vunpack.c.h.b16 %v579
          %v932 = vunpack.c.l.b16 %v580
          %v933 = vunpack.c.h.b16 %v580
          %v934 = vunpack.c.l.b16 %v581
          %v935 = vunpack.c.h.b16 %v581
          %v936 = vunpack.c.l.b16 %v582
          %v937 = vunpack.c.h.b16 %v582
          %v938 = vunpack.c.l.b16 %v583
          %v939 = vunpack.c.h.b16 %v583
          %v940 = vunpack.c.l.b16 %v584
          %v941 = vunpack.c.h.b16 %v584
          %v942 = vunpack.c.l.b16 %v585
          %v943 = vunpack.c.h.b16 %v585
          %v944 = vunpack.c.l.b16 %v586
          %v945 = vunpack.c.h.b16 %v586
          %v946 = vunpack.c.l.b16 %v587
          %v947 = vunpack.c.h.b16 %v587
          %v948 = vunpack.c.l.b16 %v588
          %v949 = vunpack.c.h.b16 %v588
          %v950 = vunpack.c.l.b16 %v589
          %v951 = vunpack.c.h.b16 %v589
          %v952 = vunpack.c.l.b16 %v590
          %v953 = vunpack.c.h.b16 %v590
          %v954 = vunpack.c.l.b16 %v591
          %v955 = vunpack.c.h.b16 %v591
          %v956 = vunpack.c.l.b16 %v592
          %v957 = vunpack.c.h.b16 %v592
          %v958 = vunpack.c.l.b16 %v593
          %v959 = vunpack.c.h.b16 %v593
          %v960 = vunpack.c.l.b16 %v594
          %v961 = vunpack.c.h.b16 %v594
          %v962 = vunpack.c.l.b16 %v595
          %v963 = vunpack.c.h.b16 %v595
          %v964 = vunpack.c.l.b16 %v596
          %v965 = vunpack.c.h.b16 %v596
          %v966 = vunpack.c.l.b16 %v597
          %v967 = vunpack.c.h.b16 %v597
          %v968 = vunpack.c.l.b16 %v598
          %v969 = vunpack.c.h.b16 %v598
          %v970 = vunpack.c.l.b16 %v599
          %v971 = vunpack.c.h.b16 %v599
          %v972 = vunpack.c.l.b16 %v600
          %v973 = vunpack.c.h.b16 %v600
          %v974 = vunpack.c.l.b16 %v601
          %v975 = vunpack.c.h.b16 %v601
          %v976 = vunpack.c.l.b16 %v602
          %v977 = vunpack.c.h.b16 %v602
          %v978 = vunpack.c.l.b16 %v603
          %v979 = vunpack.c.h.b16 %v603
          %v980 = vunpack.c.l.b16 %v604
          %v981 = vunpack.c.h.b16 %v604
          %v982 = vunpack.c.l.b16 %v605
          %v983 = vunpack.c.h.b16 %v605
          %v984 = vunpack.c.l.b16 %v606
          %v985 = vunpack.c.h.b16 %v606
          %v986 = vunpack.c.l.b16 %v607
          %v987 = vunpack.c.h.b16 %v607
          %v988 = vunpack.c.l.b16 %v608
          %v989 = vunpack.c.h.b16 %v608
          %v990 = vunpack.c.l.b16 %v609
          %v991 = vunpack.c.h.b16 %v609
          %v992 = vunpack.c.l.b16 %v610
          %v993 = vunpack.c.h.b16 %v610
          %v994 = vunpack.c.l.b16 %v611
          %v995 = vunpack.c.h.b16 %v611
          %v996 = vpack.c.b16 %v748, %v740
          %v997 = vpack.c.b16 %v749, %v741
          %v998 = vpack.c.b16 %v750, %v742
          %v999 = vpack.c.b16 %v751, %v743
          %v1000 = vpack.c.b16 %v752, %v744
          %v1001 = vpack.c.b16 %v753, %v745
          %v1002 = vpack.c.b16 %v754, %v746
          %v1003 = vpack.c.b16 %v755, %v747
          %v1004 = vpack.c.b16 %v764, %v756
          %v1005 = vpack.c.b16 %v765, %v757
          %v1006 = vpack.c.b16 %v766, %v758
          %v1007 = vpack.c.b16 %v767, %v759
          %v1008 = vpack.c.b16 %v768, %v760
          %v1009 = vpack.c.b16 %v769, %v761
          %v1010 = vpack.c.b16 %v770, %v762
          %v1011 = vpack.c.b16 %v771, %v763
          %v1012 = vpack.c.b16 %v780, %v772
          %v1013 = vpack.c.b16 %v781, %v773
          %v1014 = vpack.c.b16 %v782, %v774
          %v1015 = vpack.c.b16 %v783, %v775
          %v1016 = vpack.c.b16 %v784, %v776
          %v1017 = vpack.c.b16 %v785, %v777
          %v1018 = vpack.c.b16 %v786, %v778
          %v1019 = vpack.c.b16 %v787, %v779
          %v1020 = vpack.c.b16 %v796, %v788
          %v1021 = vpack.c.b16 %v797, %v789
          %v1022 = vpack.c.b16 %v798, %v790
          %v1023 = vpack.c.b16 %v799, %v791
          %v1024 = vpack.c.b16 %v800, %v792
          %v1025 = vpack.c.b16 %v801, %v793
          %v1026 = vpack.c.b16 %v802, %v794
          %v1027 = vpack.c.b16 %v803, %v795
          %v1028 = vpack.c.b16 %v812, %v804
          %v1029 = vpack.c.b16 %v813, %v805
          %v1030 = vpack.c.b16 %v814, %v806
          %v1031 = vpack.c.b16 %v815, %v807
          %v1032 = vpack.c.b16 %v816, %v808
          %v1033 = vpack.c.b16 %v817, %v809
          %v1034 = vpack.c.b16 %v818, %v810
          %v1035 = vpack.c.b16 %v819, %v811
          %v1036 = vpack.c.b16 %v828, %v820
          %v1037 = vpack.c.b16 %v829, %v821
          %v1038 = vpack.c.b16 %v830, %v822
          %v1039 = vpack.c.b16 %v831, %v823
          %v1040 = vpack.c.b16 %v832, %v824
          %v1041 = vpack.c.b16 %v833, %v825
          %v1042 = vpack.c.b16 %v834, %v826
          %v1043 = vpack.c.b16 %v835, %v827
          %v1044 = vpack.c.b16 %v844, %v836
          %v1045 = vpack.c.b16 %v845, %v837
          %v1046 = vpack.c.b16 %v846, %v838
          %v1047 = vpack.c.b16 %v847, %v839
          %v1048 = vpack.c.b16 %v848, %v840
          %v1049 = vpack.c.b16 %v849, %v841
          %v1050 = vpack.c.b16 %v850, %v842
          %v1051 = vpack.c.b16 %v851, %v843
          %v1052 = vpack.c.b16 %v860, %v852
          %v1053 = vpack.c.b16 %v861, %v853
          %v1054 = vpack.c.b16 %v862, %v854
          %v1055 = vpack.c.b16 %v863, %v855
          %v1056 = vpack.c.b16 %v864, %v856
          %v1057 = vpack.c.b16 %v865, %v857
          %v1058 = vpack.c.b16 %v866, %v858
          %v1059 = vpack.c.b16 %v867, %v859
          %v1060 = vpack.c.b16 %v876, %v868
          %v1061 = vpack.c.b16 %v877, %v869
          %v1062 = vpack.c.b16 %v878, %v870
          %v1063 = vpack.c.b16 %v879, %v871
          %v1064 = vpack.c.b16 %v880, %v872
          %v1065 = vpack.c.b16 %v881, %v873
          %v1066 = vpack.c.b16 %v882, %v874
          %v1067 = vpack.c.b16 %v883, %v875
          %v1068 = vpack.c.b16 %v892, %v884
          %v1069 = vpack.c.b16 %v893, %v885
          %v1070 = vpack.c.b16 %v894, %v886
          %v1071 = vpack.c.b16 %v895, %v887
          %v1072 = vpack.c.b16 %v896, %v888
          %v1073 = vpack.c.b16 %v897, %v889
          %v1074 = vpack.c.b16 %v898, %v890
          %v1075 = vpack.c.b16 %v899, %v891
          %v1076 = vpack.c.b16 %v908, %v900
          %v1077 = vpack.c.b16 %v909, %v901
          %v1078 = vpack.c.b16 %v910, %v902
          %v1079 = vpack.c.b16 %v911, %v903
          %v1080 = vpack.c.b16 %v912, %v904
          %v1081 = vpack.c.b16 %v913, %v905
          %v1082 = vpack.c.b16 %v914, %v906
          %v1083 = vpack.c.b16 %v915, %v907
          %v1084 = vpack.c.b16 %v924, %v916
          %v1085 = vpack.c.b16 %v925, %v917
          %v1086 = vpack.c.b16 %v926, %v918
          %v1087 = vpack.c.b16 %v927, %v919
          %v1088 = vpack.c.b16 %v928, %v920
          %v1089 = vpack.c.b16 %v929, %v921
          %v1090 = vpack.c.b16 %v930, %v922
          %v1091 = vpack.c.b16 %v931, %v923
          %v1092 = vpack.c.b16 %v940, %v932
          %v1093 = vpack.c.b16 %v941, %v933
          %v1094 = vpack.c.b16 %v942, %v934
          %v1095 = vpack.c.b16 %v943, %v935
          %v1096 = vpack.c.b16 %v944, %v936
          %v1097 = vpack.c.b16 %v945, %v937
          %v1098 = vpack.c.b16 %v946, %v938
          %v1099 = vpack.c.b16 %v947, %v939
          %v1100 = vpack.c.b16 %v956, %v948
          %v1101 = vpack.c.b16 %v957, %v949
          %v1102 = vpack.c.b16 %v958, %v950
          %v1103 = vpack.c.b16 %v959, %v951
          %v1104 = vpack.c.b16 %v960, %v952
          %v1105 = vpack.c.b16 %v961, %v953
          %v1106 = vpack.c.b16 %v962, %v954
          %v1107 = vpack.c.b16 %v963, %v955
          %v1108 = vpack.c.b16 %v972, %v964
          %v1109 = vpack.c.b16 %v973, %v965
          %v1110 = vpack.c.b16 %v974, %v966
          %v1111 = vpack.c.b16 %v975, %v967
          %v1112 = vpack.c.b16 %v976, %v968
          %v1113 = vpack.c.b16 %v977, %v969
          %v1114 = vpack.c.b16 %v978, %v970
          %v1115 = vpack.c.b16 %v979, %v971
          %v1116 = vpack.c.b16 %v988, %v980
          %v1117 = vpack.c.b16 %v989, %v981
          %v1118 = vpack.c.b16 %v990, %v982
          %v1119 = vpack.c.b16 %v991, %v983
          %v1120 = vpack.c.b16 %v992, %v984
          %v1121 = vpack.c.b16 %v993, %v985
          %v1122 = vpack.c.b16 %v994, %v986
          %v1123 = vpack.c.b16 %v995, %v987
          %1252 = vmatprep.subr.bf16.mxu0 %v1053
          %1253 = vmatpush1.bf16.msra.mxu0 %v1052
          %1254 = vmatprep.subr.bf16.mxu0 %v1045
          %1255 = vmatpush1.bf16.msra.mxu0 %v1044
          %1256 = vmatprep.subr.bf16.mxu0 %v1037
          %1257 = vmatpush1.bf16.msra.mxu0 %v1036
          %1258 = vmatprep.subr.bf16.mxu0 %v1029
          %1259 = vmatpush1.bf16.msra.mxu0 %v1028
          %1260 = vmatprep.subr.bf16.mxu0 %v1021
          %1261 = vmatpush1.bf16.msra.mxu0 %v1020
          %1262 = vmatprep.subr.bf16.mxu0 %v1013
          %1263 = vmatpush1.bf16.msra.mxu0 %v1012
          %1264 = vmatprep.subr.bf16.mxu0 %v1005
          %1265 = vmatpush1.bf16.msra.mxu0 %v1004
          %1266 = vmatprep.subr.bf16.mxu0 %v997
          %1267 = vmatpush1.bf16.msra.mxu0 %v996
          %1268 = vmatprep.subr.bf16.mxu0 %v1117
          %1269 = vmatpush2.bf16.msra.mxu0 %v1116
          %1270 = vmatprep.subr.bf16.mxu0 %v1109
          %1271 = vmatpush2.bf16.msra.mxu0 %v1108
          %1272 = vmatprep.subr.bf16.mxu0 %v1101
          %1273 = vmatpush2.bf16.msra.mxu0 %v1100
          %1274 = vmatprep.subr.bf16.mxu0 %v1093
          %1275 = vmatpush2.bf16.msra.mxu0 %v1092
          %1276 = vmatprep.subr.bf16.mxu0 %v1085
          %1277 = vmatpush2.bf16.msra.mxu0 %v1084
          %1278 = vmatprep.subr.bf16.mxu0 %v1077
          %1279 = vmatpush2.bf16.msra.mxu0 %v1076
          %1280 = vmatprep.subr.bf16.mxu0 %v1069
          %1281 = vmatpush2.bf16.msra.mxu0 %v1068
          %1282 = vmatprep.subr.bf16.mxu0 %v1061
          %1283 = vmatpush2.bf16.msra.mxu0 %v1060
          %1284 = vmatprep.mubr.bf16.mxu0 %v483
          %1285 = vmatmul.mubr.bf16.gmra.mxu0 %v482
          %v1286 = vpop.f32.mrf.mxu0
          %v1287 = vadd.f32 0.0, %v1286
          %v1288 = vpop.f32.mrf.mxu0
          %v1289 = vadd.f32 0.0, %v1288
          %v1290 = vpop.f32.mrf.mxu0
          %v1291 = vpop.f32.mrf.mxu0
          %1292 = vdwg.mxu0
          %1293 = vmatprep.subr.bf16.mxu0 %v1055
          %1294 = vmatpush1.bf16.msra.mxu0 %v1054
          %1295 = vmatprep.subr.bf16.mxu0 %v1047
          %1296 = vmatpush1.bf16.msra.mxu0 %v1046
          %1297 = vmatprep.subr.bf16.mxu0 %v1039
          %1298 = vmatpush1.bf16.msra.mxu0 %v1038
          %1299 = vmatprep.subr.bf16.mxu0 %v1031
          %1300 = vmatpush1.bf16.msra.mxu0 %v1030
          %1301 = vmatprep.subr.bf16.mxu0 %v1023
          %1302 = vmatpush1.bf16.msra.mxu0 %v1022
          %1303 = vmatprep.subr.bf16.mxu0 %v1015
          %1304 = vmatpush1.bf16.msra.mxu0 %v1014
          %1305 = vmatprep.subr.bf16.mxu0 %v1007
          %1306 = vmatpush1.bf16.msra.mxu0 %v1006
          %1307 = vmatprep.subr.bf16.mxu0 %v999
          %1308 = vmatpush1.bf16.msra.mxu0 %v998
          %1309 = vmatprep.subr.bf16.mxu0 %v1119
          %1310 = vmatpush2.bf16.msra.mxu0 %v1118
          %1311 = vmatprep.subr.bf16.mxu0 %v1111
          %1312 = vmatpush2.bf16.msra.mxu0 %v1110
          %1313 = vmatprep.subr.bf16.mxu0 %v1103
          %1314 = vmatpush2.bf16.msra.mxu0 %v1102
          %1315 = vmatprep.subr.bf16.mxu0 %v1095
          %1316 = vmatpush2.bf16.msra.mxu0 %v1094
          %1317 = vmatprep.subr.bf16.mxu0 %v1087
          %1318 = vmatpush2.bf16.msra.mxu0 %v1086
          %1319 = vmatprep.subr.bf16.mxu0 %v1079
          %1320 = vmatpush2.bf16.msra.mxu0 %v1078
          %1321 = vmatprep.subr.bf16.mxu0 %v1071
          %1322 = vmatpush2.bf16.msra.mxu0 %v1070
          %1323 = vmatprep.subr.bf16.mxu0 %v1063
          %1324 = vmatpush2.bf16.msra.mxu0 %v1062
          %1325 = vmatprep.mubr.bf16.mxu0 %v483
          %1326 = vmatmul.mubr.bf16.gmra.mxu0 %v482
          %v1327 = vpop.f32.mrf.mxu0
          %v1328 = vadd.f32 0.0, %v1327
          %v1329 = vpop.f32.mrf.mxu0
          %v1330 = vadd.f32 0.0, %v1329
          %v1331 = vpop.f32.mrf.mxu0
          %v1332 = vpop.f32.mrf.mxu0
          %1333 = vdwg.mxu0
          %1334 = vmatprep.subr.bf16.mxu0 %v1057
          %1335 = vmatpush1.bf16.msra.mxu0 %v1056
          %1336 = vmatprep.subr.bf16.mxu0 %v1049
          %1337 = vmatpush1.bf16.msra.mxu0 %v1048
          %1338 = vmatprep.subr.bf16.mxu0 %v1041
          %1339 = vmatpush1.bf16.msra.mxu0 %v1040
          %1340 = vmatprep.subr.bf16.mxu0 %v1033
          %1341 = vmatpush1.bf16.msra.mxu0 %v1032
          %1342 = vmatprep.subr.bf16.mxu0 %v1025
          %1343 = vmatpush1.bf16.msra.mxu0 %v1024
          %1344 = vmatprep.subr.bf16.mxu0 %v1017
          %1345 = vmatpush1.bf16.msra.mxu0 %v1016
          %1346 = vmatprep.subr.bf16.mxu0 %v1009
          %1347 = vmatpush1.bf16.msra.mxu0 %v1008
          %1348 = vmatprep.subr.bf16.mxu0 %v1001
          %1349 = vmatpush1.bf16.msra.mxu0 %v1000
          %1350 = vmatprep.subr.bf16.mxu0 %v1121
          %1351 = vmatpush2.bf16.msra.mxu0 %v1120
          %1352 = vmatprep.subr.bf16.mxu0 %v1113
          %1353 = vmatpush2.bf16.msra.mxu0 %v1112
          %1354 = vmatprep.subr.bf16.mxu0 %v1105
          %1355 = vmatpush2.bf16.msra.mxu0 %v1104
          %1356 = vmatprep.subr.bf16.mxu0 %v1097
          %1357 = vmatpush2.bf16.msra.mxu0 %v1096
          %1358 = vmatprep.subr.bf16.mxu0 %v1089
          %1359 = vmatpush2.bf16.msra.mxu0 %v1088
          %1360 = vmatprep.subr.bf16.mxu0 %v1081
          %1361 = vmatpush2.bf16.msra.mxu0 %v1080
          %1362 = vmatprep.subr.bf16.mxu0 %v1073
          %1363 = vmatpush2.bf16.msra.mxu0 %v1072
          %1364 = vmatprep.subr.bf16.mxu0 %v1065
          %1365 = vmatpush2.bf16.msra.mxu0 %v1064
          %1366 = vmatprep.mubr.bf16.mxu0 %v483
          %1367 = vmatmul.mubr.bf16.gmra.mxu0 %v482
          %v1368 = vpop.f32.mrf.mxu0
          %v1369 = vadd.f32 0.0, %v1368
          %v1370 = vpop.f32.mrf.mxu0
          %v1371 = vadd.f32 0.0, %v1370
          %v1372 = vpop.f32.mrf.mxu0
          %v1373 = vpop.f32.mrf.mxu0
          %1374 = vdwg.mxu0
          %1375 = vmatprep.subr.bf16.mxu0 %v1059
          %1376 = vmatpush1.bf16.msra.mxu0 %v1058
          %1377 = vmatprep.subr.bf16.mxu0 %v1051
          %1378 = vmatpush1.bf16.msra.mxu0 %v1050
          %1379 = vmatprep.subr.bf16.mxu0 %v1043
          %1380 = vmatpush1.bf16.msra.mxu0 %v1042
          %1381 = vmatprep.subr.bf16.mxu0 %v1035
          %1382 = vmatpush1.bf16.msra.mxu0 %v1034
          %1383 = vmatprep.subr.bf16.mxu0 %v1027
          %1384 = vmatpush1.bf16.msra.mxu0 %v1026
          %1385 = vmatprep.subr.bf16.mxu0 %v1019
          %1386 = vmatpush1.bf16.msra.mxu0 %v1018
          %1387 = vmatprep.subr.bf16.mxu0 %v1011
          %1388 = vmatpush1.bf16.msra.mxu0 %v1010
          %1389 = vmatprep.subr.bf16.mxu0 %v1003
          %1390 = vmatpush1.bf16.msra.mxu0 %v1002
          %1391 = vmatprep.subr.bf16.mxu0 %v1123
          %1392 = vmatpush2.bf16.msra.mxu0 %v1122
          %1393 = vmatprep.subr.bf16.mxu0 %v1115
          %1394 = vmatpush2.bf16.msra.mxu0 %v1114
          %1395 = vmatprep.subr.bf16.mxu0 %v1107
          %1396 = vmatpush2.bf16.msra.mxu0 %v1106
          %1397 = vmatprep.subr.bf16.mxu0 %v1099
          %1398 = vmatpush2.bf16.msra.mxu0 %v1098
          %1399 = vmatprep.subr.bf16.mxu0 %v1091
          %1400 = vmatpush2.bf16.msra.mxu0 %v1090
          %1401 = vmatprep.subr.bf16.mxu0 %v1083
          %1402 = vmatpush2.bf16.msra.mxu0 %v1082
          %1403 = vmatprep.subr.bf16.mxu0 %v1075
          %1404 = vmatpush2.bf16.msra.mxu0 %v1074
          %1405 = vmatprep.subr.bf16.mxu0 %v1067
          %1406 = vmatpush2.bf16.msra.mxu0 %v1066
          %1407 = vmatprep.mubr.bf16.mxu0 %v483
          %1408 = vmatmul.mubr.bf16.gmra.mxu0 %v482
          %v1409 = vpop.f32.mrf.mxu0
          %v1410 = vadd.f32 0.0, %v1409
          %v1411 = vpop.f32.mrf.mxu0
          %v1412 = vadd.f32 0.0, %v1411
          %v1413 = vpop.f32.mrf.mxu0
          %v1414 = vpop.f32.mrf.mxu0
          %1415 = vdwg.mxu0
          %v1416 = vpack.c.bf16 %v1287, %v1287
          %v1417 = vpack.c.bf16 %v1289, %v1289
          %v1418 = vpack.c.bf16 %v1328, %v1328
          %v1419 = vpack.c.bf16 %v1330, %v1330
          %v1420 = vpack.c.bf16 %v1369, %v1369
          %v1421 = vpack.c.bf16 %v1371, %v1371
          %v1422 = vpack.c.bf16 %v1410, %v1410
          %v1423 = vpack.c.bf16 %v1412, %v1412
          %v1432 = vcombine.low %v1416, %v1417
          %v1433 = vcombine.low %v1418, %v1419
          %v1435 = vunpack.c.l.s4 1983009808
          %v1436 = vunpack.c.0.s8 %v1435
          %v1437 = vlaneseq
          %v1438 = vshrl.u32 %v1437, 7
          %v1439 = vsub.s32 %v1436, %v1438
          %v1440 = vrot.slane %v1432, %v1439
          %v1442 = vunpack.c.l.s4 1983009808
          %v1443 = vunpack.c.0.s8 %v1442
          %v1444 = vlaneseq
          %v1445 = vshrl.u32 %v1444, 7
          %v1446 = vsub.s32 %v1443, %v1445
          %v1447 = vrot.slane %v1433, %v1446
          %v1448 = vcombine.low %v1440, %v1447
          %v1449 = vcombine.low %v1420, %v1421
          %v1450 = vcombine.low %v1422, %v1423
          %v1452 = vunpack.c.l.s4 1983009808
          %v1453 = vunpack.c.0.s8 %v1452
          %v1454 = vlaneseq
          %v1455 = vshrl.u32 %v1454, 7
          %v1456 = vsub.s32 %v1453, %v1455
          %v1457 = vrot.slane %v1449, %v1456
          %v1459 = vunpack.c.l.s4 1983009808
          %v1460 = vunpack.c.0.s8 %v1459
          %v1461 = vlaneseq
          %v1462 = vshrl.u32 %v1461, 7
          %v1463 = vsub.s32 %v1460, %v1462
          %v1464 = vrot.slane %v1450, %v1463
          %v1465 = vcombine.low %v1457, %v1464
          %1466 = vrot.lane.b32.xlu0 %v1448, 64
          %v1467 = vpop.permute.xlu0 %1466
          %1468 = vrot.lane.b32.xlu0 %v1465, 64
          %v1469 = vpop.permute.xlu0 %1468
          %v1470 = vrot.slane %v1467, 6
          %v1471 = vrot.slane %v1469, 6
          %vm1472 = vcmask 523264
          %v1473 = vsel %vm1472, %v1470, %v1467
          %vm1474 = vcmask 1041408
          %v1475 = vsel %vm1474, %v1470, %v1471
          %v1476 = vsel %vm1472, %v1475, %v1469
          %vm1480 = vcmask 1043458
          %vm1481 = vmor %vm1480, %vm476
          %vm1482 = vcmask 1045508
          %vm1483 = vmor %vm1482, %vm1481
          %vm1484 = vcmask 1047558
          %vm1485 = vmor %vm1484, %vm1483
          %1486 = vst.msk [vmem:[#allocation2] sm:$0xff] %vm1485, %v1473
          %1487 = vst [vmem:[#allocation2 + $0x8] sm:$0xff] %v1476
          %1488 = vst.msk [vmem:[#allocation2 + $0x10] sm:$0x3] %vm474, %v1471
          %v1489 = vld [vmem:[#allocation2] sm:$0xff]
          %v1490 = vld [vmem:[#allocation2 + $0x8] sm:$0xff]
          %v1491 = vld [vmem:[#allocation2 + $0x10] sm:$0x3]
          %v1492 = vld [vmem:[%s4] sm:$0x55]
          %v1493 = vld [vmem:[%s4 + $0x8] sm:$0x55]
          %v1496 = vcombine.high %v1492, %v1492
          %v1498 = vunpack.c.l.s4 1983009808
          %v1499 = vunpack.c.0.s8 %v1498
          %v1500 = vlaneseq
          %v1501 = vshrl.u32 %v1500, 7
          %v1502 = vsub.s32 %v1499, %v1501
          %v1503 = vrot.slane %v1492, %v1502
          %v1505 = vunpack.c.l.s4 1983009808
          %v1506 = vunpack.c.0.s8 %v1505
          %v1507 = vlaneseq
          %v1508 = vshrl.u32 %v1507, 7
          %v1509 = vsub.s32 %v1506, %v1508
          %v1510 = vrot.slane %v1496, %v1509
          %v1511 = vcombine.high %v1503, %v1503
          %v1512 = vcombine.high %v1510, %v1510
          %v1513 = vcombine.high %v1493, %v1493
          %v1515 = vunpack.c.l.s4 1983009808
          %v1516 = vunpack.c.0.s8 %v1515
          %v1517 = vlaneseq
          %v1518 = vshrl.u32 %v1517, 7
          %v1519 = vsub.s32 %v1516, %v1518
          %v1520 = vrot.slane %v1493, %v1519
          %v1522 = vunpack.c.l.s4 1983009808
          %v1523 = vunpack.c.0.s8 %v1522
          %v1524 = vlaneseq
          %v1525 = vshrl.u32 %v1524, 7
          %v1526 = vsub.s32 %v1523, %v1525
          %v1527 = vrot.slane %v1513, %v1526
          %v1528 = vcombine.high %v1520, %v1520
          %v1529 = vcombine.high %v1527, %v1527
          %v1531 = vpack.i.b16 %v1503, %v1503
          %v1533 = vlaneseq
          %v1534 = vshrl.u32 %v1533, 7
          %v1535 = vsub.s32 0, %v1534
          %v1536 = vrot.slane %v1531, %v1535
          %v1538 = vpack.i.b16 %v1511, %v1511
          %v1540 = vlaneseq
          %v1541 = vshrl.u32 %v1540, 7
          %v1542 = vsub.s32 0, %v1541
          %v1543 = vrot.slane %v1538, %v1542
          %v1545 = vpack.i.b16 %v1510, %v1510
          %v1547 = vlaneseq
          %v1548 = vshrl.u32 %v1547, 7
          %v1549 = vsub.s32 0, %v1548
          %v1550 = vrot.slane %v1545, %v1549
          %v1552 = vpack.i.b16 %v1512, %v1512
          %v1554 = vlaneseq
          %v1555 = vshrl.u32 %v1554, 7
          %v1556 = vsub.s32 0, %v1555
          %v1557 = vrot.slane %v1552, %v1556
          %v1559 = vpack.i.b16 %v1520, %v1520
          %v1561 = vlaneseq
          %v1562 = vshrl.u32 %v1561, 7
          %v1563 = vsub.s32 0, %v1562
          %v1564 = vrot.slane %v1559, %v1563
          %v1566 = vpack.i.b16 %v1528, %v1528
          %v1568 = vlaneseq
          %v1569 = vshrl.u32 %v1568, 7
          %v1570 = vsub.s32 0, %v1569
          %v1571 = vrot.slane %v1566, %v1570
          %v1573 = vpack.i.b16 %v1527, %v1527
          %v1575 = vlaneseq
          %v1576 = vshrl.u32 %v1575, 7
          %v1577 = vsub.s32 0, %v1576
          %v1578 = vrot.slane %v1573, %v1577
          %v1580 = vpack.i.b16 %v1529, %v1529
          %v1582 = vlaneseq
          %v1583 = vshrl.u32 %v1582, 7
          %v1584 = vsub.s32 0, %v1583
          %v1585 = vrot.slane %v1580, %v1584
          %v1594 = vcombine.low %v1536, %v1543
          %v1595 = vcombine.low %v1550, %v1557
          %v1597 = vunpack.c.l.s4 1983009808
          %v1598 = vunpack.c.0.s8 %v1597
          %v1599 = vlaneseq
          %v1600 = vshrl.u32 %v1599, 7
          %v1601 = vsub.s32 %v1598, %v1600
          %v1602 = vrot.slane %v1594, %v1601
          %v1604 = vunpack.c.l.s4 1983009808
          %v1605 = vunpack.c.0.s8 %v1604
          %v1606 = vlaneseq
          %v1607 = vshrl.u32 %v1606, 7
          %v1608 = vsub.s32 %v1605, %v1607
          %v1609 = vrot.slane %v1595, %v1608
          %v1610 = vcombine.low %v1602, %v1609
          %v1611 = vcombine.low %v1564, %v1571
          %v1612 = vcombine.low %v1578, %v1585
          %v1614 = vunpack.c.l.s4 1983009808
          %v1615 = vunpack.c.0.s8 %v1614
          %v1616 = vlaneseq
          %v1617 = vshrl.u32 %v1616, 7
          %v1618 = vsub.s32 %v1615, %v1617
          %v1619 = vrot.slane %v1611, %v1618
          %v1621 = vunpack.c.l.s4 1983009808
          %v1622 = vunpack.c.0.s8 %v1621
          %v1623 = vlaneseq
          %v1624 = vshrl.u32 %v1623, 7
          %v1625 = vsub.s32 %v1622, %v1624
          %v1626 = vrot.slane %v1612, %v1625
          %v1627 = vcombine.low %v1619, %v1626
          %1628 = vrot.lane.b32.xlu0 %v1610, 31
          %v1629 = vpop.permute.xlu0 %1628
          %1630 = vrot.lane.b32.xlu0 %v1627, 31
          %v1631 = vpop.permute.xlu0 %1630
          %v1632 = vrot.slane %v1629, 6
          %v1633 = vrot.slane %v1631, 6
          %vm1634 = vcmask 252928
          %v1635 = vsel %vm1634, %v1632, %v1629
          %v1636 = vsel %vm1474, %v1632, %v1633
          %v1637 = vsel %vm1634, %v1636, %v1631
          %v1641 = vmul.bf16 %v1489, %v1635
          %v1642 = vmul.bf16 %v1490, %v1637
          %v1643 = vmul.bf16 %v1491, %v1633
          %v1647 = vcombine.high %v1641, %v1641
          %v1649 = vunpack.c.l.s4 1983009808
          %v1650 = vunpack.c.0.s8 %v1649
          %v1651 = vlaneseq
          %v1652 = vshrl.u32 %v1651, 7
          %v1653 = vsub.s32 %v1650, %v1652
          %v1654 = vrot.slane %v1641, %v1653
          %v1656 = vunpack.c.l.s4 1983009808
          %v1657 = vunpack.c.0.s8 %v1656
          %v1658 = vlaneseq
          %v1659 = vshrl.u32 %v1658, 7
          %v1660 = vsub.s32 %v1657, %v1659
          %v1661 = vrot.slane %v1647, %v1660
          %v1662 = vcombine.high %v1642, %v1642
          %v1664 = vunpack.c.l.s4 1983009808
          %v1665 = vunpack.c.0.s8 %v1664
          %v1666 = vlaneseq
          %v1667 = vshrl.u32 %v1666, 7
          %v1668 = vsub.s32 %v1665, %v1667
          %v1669 = vrot.slane %v1642, %v1668
          %v1671 = vunpack.c.l.s4 1983009808
          %v1672 = vunpack.c.0.s8 %v1671
          %v1673 = vlaneseq
          %v1674 = vshrl.u32 %v1673, 7
          %v1675 = vsub.s32 %v1672, %v1674
          %v1676 = vrot.slane %v1662, %v1675
          %v1678 = vunpack.c.l.s4 1983009808
          %v1679 = vunpack.c.0.s8 %v1678
          %v1680 = vlaneseq
          %v1681 = vshrl.u32 %v1680, 7
          %v1682 = vsub.s32 %v1679, %v1681
          %v1683 = vrot.slane %v1643, %v1682
          %1684 = vrot.lane.b32.xlu0 %v1654, 97
          %v1685 = vpop.permute.xlu0 %1684
          %1686 = vrot.lane.b32.xlu0 %v1661, 97
          %v1687 = vpop.permute.xlu0 %1686
          %1688 = vrot.lane.b32.xlu0 %v1669, 97
          %v1689 = vpop.permute.xlu0 %1688
          %1690 = vrot.lane.b32.xlu0 %v1676, 97
          %v1691 = vpop.permute.xlu0 %1690
          %1692 = vrot.lane.b32.xlu0 %v1683, 97
          %v1693 = vpop.permute.xlu0 %1692
          %v1694 = vrot.slane %v1685, 4
          %v1695 = vrot.slane %v1687, 4
          %v1696 = vrot.slane %v1689, 4
          %v1697 = vrot.slane %v1691, 4
          %v1698 = vrot.slane %v1693, 4
          %vm1699 = vcmask 1043456
          %v1700 = vsel %vm1699, %v1694, %v1695
          %vm1701 = vcmask 793600
          %v1702 = vsel %vm1701, %v1685, %v1700
          %v1703 = vsel %vm1699, %v1695, %v1696
          %v1704 = vsel %vm1701, %v1687, %v1703
          %v1705 = vsel %vm1699, %v1696, %v1697
          %v1706 = vsel %vm1701, %v1689, %v1705
          %v1707 = vsel %vm1699, %v1697, %v1698
          %v1708 = vsel %vm1701, %v1691, %v1707
          %1713 = vst [vmem:[#allocation3] sm:$0x33] %v1702
          %1714 = vst [vmem:[#allocation3 + $0x8] sm:$0x33] %v1704
          %1715 = vst [vmem:[#allocation3 + $0x10] sm:$0x33] %v1706
          %1716 = vst [vmem:[#allocation3 + $0x18] sm:$0x33] %v1708
          %v1717 = vld [vmem:[#allocation2] sm:$0xff]
          %v1718 = vld [vmem:[#allocation2 + $0x8] sm:$0xff]
          %v1719 = vld [vmem:[#allocation2 + $0x10] sm:$0x3]
          %v1723 = vcombine.low %v1717, %v1717
          %v1725 = vunpack.c.l.s4 1983009808
          %v1726 = vunpack.c.0.s8 %v1725
          %v1727 = vlaneseq
          %v1728 = vshrl.u32 %v1727, 7
          %v1729 = vsub.s32 %v1726, %v1728
          %v1730 = vrot.slane %v1723, %v1729
          %v1732 = vunpack.c.l.s4 1983009808
          %v1733 = vunpack.c.0.s8 %v1732
          %v1734 = vlaneseq
          %v1735 = vshrl.u32 %v1734, 7
          %v1736 = vsub.s32 %v1733, %v1735
          %v1737 = vrot.slane %v1717, %v1736
          %v1738 = vcombine.low %v1718, %v1718
          %v1740 = vunpack.c.l.s4 1983009808
          %v1741 = vunpack.c.0.s8 %v1740
          %v1742 = vlaneseq
          %v1743 = vshrl.u32 %v1742, 7
          %v1744 = vsub.s32 %v1741, %v1743
          %v1745 = vrot.slane %v1738, %v1744
          %v1747 = vunpack.c.l.s4 1983009808
          %v1748 = vunpack.c.0.s8 %v1747
          %v1749 = vlaneseq
          %v1750 = vshrl.u32 %v1749, 7
          %v1751 = vsub.s32 %v1748, %v1750
          %v1752 = vrot.slane %v1718, %v1751
          %v1753 = vcombine.low %v1719, %v1719
          %v1755 = vunpack.c.l.s4 1983009808
          %v1756 = vunpack.c.0.s8 %v1755
          %v1757 = vlaneseq
          %v1758 = vshrl.u32 %v1757, 7
          %v1759 = vsub.s32 %v1756, %v1758
          %v1760 = vrot.slane %v1753, %v1759
          %1761 = vrot.lane.b32.xlu0 %v1730, 96
          %v1762 = vpop.permute.xlu0 %1761
          %1763 = vrot.lane.b32.xlu0 %v1737, 96
          %v1764 = vpop.permute.xlu0 %1763
          %1765 = vrot.lane.b32.xlu0 %v1745, 96
          %v1766 = vpop.permute.xlu0 %1765
          %1767 = vrot.lane.b32.xlu0 %v1752, 96
          %v1768 = vpop.permute.xlu0 %1767
          %1769 = vrot.lane.b32.xlu0 %v1760, 96
          %v1770 = vpop.permute.xlu0 %1769
          %v1771 = vrot.slane %v1762, 4
          %v1772 = vrot.slane %v1764, 4
          %v1773 = vrot.slane %v1766, 4
          %v1774 = vrot.slane %v1768, 4
          %v1775 = vrot.slane %v1770, 4
          %v1776 = vsel %vm1699, %v1771, %v1772
          %vm1777 = vcmask 785408
          %v1778 = vsel %vm1777, %v1762, %v1776
          %v1779 = vsel %vm1699, %v1772, %v1773
          %v1780 = vsel %vm1777, %v1764, %v1779
          %v1781 = vsel %vm1699, %v1773, %v1774
          %v1782 = vsel %vm1777, %v1766, %v1781
          %v1783 = vsel %vm1699, %v1774, %v1775
          %v1784 = vsel %vm1777, %v1768, %v1783
          %1789 = vst [vmem:[#allocation3] sm:$0xcc] %v1778
          %1790 = vst [vmem:[#allocation3 + $0x8] sm:$0xcc] %v1780
          %1791 = vst [vmem:[#allocation3 + $0x10] sm:$0xcc] %v1782
          %1792 = vst [vmem:[#allocation3 + $0x18] sm:$0xcc] %v1784
          %v1793 = vld [vmem:[#allocation2] sm:$0xff]
          %v1794 = vld [vmem:[#allocation2 + $0x8] sm:$0xff]
          %v1795 = vld [vmem:[#allocation2 + $0x10] sm:$0x3]
          %v1796 = vld [vmem:[%s4] sm:$0xaa]
          %v1797 = vld [vmem:[%s4 + $0x8] sm:$0xaa]
          %v1800 = vcombine.high %v1796, %v1796
          %v1802 = vunpack.c.l.s4 1983009808
          %v1803 = vunpack.c.0.s8 %v1802
          %v1804 = vlaneseq
          %v1805 = vshrl.u32 %v1804, 7
          %v1806 = vsub.s32 %v1803, %v1805
          %v1807 = vrot.slane %v1796, %v1806
          %v1809 = vunpack.c.l.s4 1983009808
          %v1810 = vunpack.c.0.s8 %v1809
          %v1811 = vlaneseq
          %v1812 = vshrl.u32 %v1811, 7
          %v1813 = vsub.s32 %v1810, %v1812
          %v1814 = vrot.slane %v1800, %v1813
          %v1815 = vcombine.high %v1807, %v1807
          %v1816 = vcombine.high %v1814, %v1814
          %v1817 = vcombine.high %v1797, %v1797
          %v1819 = vunpack.c.l.s4 1983009808
          %v1820 = vunpack.c.0.s8 %v1819
          %v1821 = vlaneseq
          %v1822 = vshrl.u32 %v1821, 7
          %v1823 = vsub.s32 %v1820, %v1822
          %v1824 = vrot.slane %v1797, %v1823
          %v1826 = vunpack.c.l.s4 1983009808
          %v1827 = vunpack.c.0.s8 %v1826
          %v1828 = vlaneseq
          %v1829 = vshrl.u32 %v1828, 7
          %v1830 = vsub.s32 %v1827, %v1829
          %v1831 = vrot.slane %v1817, %v1830
          %v1832 = vcombine.high %v1824, %v1824
          %v1833 = vcombine.high %v1831, %v1831
          %v1835 = vpack.i.b16 %v1807, %v1807
          %v1837 = vlaneseq
          %v1838 = vshrl.u32 %v1837, 7
          %v1839 = vsub.s32 1, %v1838
          %v1840 = vrot.slane %v1835, %v1839
          %v1842 = vpack.i.b16 %v1815, %v1815
          %v1844 = vlaneseq
          %v1845 = vshrl.u32 %v1844, 7
          %v1846 = vsub.s32 1, %v1845
          %v1847 = vrot.slane %v1842, %v1846
          %v1849 = vpack.i.b16 %v1814, %v1814
          %v1851 = vlaneseq
          %v1852 = vshrl.u32 %v1851, 7
          %v1853 = vsub.s32 1, %v1852
          %v1854 = vrot.slane %v1849, %v1853
          %v1856 = vpack.i.b16 %v1816, %v1816
          %v1858 = vlaneseq
          %v1859 = vshrl.u32 %v1858, 7
          %v1860 = vsub.s32 1, %v1859
          %v1861 = vrot.slane %v1856, %v1860
          %v1863 = vpack.i.b16 %v1824, %v1824
          %v1865 = vlaneseq
          %v1866 = vshrl.u32 %v1865, 7
          %v1867 = vsub.s32 1, %v1866
          %v1868 = vrot.slane %v1863, %v1867
          %v1870 = vpack.i.b16 %v1832, %v1832
          %v1872 = vlaneseq
          %v1873 = vshrl.u32 %v1872, 7
          %v1874 = vsub.s32 1, %v1873
          %v1875 = vrot.slane %v1870, %v1874
          %v1877 = vpack.i.b16 %v1831, %v1831
          %v1879 = vlaneseq
          %v1880 = vshrl.u32 %v1879, 7
          %v1881 = vsub.s32 1, %v1880
          %v1882 = vrot.slane %v1877, %v1881
          %v1884 = vpack.i.b16 %v1833, %v1833
          %v1886 = vlaneseq
          %v1887 = vshrl.u32 %v1886, 7
          %v1888 = vsub.s32 1, %v1887
          %v1889 = vrot.slane %v1884, %v1888
          %v1898 = vcombine.low %v1840, %v1847
          %v1899 = vcombine.low %v1854, %v1861
          %v1901 = vunpack.c.l.s4 1983009808
          %v1902 = vunpack.c.0.s8 %v1901
          %v1903 = vlaneseq
          %v1904 = vshrl.u32 %v1903, 7
          %v1905 = vsub.s32 %v1902, %v1904
          %v1906 = vrot.slane %v1898, %v1905
          %v1908 = vunpack.c.l.s4 1983009808
          %v1909 = vunpack.c.0.s8 %v1908
          %v1910 = vlaneseq
          %v1911 = vshrl.u32 %v1910, 7
          %v1912 = vsub.s32 %v1909, %v1911
          %v1913 = vrot.slane %v1899, %v1912
          %v1914 = vcombine.low %v1906, %v1913
          %v1915 = vcombine.low %v1868, %v1875
          %v1916 = vcombine.low %v1882, %v1889
          %v1918 = vunpack.c.l.s4 1983009808
          %v1919 = vunpack.c.0.s8 %v1918
          %v1920 = vlaneseq
          %v1921 = vshrl.u32 %v1920, 7
          %v1922 = vsub.s32 %v1919, %v1921
          %v1923 = vrot.slane %v1915, %v1922
          %v1925 = vunpack.c.l.s4 1983009808
          %v1926 = vunpack.c.0.s8 %v1925
          %v1927 = vlaneseq
          %v1928 = vshrl.u32 %v1927, 7
          %v1929 = vsub.s32 %v1926, %v1928
          %v1930 = vrot.slane %v1916, %v1929
          %v1931 = vcombine.low %v1923, %v1930
          %1932 = vrot.lane.b32.xlu0 %v1914, 33
          %v1933 = vpop.permute.xlu0 %1932
          %1934 = vrot.lane.b32.xlu0 %v1931, 33
          %v1935 = vpop.permute.xlu0 %1934
          %v1936 = vrot.slane %v1933, 6
          %v1937 = vrot.slane %v1935, 6
          %vm1938 = vcmask 269312
          %v1939 = vsel %vm1938, %v1936, %v1933
          %v1940 = vsel %vm1474, %v1936, %v1937
          %v1941 = vsel %vm1938, %v1940, %v1935
          %v1945 = vmul.bf16 %v1793, %v1939
          %v1946 = vmul.bf16 %v1794, %v1941
          %v1947 = vmul.bf16 %v1795, %v1937
          %v1951 = vcombine.high %v1945, %v1945
          %v1953 = vunpack.c.l.s4 1983009808
          %v1954 = vunpack.c.0.s8 %v1953
          %v1955 = vlaneseq
          %v1956 = vshrl.u32 %v1955, 7
          %v1957 = vsub.s32 %v1954, %v1956
          %v1958 = vrot.slane %v1945, %v1957
          %v1960 = vunpack.c.l.s4 1983009808
          %v1961 = vunpack.c.0.s8 %v1960
          %v1962 = vlaneseq
          %v1963 = vshrl.u32 %v1962, 7
          %v1964 = vsub.s32 %v1961, %v1963
          %v1965 = vrot.slane %v1951, %v1964
          %v1966 = vcombine.high %v1946, %v1946
          %v1968 = vunpack.c.l.s4 1983009808
          %v1969 = vunpack.c.0.s8 %v1968
          %v1970 = vlaneseq
          %v1971 = vshrl.u32 %v1970, 7
          %v1972 = vsub.s32 %v1969, %v1971
          %v1973 = vrot.slane %v1946, %v1972
          %v1975 = vunpack.c.l.s4 1983009808
          %v1976 = vunpack.c.0.s8 %v1975
          %v1977 = vlaneseq
          %v1978 = vshrl.u32 %v1977, 7
          %v1979 = vsub.s32 %v1976, %v1978
          %v1980 = vrot.slane %v1966, %v1979
          %v1982 = vunpack.c.l.s4 1983009808
          %v1983 = vunpack.c.0.s8 %v1982
          %v1984 = vlaneseq
          %v1985 = vshrl.u32 %v1984, 7
          %v1986 = vsub.s32 %v1983, %v1985
          %v1987 = vrot.slane %v1947, %v1986
          %1988 = vrot.lane.b32.xlu0 %v1958, 95
          %v1989 = vpop.permute.xlu0 %1988
          %1990 = vrot.lane.b32.xlu0 %v1965, 95
          %v1991 = vpop.permute.xlu0 %1990
          %1992 = vrot.lane.b32.xlu0 %v1973, 95
          %v1993 = vpop.permute.xlu0 %1992
          %1994 = vrot.lane.b32.xlu0 %v1980, 95
          %v1995 = vpop.permute.xlu0 %1994
          %1996 = vrot.lane.b32.xlu0 %v1987, 95
          %v1997 = vpop.permute.xlu0 %1996
          %v1998 = vrot.slane %v1989, 4
          %v1999 = vrot.slane %v1991, 4
          %v2000 = vrot.slane %v1993, 4
          %v2001 = vrot.slane %v1995, 4
          %v2002 = vrot.slane %v1997, 4
          %v2003 = vsel %vm1699, %v1998, %v1999
          %vm2004 = vcmask 777216
          %v2005 = vsel %vm2004, %v1989, %v2003
          %v2006 = vsel %vm1699, %v1999, %v2000
          %v2007 = vsel %vm2004, %v1991, %v2006
          %v2008 = vsel %vm1699, %v2000, %v2001
          %v2009 = vsel %vm2004, %v1993, %v2008
          %v2010 = vsel %vm1699, %v2001, %v2002
          %v2011 = vsel %vm2004, %v1995, %v2010
          %2016 = vst [vmem:[#allocation3 + $0x20] sm:$0x33] %v2005
          %2017 = vst [vmem:[#allocation3 + $0x28] sm:$0x33] %v2007
          %2018 = vst [vmem:[#allocation3 + $0x30] sm:$0x33] %v2009
          %2019 = vst [vmem:[#allocation3 + $0x38] sm:$0x33] %v2011
          %v2020 = vld [vmem:[#allocation2] sm:$0xff]
          %v2021 = vld [vmem:[#allocation2 + $0x8] sm:$0xff]
          %v2022 = vld [vmem:[#allocation2 + $0x10] sm:$0x3]
          %v2023 = vld [vmem:[%s4] sm:$0x55]
          %v2024 = vld [vmem:[%s4 + $0x8] sm:$0x55]
          %v2027 = vcombine.high %v2023, %v2023
          %v2029 = vunpack.c.l.s4 1983009808
          %v2030 = vunpack.c.0.s8 %v2029
          %v2031 = vlaneseq
          %v2032 = vshrl.u32 %v2031, 7
          %v2033 = vsub.s32 %v2030, %v2032
          %v2034 = vrot.slane %v2023, %v2033
          %v2036 = vunpack.c.l.s4 1983009808
          %v2037 = vunpack.c.0.s8 %v2036
          %v2038 = vlaneseq
          %v2039 = vshrl.u32 %v2038, 7
          %v2040 = vsub.s32 %v2037, %v2039
          %v2041 = vrot.slane %v2027, %v2040
          %v2042 = vcombine.high %v2034, %v2034
          %v2043 = vcombine.high %v2041, %v2041
          %v2044 = vcombine.high %v2024, %v2024
          %v2046 = vunpack.c.l.s4 1983009808
          %v2047 = vunpack.c.0.s8 %v2046
          %v2048 = vlaneseq
          %v2049 = vshrl.u32 %v2048, 7
          %v2050 = vsub.s32 %v2047, %v2049
          %v2051 = vrot.slane %v2024, %v2050
          %v2053 = vunpack.c.l.s4 1983009808
          %v2054 = vunpack.c.0.s8 %v2053
          %v2055 = vlaneseq
          %v2056 = vshrl.u32 %v2055, 7
          %v2057 = vsub.s32 %v2054, %v2056
          %v2058 = vrot.slane %v2044, %v2057
          %v2059 = vcombine.high %v2051, %v2051
          %v2060 = vcombine.high %v2058, %v2058
          %v2062 = vpack.i.b16 %v2034, %v2034
          %v2064 = vlaneseq
          %v2065 = vshrl.u32 %v2064, 7
          %v2066 = vsub.s32 0, %v2065
          %v2067 = vrot.slane %v2062, %v2066
          %v2069 = vpack.i.b16 %v2042, %v2042
          %v2071 = vlaneseq
          %v2072 = vshrl.u32 %v2071, 7
          %v2073 = vsub.s32 0, %v2072
          %v2074 = vrot.slane %v2069, %v2073
          %v2076 = vpack.i.b16 %v2041, %v2041
          %v2078 = vlaneseq
          %v2079 = vshrl.u32 %v2078, 7
          %v2080 = vsub.s32 0, %v2079
          %v2081 = vrot.slane %v2076, %v2080
          %v2083 = vpack.i.b16 %v2043, %v2043
          %v2085 = vlaneseq
          %v2086 = vshrl.u32 %v2085, 7
          %v2087 = vsub.s32 0, %v2086
          %v2088 = vrot.slane %v2083, %v2087
          %v2090 = vpack.i.b16 %v2051, %v2051
          %v2092 = vlaneseq
          %v2093 = vshrl.u32 %v2092, 7
          %v2094 = vsub.s32 0, %v2093
          %v2095 = vrot.slane %v2090, %v2094
          %v2097 = vpack.i.b16 %v2059, %v2059
          %v2099 = vlaneseq
          %v2100 = vshrl.u32 %v2099, 7
          %v2101 = vsub.s32 0, %v2100
          %v2102 = vrot.slane %v2097, %v2101
          %v2104 = vpack.i.b16 %v2058, %v2058
          %v2106 = vlaneseq
          %v2107 = vshrl.u32 %v2106, 7
          %v2108 = vsub.s32 0, %v2107
          %v2109 = vrot.slane %v2104, %v2108
          %v2111 = vpack.i.b16 %v2060, %v2060
          %v2113 = vlaneseq
          %v2114 = vshrl.u32 %v2113, 7
          %v2115 = vsub.s32 0, %v2114
          %v2116 = vrot.slane %v2111, %v2115
          %v2125 = vcombine.low %v2067, %v2074
          %v2126 = vcombine.low %v2081, %v2088
          %v2128 = vunpack.c.l.s4 1983009808
          %v2129 = vunpack.c.0.s8 %v2128
          %v2130 = vlaneseq
          %v2131 = vshrl.u32 %v2130, 7
          %v2132 = vsub.s32 %v2129, %v2131
          %v2133 = vrot.slane %v2125, %v2132
          %v2135 = vunpack.c.l.s4 1983009808
          %v2136 = vunpack.c.0.s8 %v2135
          %v2137 = vlaneseq
          %v2138 = vshrl.u32 %v2137, 7
          %v2139 = vsub.s32 %v2136, %v2138
          %v2140 = vrot.slane %v2126, %v2139
          %v2141 = vcombine.low %v2133, %v2140
          %v2142 = vcombine.low %v2095, %v2102
          %v2143 = vcombine.low %v2109, %v2116
          %v2145 = vunpack.c.l.s4 1983009808
          %v2146 = vunpack.c.0.s8 %v2145
          %v2147 = vlaneseq
          %v2148 = vshrl.u32 %v2147, 7
          %v2149 = vsub.s32 %v2146, %v2148
          %v2150 = vrot.slane %v2142, %v2149
          %v2152 = vunpack.c.l.s4 1983009808
          %v2153 = vunpack.c.0.s8 %v2152
          %v2154 = vlaneseq
          %v2155 = vshrl.u32 %v2154, 7
          %v2156 = vsub.s32 %v2153, %v2155
          %v2157 = vrot.slane %v2143, %v2156
          %v2158 = vcombine.low %v2150, %v2157
          %2159 = vrot.lane.b32.xlu0 %v2141, 63
          %v2160 = vpop.permute.xlu0 %2159
          %2161 = vrot.lane.b32.xlu0 %v2158, 63
          %v2162 = vpop.permute.xlu0 %2161
          %v2163 = vrot.slane %v2160, 6
          %v2164 = vrot.slane %v2162, 6
          %vm2165 = vcmask 515072
          %v2166 = vsel %vm2165, %v2163, %v2160
          %v2167 = vsel %vm1474, %v2163, %v2164
          %v2168 = vsel %vm2165, %v2167, %v2162
          %v2172 = vmul.bf16 %v2020, %v2166
          %v2173 = vmul.bf16 %v2021, %v2168
          %v2174 = vmul.bf16 %v2022, %v2164
          %v2178 = vcombine.low %v2172, %v2172
          %v2180 = vunpack.c.l.s4 1983009808
          %v2181 = vunpack.c.0.s8 %v2180
          %v2182 = vlaneseq
          %v2183 = vshrl.u32 %v2182, 7
          %v2184 = vsub.s32 %v2181, %v2183
          %v2185 = vrot.slane %v2178, %v2184
          %v2187 = vunpack.c.l.s4 1983009808
          %v2188 = vunpack.c.0.s8 %v2187
          %v2189 = vlaneseq
          %v2190 = vshrl.u32 %v2189, 7
          %v2191 = vsub.s32 %v2188, %v2190
          %v2192 = vrot.slane %v2172, %v2191
          %v2193 = vcombine.low %v2173, %v2173
          %v2195 = vunpack.c.l.s4 1983009808
          %v2196 = vunpack.c.0.s8 %v2195
          %v2197 = vlaneseq
          %v2198 = vshrl.u32 %v2197, 7
          %v2199 = vsub.s32 %v2196, %v2198
          %v2200 = vrot.slane %v2193, %v2199
          %v2202 = vunpack.c.l.s4 1983009808
          %v2203 = vunpack.c.0.s8 %v2202
          %v2204 = vlaneseq
          %v2205 = vshrl.u32 %v2204, 7
          %v2206 = vsub.s32 %v2203, %v2205
          %v2207 = vrot.slane %v2173, %v2206
          %v2208 = vcombine.low %v2174, %v2174
          %v2210 = vunpack.c.l.s4 1983009808
          %v2211 = vunpack.c.0.s8 %v2210
          %v2212 = vlaneseq
          %v2213 = vshrl.u32 %v2212, 7
          %v2214 = vsub.s32 %v2211, %v2213
          %v2215 = vrot.slane %v2208, %v2214
          %2216 = vrot.lane.b32.xlu0 %v2185, 65
          %v2217 = vpop.permute.xlu0 %2216
          %2218 = vrot.lane.b32.xlu0 %v2192, 65
          %v2219 = vpop.permute.xlu0 %2218
          %2220 = vrot.lane.b32.xlu0 %v2200, 65
          %v2221 = vpop.permute.xlu0 %2220
          %2222 = vrot.lane.b32.xlu0 %v2207, 65
          %v2223 = vpop.permute.xlu0 %2222
          %2224 = vrot.lane.b32.xlu0 %v2215, 65
          %v2225 = vpop.permute.xlu0 %2224
          %v2226 = vrot.slane %v2217, 4
          %v2227 = vrot.slane %v2219, 4
          %v2228 = vrot.slane %v2221, 4
          %v2229 = vrot.slane %v2223, 4
          %v2230 = vrot.slane %v2225, 4
          %v2231 = vsel %vm1699, %v2226, %v2227
          %vm2232 = vcmask 531456
          %v2233 = vsel %vm2232, %v2217, %v2231
          %v2234 = vsel %vm1699, %v2227, %v2228
          %v2235 = vsel %vm2232, %v2219, %v2234
          %v2236 = vsel %vm1699, %v2228, %v2229
          %v2237 = vsel %vm2232, %v2221, %v2236
          %v2238 = vsel %vm1699, %v2229, %v2230
          %v2239 = vsel %vm2232, %v2223, %v2238
          %2244 = vst [vmem:[#allocation3 + $0x20] sm:$0xcc] %v2233
          %2245 = vst [vmem:[#allocation3 + $0x28] sm:$0xcc] %v2235
          %2246 = vst [vmem:[#allocation3 + $0x30] sm:$0xcc] %v2237
          %2247 = vst [vmem:[#allocation3 + $0x38] sm:$0xcc] %v2239
          %v2248 = vld [vmem:[#allocation2] sm:$0xff]
          %v2249 = vld [vmem:[#allocation2 + $0x8] sm:$0xff]
          %v2250 = vld [vmem:[#allocation2 + $0x10] sm:$0x3]
          %v2254 = vcombine.high %v2248, %v2248
          %v2256 = vunpack.c.l.s4 1983009808
          %v2257 = vunpack.c.0.s8 %v2256
          %v2258 = vlaneseq
          %v2259 = vshrl.u32 %v2258, 7
          %v2260 = vsub.s32 %v2257, %v2259
          %v2261 = vrot.slane %v2248, %v2260
          %v2263 = vunpack.c.l.s4 1983009808
          %v2264 = vunpack.c.0.s8 %v2263
          %v2265 = vlaneseq
          %v2266 = vshrl.u32 %v2265, 7
          %v2267 = vsub.s32 %v2264, %v2266
          %v2268 = vrot.slane %v2254, %v2267
          %v2269 = vcombine.high %v2249, %v2249
          %v2271 = vunpack.c.l.s4 1983009808
          %v2272 = vunpack.c.0.s8 %v2271
          %v2273 = vlaneseq
          %v2274 = vshrl.u32 %v2273, 7
          %v2275 = vsub.s32 %v2272, %v2274
          %v2276 = vrot.slane %v2249, %v2275
          %v2278 = vunpack.c.l.s4 1983009808
          %v2279 = vunpack.c.0.s8 %v2278
          %v2280 = vlaneseq
          %v2281 = vshrl.u32 %v2280, 7
          %v2282 = vsub.s32 %v2279, %v2281
          %v2283 = vrot.slane %v2269, %v2282
          %v2285 = vunpack.c.l.s4 1983009808
          %v2286 = vunpack.c.0.s8 %v2285
          %v2287 = vlaneseq
          %v2288 = vshrl.u32 %v2287, 7
          %v2289 = vsub.s32 %v2286, %v2288
          %v2290 = vrot.slane %v2250, %v2289
          %2291 = vrot.lane.b32.xlu0 %v2261, 64
          %v2292 = vpop.permute.xlu0 %2291
          %2293 = vrot.lane.b32.xlu0 %v2268, 64
          %v2294 = vpop.permute.xlu0 %2293
          %2295 = vrot.lane.b32.xlu0 %v2276, 64
          %v2296 = vpop.permute.xlu0 %2295
          %2297 = vrot.lane.b32.xlu0 %v2283, 64
          %v2298 = vpop.permute.xlu0 %2297
          %2299 = vrot.lane.b32.xlu0 %v2290, 64
          %v2300 = vpop.permute.xlu0 %2299
          %v2301 = vrot.slane %v2292, 4
          %v2302 = vrot.slane %v2294, 4
          %v2303 = vrot.slane %v2296, 4
          %v2304 = vrot.slane %v2298, 4
          %v2305 = vrot.slane %v2300, 4
          %v2306 = vsel %vm1699, %v2301, %v2302
          %v2307 = vsel %vm1472, %v2292, %v2306
          %v2308 = vsel %vm1699, %v2302, %v2303
          %v2309 = vsel %vm1472, %v2294, %v2308
          %v2310 = vsel %vm1699, %v2303, %v2304
          %v2311 = vsel %vm1472, %v2296, %v2310
          %v2312 = vsel %vm1699, %v2304, %v2305
          %v2313 = vsel %vm1472, %v2298, %v2312
          %2318 = vst [vmem:[#allocation3 + $0x40] sm:$0x33] %v2307
          %2319 = vst [vmem:[#allocation3 + $0x48] sm:$0x33] %v2309
          %2320 = vst [vmem:[#allocation3 + $0x50] sm:$0x33] %v2311
          %2321 = vst [vmem:[#allocation3 + $0x58] sm:$0x33] %v2313
          %v2322 = vld [vmem:[#allocation2] sm:$0xff]
          %v2323 = vld [vmem:[#allocation2 + $0x8] sm:$0xff]
          %v2324 = vld [vmem:[#allocation2 + $0x10] sm:$0x3]
          %v2325 = vld [vmem:[%s4] sm:$0xaa]
          %v2326 = vld [vmem:[%s4 + $0x8] sm:$0xaa]
          %v2329 = vcombine.high %v2325, %v2325
          %v2331 = vunpack.c.l.s4 1983009808
          %v2332 = vunpack.c.0.s8 %v2331
          %v2333 = vlaneseq
          %v2334 = vshrl.u32 %v2333, 7
          %v2335 = vsub.s32 %v2332, %v2334
          %v2336 = vrot.slane %v2325, %v2335
          %v2338 = vunpack.c.l.s4 1983009808
          %v2339 = vunpack.c.0.s8 %v2338
          %v2340 = vlaneseq
          %v2341 = vshrl.u32 %v2340, 7
          %v2342 = vsub.s32 %v2339, %v2341
          %v2343 = vrot.slane %v2329, %v2342
          %v2344 = vcombine.high %v2336, %v2336
          %v2345 = vcombine.high %v2343, %v2343
          %v2346 = vcombine.high %v2326, %v2326
          %v2348 = vunpack.c.l.s4 1983009808
          %v2349 = vunpack.c.0.s8 %v2348
          %v2350 = vlaneseq
          %v2351 = vshrl.u32 %v2350, 7
          %v2352 = vsub.s32 %v2349, %v2351
          %v2353 = vrot.slane %v2326, %v2352
          %v2355 = vunpack.c.l.s4 1983009808
          %v2356 = vunpack.c.0.s8 %v2355
          %v2357 = vlaneseq
          %v2358 = vshrl.u32 %v2357, 7
          %v2359 = vsub.s32 %v2356, %v2358
          %v2360 = vrot.slane %v2346, %v2359
          %v2361 = vcombine.high %v2353, %v2353
          %v2362 = vcombine.high %v2360, %v2360
          %v2364 = vpack.i.b16 %v2336, %v2336
          %v2366 = vlaneseq
          %v2367 = vshrl.u32 %v2366, 7
          %v2368 = vsub.s32 1, %v2367
          %v2369 = vrot.slane %v2364, %v2368
          %v2371 = vpack.i.b16 %v2344, %v2344
          %v2373 = vlaneseq
          %v2374 = vshrl.u32 %v2373, 7
          %v2375 = vsub.s32 1, %v2374
          %v2376 = vrot.slane %v2371, %v2375
          %v2378 = vpack.i.b16 %v2343, %v2343
          %v2380 = vlaneseq
          %v2381 = vshrl.u32 %v2380, 7
          %v2382 = vsub.s32 1, %v2381
          %v2383 = vrot.slane %v2378, %v2382
          %v2385 = vpack.i.b16 %v2345, %v2345
          %v2387 = vlaneseq
          %v2388 = vshrl.u32 %v2387, 7
          %v2389 = vsub.s32 1, %v2388
          %v2390 = vrot.slane %v2385, %v2389
          %v2392 = vpack.i.b16 %v2353, %v2353
          %v2394 = vlaneseq
          %v2395 = vshrl.u32 %v2394, 7
          %v2396 = vsub.s32 1, %v2395
          %v2397 = vrot.slane %v2392, %v2396
          %v2399 = vpack.i.b16 %v2361, %v2361
          %v2401 = vlaneseq
          %v2402 = vshrl.u32 %v2401, 7
          %v2403 = vsub.s32 1, %v2402
          %v2404 = vrot.slane %v2399, %v2403
          %v2406 = vpack.i.b16 %v2360, %v2360
          %v2408 = vlaneseq
          %v2409 = vshrl.u32 %v2408, 7
          %v2410 = vsub.s32 1, %v2409
          %v2411 = vrot.slane %v2406, %v2410
          %v2413 = vpack.i.b16 %v2362, %v2362
          %v2415 = vlaneseq
          %v2416 = vshrl.u32 %v2415, 7
          %v2417 = vsub.s32 1, %v2416
          %v2418 = vrot.slane %v2413, %v2417
          %v2427 = vcombine.low %v2369, %v2376
          %v2428 = vcombine.low %v2383, %v2390
          %v2430 = vunpack.c.l.s4 1983009808
          %v2431 = vunpack.c.0.s8 %v2430
          %v2432 = vlaneseq
          %v2433 = vshrl.u32 %v2432, 7
          %v2434 = vsub.s32 %v2431, %v2433
          %v2435 = vrot.slane %v2427, %v2434
          %v2437 = vunpack.c.l.s4 1983009808
          %v2438 = vunpack.c.0.s8 %v2437
          %v2439 = vlaneseq
          %v2440 = vshrl.u32 %v2439, 7
          %v2441 = vsub.s32 %v2438, %v2440
          %v2442 = vrot.slane %v2428, %v2441
          %v2443 = vcombine.low %v2435, %v2442
          %v2444 = vcombine.low %v2397, %v2404
          %v2445 = vcombine.low %v2411, %v2418
          %v2447 = vunpack.c.l.s4 1983009808
          %v2448 = vunpack.c.0.s8 %v2447
          %v2449 = vlaneseq
          %v2450 = vshrl.u32 %v2449, 7
          %v2451 = vsub.s32 %v2448, %v2450
          %v2452 = vrot.slane %v2444, %v2451
          %v2454 = vunpack.c.l.s4 1983009808
          %v2455 = vunpack.c.0.s8 %v2454
          %v2456 = vlaneseq
          %v2457 = vshrl.u32 %v2456, 7
          %v2458 = vsub.s32 %v2455, %v2457
          %v2459 = vrot.slane %v2445, %v2458
          %v2460 = vcombine.low %v2452, %v2459
          %2461 = vrot.lane.b32.xlu0 %v2443, 65
          %v2462 = vpop.permute.xlu0 %2461
          %2463 = vrot.lane.b32.xlu0 %v2460, 65
          %v2464 = vpop.permute.xlu0 %2463
          %v2465 = vrot.slane %v2462, 6
          %v2466 = vrot.slane %v2464, 6
          %v2467 = vsel %vm2232, %v2465, %v2462
          %v2468 = vsel %vm1474, %v2465, %v2466
          %v2469 = vsel %vm2232, %v2468, %v2464
          %v2473 = vmul.bf16 %v2322, %v2467
          %v2474 = vmul.bf16 %v2323, %v2469
          %v2475 = vmul.bf16 %v2324, %v2466
          %v2479 = vcombine.low %v2473, %v2473
          %v2481 = vunpack.c.l.s4 1983009808
          %v2482 = vunpack.c.0.s8 %v2481
          %v2483 = vlaneseq
          %v2484 = vshrl.u32 %v2483, 7
          %v2485 = vsub.s32 %v2482, %v2484
          %v2486 = vrot.slane %v2479, %v2485
          %v2488 = vunpack.c.l.s4 1983009808
          %v2489 = vunpack.c.0.s8 %v2488
          %v2490 = vlaneseq
          %v2491 = vshrl.u32 %v2490, 7
          %v2492 = vsub.s32 %v2489, %v2491
          %v2493 = vrot.slane %v2473, %v2492
          %v2494 = vcombine.low %v2474, %v2474
          %v2496 = vunpack.c.l.s4 1983009808
          %v2497 = vunpack.c.0.s8 %v2496
          %v2498 = vlaneseq
          %v2499 = vshrl.u32 %v2498, 7
          %v2500 = vsub.s32 %v2497, %v2499
          %v2501 = vrot.slane %v2494, %v2500
          %v2503 = vunpack.c.l.s4 1983009808
          %v2504 = vunpack.c.0.s8 %v2503
          %v2505 = vlaneseq
          %v2506 = vshrl.u32 %v2505, 7
          %v2507 = vsub.s32 %v2504, %v2506
          %v2508 = vrot.slane %v2474, %v2507
          %v2509 = vcombine.low %v2475, %v2475
          %v2511 = vunpack.c.l.s4 1983009808
          %v2512 = vunpack.c.0.s8 %v2511
          %v2513 = vlaneseq
          %v2514 = vshrl.u32 %v2513, 7
          %v2515 = vsub.s32 %v2512, %v2514
          %v2516 = vrot.slane %v2509, %v2515
          %2517 = vrot.lane.b32.xlu0 %v2486, 63
          %v2518 = vpop.permute.xlu0 %2517
          %2519 = vrot.lane.b32.xlu0 %v2493, 63
          %v2520 = vpop.permute.xlu0 %2519
          %2521 = vrot.lane.b32.xlu0 %v2501, 63
          %v2522 = vpop.permute.xlu0 %2521
          %2523 = vrot.lane.b32.xlu0 %v2508, 63
          %v2524 = vpop.permute.xlu0 %2523
          %2525 = vrot.lane.b32.xlu0 %v2516, 63
          %v2526 = vpop.permute.xlu0 %2525
          %v2527 = vrot.slane %v2518, 4
          %v2528 = vrot.slane %v2520, 4
          %v2529 = vrot.slane %v2522, 4
          %v2530 = vrot.slane %v2524, 4
          %v2531 = vrot.slane %v2526, 4
          %v2532 = vsel %vm1699, %v2527, %v2528
          %v2533 = vsel %vm2165, %v2518, %v2532
          %v2534 = vsel %vm1699, %v2528, %v2529
          %v2535 = vsel %vm2165, %v2520, %v2534
          %v2536 = vsel %vm1699, %v2529, %v2530
          %v2537 = vsel %vm2165, %v2522, %v2536
          %v2538 = vsel %vm1699, %v2530, %v2531
          %v2539 = vsel %vm2165, %v2524, %v2538
          %2544 = vst [vmem:[#allocation3 + $0x40] sm:$0xcc] %v2533
          %2545 = vst [vmem:[#allocation3 + $0x48] sm:$0xcc] %v2535
          %2546 = vst [vmem:[#allocation3 + $0x50] sm:$0xcc] %v2537
          %2547 = vst [vmem:[#allocation3 + $0x58] sm:$0xcc] %v2539
          %v2548 = vld [vmem:[#allocation2] sm:$0xff]
          %v2549 = vld [vmem:[#allocation2 + $0x8] sm:$0xff]
          %v2550 = vld [vmem:[#allocation2 + $0x10] sm:$0x3]
          %v2551 = vld [vmem:[%s4] sm:$0x55]
          %v2552 = vld [vmem:[%s4 + $0x8] sm:$0x55]
          %v2555 = vcombine.high %v2551, %v2551
          %v2557 = vunpack.c.l.s4 1983009808
          %v2558 = vunpack.c.0.s8 %v2557
          %v2559 = vlaneseq
          %v2560 = vshrl.u32 %v2559, 7
          %v2561 = vsub.s32 %v2558, %v2560
          %v2562 = vrot.slane %v2551, %v2561
          %v2564 = vunpack.c.l.s4 1983009808
          %v2565 = vunpack.c.0.s8 %v2564
          %v2566 = vlaneseq
          %v2567 = vshrl.u32 %v2566, 7
          %v2568 = vsub.s32 %v2565, %v2567
          %v2569 = vrot.slane %v2555, %v2568
          %v2570 = vcombine.high %v2562, %v2562
          %v2571 = vcombine.high %v2569, %v2569
          %v2572 = vcombine.high %v2552, %v2552
          %v2574 = vunpack.c.l.s4 1983009808
          %v2575 = vunpack.c.0.s8 %v2574
          %v2576 = vlaneseq
          %v2577 = vshrl.u32 %v2576, 7
          %v2578 = vsub.s32 %v2575, %v2577
          %v2579 = vrot.slane %v2552, %v2578
          %v2581 = vunpack.c.l.s4 1983009808
          %v2582 = vunpack.c.0.s8 %v2581
          %v2583 = vlaneseq
          %v2584 = vshrl.u32 %v2583, 7
          %v2585 = vsub.s32 %v2582, %v2584
          %v2586 = vrot.slane %v2572, %v2585
          %v2587 = vcombine.high %v2579, %v2579
          %v2588 = vcombine.high %v2586, %v2586
          %v2590 = vpack.i.b16 %v2562, %v2562
          %v2592 = vlaneseq
          %v2593 = vshrl.u32 %v2592, 7
          %v2594 = vsub.s32 0, %v2593
          %v2595 = vrot.slane %v2590, %v2594
          %v2597 = vpack.i.b16 %v2570, %v2570
          %v2599 = vlaneseq
          %v2600 = vshrl.u32 %v2599, 7
          %v2601 = vsub.s32 0, %v2600
          %v2602 = vrot.slane %v2597, %v2601
          %v2604 = vpack.i.b16 %v2569, %v2569
          %v2606 = vlaneseq
          %v2607 = vshrl.u32 %v2606, 7
          %v2608 = vsub.s32 0, %v2607
          %v2609 = vrot.slane %v2604, %v2608
          %v2611 = vpack.i.b16 %v2571, %v2571
          %v2613 = vlaneseq
          %v2614 = vshrl.u32 %v2613, 7
          %v2615 = vsub.s32 0, %v2614
          %v2616 = vrot.slane %v2611, %v2615
          %v2618 = vpack.i.b16 %v2579, %v2579
          %v2620 = vlaneseq
          %v2621 = vshrl.u32 %v2620, 7
          %v2622 = vsub.s32 0, %v2621
          %v2623 = vrot.slane %v2618, %v2622
          %v2625 = vpack.i.b16 %v2587, %v2587
          %v2627 = vlaneseq
          %v2628 = vshrl.u32 %v2627, 7
          %v2629 = vsub.s32 0, %v2628
          %v2630 = vrot.slane %v2625, %v2629
          %v2632 = vpack.i.b16 %v2586, %v2586
          %v2634 = vlaneseq
          %v2635 = vshrl.u32 %v2634, 7
          %v2636 = vsub.s32 0, %v2635
          %v2637 = vrot.slane %v2632, %v2636
          %v2639 = vpack.i.b16 %v2588, %v2588
          %v2641 = vlaneseq
          %v2642 = vshrl.u32 %v2641, 7
          %v2643 = vsub.s32 0, %v2642
          %v2644 = vrot.slane %v2639, %v2643
          %v2653 = vcombine.low %v2595, %v2602
          %v2654 = vcombine.low %v2609, %v2616
          %v2656 = vunpack.c.l.s4 1983009808
          %v2657 = vunpack.c.0.s8 %v2656
          %v2658 = vlaneseq
          %v2659 = vshrl.u32 %v2658, 7
          %v2660 = vsub.s32 %v2657, %v2659
          %v2661 = vrot.slane %v2653, %v2660
          %v2663 = vunpack.c.l.s4 1983009808
          %v2664 = vunpack.c.0.s8 %v2663
          %v2665 = vlaneseq
          %v2666 = vshrl.u32 %v2665, 7
          %v2667 = vsub.s32 %v2664, %v2666
          %v2668 = vrot.slane %v2654, %v2667
          %v2669 = vcombine.low %v2661, %v2668
          %v2670 = vcombine.low %v2623, %v2630
          %v2671 = vcombine.low %v2637, %v2644
          %v2673 = vunpack.c.l.s4 1983009808
          %v2674 = vunpack.c.0.s8 %v2673
          %v2675 = vlaneseq
          %v2676 = vshrl.u32 %v2675, 7
          %v2677 = vsub.s32 %v2674, %v2676
          %v2678 = vrot.slane %v2670, %v2677
          %v2680 = vunpack.c.l.s4 1983009808
          %v2681 = vunpack.c.0.s8 %v2680
          %v2682 = vlaneseq
          %v2683 = vshrl.u32 %v2682, 7
          %v2684 = vsub.s32 %v2681, %v2683
          %v2685 = vrot.slane %v2671, %v2684
          %v2686 = vcombine.low %v2678, %v2685
          %2687 = vrot.lane.b32.xlu0 %v2669, 95
          %v2688 = vpop.permute.xlu0 %2687
          %2689 = vrot.lane.b32.xlu0 %v2686, 95
          %v2690 = vpop.permute.xlu0 %2689
          %v2691 = vrot.slane %v2688, 6
          %v2692 = vrot.slane %v2690, 6
          %v2693 = vsel %vm2004, %v2691, %v2688
          %v2694 = vsel %vm1474, %v2691, %v2692
          %v2695 = vsel %vm2004, %v2694, %v2690
          %v2699 = vmul.bf16 %v2548, %v2693
          %v2700 = vmul.bf16 %v2549, %v2695
          %v2701 = vmul.bf16 %v2550, %v2692
          %v2705 = vcombine.high %v2699, %v2699
          %v2707 = vunpack.c.l.s4 1983009808
          %v2708 = vunpack.c.0.s8 %v2707
          %v2709 = vlaneseq
          %v2710 = vshrl.u32 %v2709, 7
          %v2711 = vsub.s32 %v2708, %v2710
          %v2712 = vrot.slane %v2699, %v2711
          %v2714 = vunpack.c.l.s4 1983009808
          %v2715 = vunpack.c.0.s8 %v2714
          %v2716 = vlaneseq
          %v2717 = vshrl.u32 %v2716, 7
          %v2718 = vsub.s32 %v2715, %v2717
          %v2719 = vrot.slane %v2705, %v2718
          %v2720 = vcombine.high %v2700, %v2700
          %v2722 = vunpack.c.l.s4 1983009808
          %v2723 = vunpack.c.0.s8 %v2722
          %v2724 = vlaneseq
          %v2725 = vshrl.u32 %v2724, 7
          %v2726 = vsub.s32 %v2723, %v2725
          %v2727 = vrot.slane %v2700, %v2726
          %v2729 = vunpack.c.l.s4 1983009808
          %v2730 = vunpack.c.0.s8 %v2729
          %v2731 = vlaneseq
          %v2732 = vshrl.u32 %v2731, 7
          %v2733 = vsub.s32 %v2730, %v2732
          %v2734 = vrot.slane %v2720, %v2733
          %v2736 = vunpack.c.l.s4 1983009808
          %v2737 = vunpack.c.0.s8 %v2736
          %v2738 = vlaneseq
          %v2739 = vshrl.u32 %v2738, 7
          %v2740 = vsub.s32 %v2737, %v2739
          %v2741 = vrot.slane %v2701, %v2740
          %2742 = vrot.lane.b32.xlu0 %v2712, 33
          %v2743 = vpop.permute.xlu0 %2742
          %2744 = vrot.lane.b32.xlu0 %v2719, 33
          %v2745 = vpop.permute.xlu0 %2744
          %2746 = vrot.lane.b32.xlu0 %v2727, 33
          %v2747 = vpop.permute.xlu0 %2746
          %2748 = vrot.lane.b32.xlu0 %v2734, 33
          %v2749 = vpop.permute.xlu0 %2748
          %2750 = vrot.lane.b32.xlu0 %v2741, 33
          %v2751 = vpop.permute.xlu0 %2750
          %v2752 = vrot.slane %v2743, 4
          %v2753 = vrot.slane %v2745, 4
          %v2754 = vrot.slane %v2747, 4
          %v2755 = vrot.slane %v2749, 4
          %v2756 = vrot.slane %v2751, 4
          %v2757 = vsel %vm1699, %v2752, %v2753
          %v2758 = vsel %vm1938, %v2743, %v2757
          %v2759 = vsel %vm1699, %v2753, %v2754
          %v2760 = vsel %vm1938, %v2745, %v2759
          %v2761 = vsel %vm1699, %v2754, %v2755
          %v2762 = vsel %vm1938, %v2747, %v2761
          %v2763 = vsel %vm1699, %v2755, %v2756
          %v2764 = vsel %vm1938, %v2749, %v2763
          %2769 = vst [vmem:[#allocation3 + $0x60] sm:$0x33] %v2758
          %2770 = vst [vmem:[#allocation3 + $0x68] sm:$0x33] %v2760
          %2771 = vst [vmem:[#allocation3 + $0x70] sm:$0x33] %v2762
          %2772 = vst [vmem:[#allocation3 + $0x78] sm:$0x33] %v2764
          %v2773 = vld [vmem:[#allocation2] sm:$0xff]
          %v2774 = vld [vmem:[#allocation2 + $0x8] sm:$0xff]
          %v2775 = vld [vmem:[#allocation2 + $0x10] sm:$0x3]
          %v2779 = vcombine.low %v2773, %v2773
          %v2781 = vunpack.c.l.s4 1983009808
          %v2782 = vunpack.c.0.s8 %v2781
          %v2783 = vlaneseq
          %v2784 = vshrl.u32 %v2783, 7
          %v2785 = vsub.s32 %v2782, %v2784
          %v2786 = vrot.slane %v2779, %v2785
          %v2788 = vunpack.c.l.s4 1983009808
          %v2789 = vunpack.c.0.s8 %v2788
          %v2790 = vlaneseq
          %v2791 = vshrl.u32 %v2790, 7
          %v2792 = vsub.s32 %v2789, %v2791
          %v2793 = vrot.slane %v2773, %v2792
          %v2794 = vcombine.low %v2774, %v2774
          %v2796 = vunpack.c.l.s4 1983009808
          %v2797 = vunpack.c.0.s8 %v2796
          %v2798 = vlaneseq
          %v2799 = vshrl.u32 %v2798, 7
          %v2800 = vsub.s32 %v2797, %v2799
          %v2801 = vrot.slane %v2794, %v2800
          %v2803 = vunpack.c.l.s4 1983009808
          %v2804 = vunpack.c.0.s8 %v2803
          %v2805 = vlaneseq
          %v2806 = vshrl.u32 %v2805, 7
          %v2807 = vsub.s32 %v2804, %v2806
          %v2808 = vrot.slane %v2774, %v2807
          %v2809 = vcombine.low %v2775, %v2775
          %v2811 = vunpack.c.l.s4 1983009808
          %v2812 = vunpack.c.0.s8 %v2811
          %v2813 = vlaneseq
          %v2814 = vshrl.u32 %v2813, 7
          %v2815 = vsub.s32 %v2812, %v2814
          %v2816 = vrot.slane %v2809, %v2815
          %2817 = vrot.lane.b32.xlu0 %v2786, 32
          %v2818 = vpop.permute.xlu0 %2817
          %2819 = vrot.lane.b32.xlu0 %v2793, 32
          %v2820 = vpop.permute.xlu0 %2819
          %2821 = vrot.lane.b32.xlu0 %v2801, 32
          %v2822 = vpop.permute.xlu0 %2821
          %2823 = vrot.lane.b32.xlu0 %v2808, 32
          %v2824 = vpop.permute.xlu0 %2823
          %2825 = vrot.lane.b32.xlu0 %v2816, 32
          %v2826 = vpop.permute.xlu0 %2825
          %v2827 = vrot.slane %v2818, 4
          %v2828 = vrot.slane %v2820, 4
          %v2829 = vrot.slane %v2822, 4
          %v2830 = vrot.slane %v2824, 4
          %v2831 = vrot.slane %v2826, 4
          %v2832 = vsel %vm1699, %v2827, %v2828
          %vm2833 = vcmask 261120
          %v2834 = vsel %vm2833, %v2818, %v2832
          %v2835 = vsel %vm1699, %v2828, %v2829
          %v2836 = vsel %vm2833, %v2820, %v2835
          %v2837 = vsel %vm1699, %v2829, %v2830
          %v2838 = vsel %vm2833, %v2822, %v2837
          %v2839 = vsel %vm1699, %v2830, %v2831
          %v2840 = vsel %vm2833, %v2824, %v2839
          %2845 = vst [vmem:[#allocation3 + $0x60] sm:$0xcc] %v2834
          %2846 = vst [vmem:[#allocation3 + $0x68] sm:$0xcc] %v2836
          %2847 = vst [vmem:[#allocation3 + $0x70] sm:$0xcc] %v2838
          %2848 = vst [vmem:[#allocation3 + $0x78] sm:$0xcc] %v2840
          %v2849 = vld [vmem:[#allocation2] sm:$0xff]
          %v2850 = vld [vmem:[#allocation2 + $0x8] sm:$0xff]
          %v2851 = vld [vmem:[#allocation2 + $0x10] sm:$0x3]
          %v2852 = vld [vmem:[%s4] sm:$0xaa]
          %v2853 = vld [vmem:[%s4 + $0x8] sm:$0xaa]
          %v2856 = vcombine.high %v2852, %v2852
          %v2858 = vunpack.c.l.s4 1983009808
          %v2859 = vunpack.c.0.s8 %v2858
          %v2860 = vlaneseq
          %v2861 = vshrl.u32 %v2860, 7
          %v2862 = vsub.s32 %v2859, %v2861
          %v2863 = vrot.slane %v2852, %v2862
          %v2865 = vunpack.c.l.s4 1983009808
          %v2866 = vunpack.c.0.s8 %v2865
          %v2867 = vlaneseq
          %v2868 = vshrl.u32 %v2867, 7
          %v2869 = vsub.s32 %v2866, %v2868
          %v2870 = vrot.slane %v2856, %v2869
          %v2871 = vcombine.high %v2863, %v2863
          %v2872 = vcombine.high %v2870, %v2870
          %v2873 = vcombine.high %v2853, %v2853
          %v2875 = vunpack.c.l.s4 1983009808
          %v2876 = vunpack.c.0.s8 %v2875
          %v2877 = vlaneseq
          %v2878 = vshrl.u32 %v2877, 7
          %v2879 = vsub.s32 %v2876, %v2878
          %v2880 = vrot.slane %v2853, %v2879
          %v2882 = vunpack.c.l.s4 1983009808
          %v2883 = vunpack.c.0.s8 %v2882
          %v2884 = vlaneseq
          %v2885 = vshrl.u32 %v2884, 7
          %v2886 = vsub.s32 %v2883, %v2885
          %v2887 = vrot.slane %v2873, %v2886
          %v2888 = vcombine.high %v2880, %v2880
          %v2889 = vcombine.high %v2887, %v2887
          %v2891 = vpack.i.b16 %v2863, %v2863
          %v2893 = vlaneseq
          %v2894 = vshrl.u32 %v2893, 7
          %v2895 = vsub.s32 1, %v2894
          %v2896 = vrot.slane %v2891, %v2895
          %v2898 = vpack.i.b16 %v2871, %v2871
          %v2900 = vlaneseq
          %v2901 = vshrl.u32 %v2900, 7
          %v2902 = vsub.s32 1, %v2901
          %v2903 = vrot.slane %v2898, %v2902
          %v2905 = vpack.i.b16 %v2870, %v2870
          %v2907 = vlaneseq
          %v2908 = vshrl.u32 %v2907, 7
          %v2909 = vsub.s32 1, %v2908
          %v2910 = vrot.slane %v2905, %v2909
          %v2912 = vpack.i.b16 %v2872, %v2872
          %v2914 = vlaneseq
          %v2915 = vshrl.u32 %v2914, 7
          %v2916 = vsub.s32 1, %v2915
          %v2917 = vrot.slane %v2912, %v2916
          %v2919 = vpack.i.b16 %v2880, %v2880
          %v2921 = vlaneseq
          %v2922 = vshrl.u32 %v2921, 7
          %v2923 = vsub.s32 1, %v2922
          %v2924 = vrot.slane %v2919, %v2923
          %v2926 = vpack.i.b16 %v2888, %v2888
          %v2928 = vlaneseq
          %v2929 = vshrl.u32 %v2928, 7
          %v2930 = vsub.s32 1, %v2929
          %v2931 = vrot.slane %v2926, %v2930
          %v2933 = vpack.i.b16 %v2887, %v2887
          %v2935 = vlaneseq
          %v2936 = vshrl.u32 %v2935, 7
          %v2937 = vsub.s32 1, %v2936
          %v2938 = vrot.slane %v2933, %v2937
          %v2940 = vpack.i.b16 %v2889, %v2889
          %v2942 = vlaneseq
          %v2943 = vshrl.u32 %v2942, 7
          %v2944 = vsub.s32 1, %v2943
          %v2945 = vrot.slane %v2940, %v2944
          %v2954 = vcombine.low %v2896, %v2903
          %v2955 = vcombine.low %v2910, %v2917
          %v2957 = vunpack.c.l.s4 1983009808
          %v2958 = vunpack.c.0.s8 %v2957
          %v2959 = vlaneseq
          %v2960 = vshrl.u32 %v2959, 7
          %v2961 = vsub.s32 %v2958, %v2960
          %v2962 = vrot.slane %v2954, %v2961
          %v2964 = vunpack.c.l.s4 1983009808
          %v2965 = vunpack.c.0.s8 %v2964
          %v2966 = vlaneseq
          %v2967 = vshrl.u32 %v2966, 7
          %v2968 = vsub.s32 %v2965, %v2967
          %v2969 = vrot.slane %v2955, %v2968
          %v2970 = vcombine.low %v2962, %v2969
          %v2971 = vcombine.low %v2924, %v2931
          %v2972 = vcombine.low %v2938, %v2945
          %v2974 = vunpack.c.l.s4 1983009808
          %v2975 = vunpack.c.0.s8 %v2974
          %v2976 = vlaneseq
          %v2977 = vshrl.u32 %v2976, 7
          %v2978 = vsub.s32 %v2975, %v2977
          %v2979 = vrot.slane %v2971, %v2978
          %v2981 = vunpack.c.l.s4 1983009808
          %v2982 = vunpack.c.0.s8 %v2981
          %v2983 = vlaneseq
          %v2984 = vshrl.u32 %v2983, 7
          %v2985 = vsub.s32 %v2982, %v2984
          %v2986 = vrot.slane %v2972, %v2985
          %v2987 = vcombine.low %v2979, %v2986
          %2988 = vrot.lane.b32.xlu0 %v2970, 97
          %v2989 = vpop.permute.xlu0 %2988
          %2990 = vrot.lane.b32.xlu0 %v2987, 97
          %v2991 = vpop.permute.xlu0 %2990
          %v2992 = vrot.slane %v2989, 6
          %v2993 = vrot.slane %v2991, 6
          %v2994 = vsel %vm1701, %v2992, %v2989
          %v2995 = vsel %vm1474, %v2992, %v2993
          %v2996 = vsel %vm1701, %v2995, %v2991
          %v3000 = vmul.bf16 %v2849, %v2994
          %v3001 = vmul.bf16 %v2850, %v2996
          %v3002 = vmul.bf16 %v2851, %v2993
          %v3006 = vcombine.high %v3000, %v3000
          %v3008 = vunpack.c.l.s4 1983009808
          %v3009 = vunpack.c.0.s8 %v3008
          %v3010 = vlaneseq
          %v3011 = vshrl.u32 %v3010, 7
          %v3012 = vsub.s32 %v3009, %v3011
          %v3013 = vrot.slane %v3000, %v3012
          %v3015 = vunpack.c.l.s4 1983009808
          %v3016 = vunpack.c.0.s8 %v3015
          %v3017 = vlaneseq
          %v3018 = vshrl.u32 %v3017, 7
          %v3019 = vsub.s32 %v3016, %v3018
          %v3020 = vrot.slane %v3006, %v3019
          %v3021 = vcombine.high %v3001, %v3001
          %v3023 = vunpack.c.l.s4 1983009808
          %v3024 = vunpack.c.0.s8 %v3023
          %v3025 = vlaneseq
          %v3026 = vshrl.u32 %v3025, 7
          %v3027 = vsub.s32 %v3024, %v3026
          %v3028 = vrot.slane %v3001, %v3027
          %v3030 = vunpack.c.l.s4 1983009808
          %v3031 = vunpack.c.0.s8 %v3030
          %v3032 = vlaneseq
          %v3033 = vshrl.u32 %v3032, 7
          %v3034 = vsub.s32 %v3031, %v3033
          %v3035 = vrot.slane %v3021, %v3034
          %v3037 = vunpack.c.l.s4 1983009808
          %v3038 = vunpack.c.0.s8 %v3037
          %v3039 = vlaneseq
          %v3040 = vshrl.u32 %v3039, 7
          %v3041 = vsub.s32 %v3038, %v3040
          %v3042 = vrot.slane %v3002, %v3041
          %3043 = vrot.lane.b32.xlu0 %v3013, 31
          %v3044 = vpop.permute.xlu0 %3043
          %3045 = vrot.lane.b32.xlu0 %v3020, 31
          %v3046 = vpop.permute.xlu0 %3045
          %3047 = vrot.lane.b32.xlu0 %v3028, 31
          %v3048 = vpop.permute.xlu0 %3047
          %3049 = vrot.lane.b32.xlu0 %v3035, 31
          %v3050 = vpop.permute.xlu0 %3049
          %3051 = vrot.lane.b32.xlu0 %v3042, 31
          %v3052 = vpop.permute.xlu0 %3051
          %v3053 = vrot.slane %v3044, 4
          %v3054 = vrot.slane %v3046, 4
          %v3055 = vrot.slane %v3048, 4
          %v3056 = vrot.slane %v3050, 4
          %v3057 = vrot.slane %v3052, 4
          %v3058 = vsel %vm1699, %v3053, %v3054
          %v3059 = vsel %vm1634, %v3044, %v3058
          %v3060 = vsel %vm1699, %v3054, %v3055
          %v3061 = vsel %vm1634, %v3046, %v3060
          %v3062 = vsel %vm1699, %v3055, %v3056
          %v3063 = vsel %vm1634, %v3048, %v3062
          %v3064 = vsel %vm1699, %v3056, %v3057
          %v3065 = vsel %vm1634, %v3050, %v3064
          %3070 = vst [vmem:[#allocation3 + $0x80] sm:$0x33] %v3059
          %3071 = vst [vmem:[#allocation3 + $0x88] sm:$0x33] %v3061
          %3072 = vst [vmem:[#allocation3 + $0x90] sm:$0x33] %v3063
          %3073 = vst [vmem:[#allocation3 + $0x98] sm:$0x33] %v3065
        $region68: #{tpu_custom_call.1} parent=59 // pred_fallthru
          _
        %v3074 = vld [vmem:[%s452] sm:$0x1]
        %v3075 = vld [vmem:[%s5] sm:$0xff]
        %v3076 = vld [vmem:[%s5 + $0x8] sm:$0xff]
        %v3077 = vld [vmem:[%s5 + $0x10] sm:$0xff]
        %v3078 = vld [vmem:[%s5 + $0x18] sm:$0xff]
        %v3079 = vld [vmem:[%s6] sm:$0x1]
        %vm3080 = vcmask 261120
        %v3082 = vsel %vm3080, %v3074, 0
        %3084 = vmatprep.subr.mxu0 0.0
        %3085 = vmatpush1.msra.mxu0 0.0
        %3086 = vmatprep.subr.mxu0 0.0
        %3087 = vmatpush1.msra.mxu0 0.0
        %3088 = vmatprep.subr.mxu0 0.0
        %3089 = vmatpush1.msra.mxu0 0.0
        %3090 = vmatprep.subr.mxu0 0.0
        %3091 = vmatpush1.msra.mxu0 0.0
        %3092 = vmatprep.subr.mxu0 0.0
        %3093 = vmatpush1.msra.mxu0 0.0
        %3094 = vmatprep.subr.mxu0 0.0
        %3095 = vmatpush1.msra.mxu0 0.0
        %3096 = vmatprep.subr.mxu0 0.0
        %3097 = vmatpush1.msra.mxu0 0.0
        %3098 = vmatprep.subr.mxu0 0.0
        %3099 = vmatpush1.msra.mxu0 0.0
        %3100 = vmatprep.subr.mxu0 0.0
        %3101 = vmatpush1.msra.mxu0 0.0
        %3102 = vmatprep.subr.mxu0 0.0
        %3103 = vmatpush1.msra.mxu0 0.0
        %3104 = vmatprep.subr.mxu0 0.0
        %3105 = vmatpush1.msra.mxu0 0.0
        %3106 = vmatprep.subr.mxu0 0.0
        %3107 = vmatpush1.msra.mxu0 0.0
        %3108 = vmatprep.subr.mxu0 0.0
        %3109 = vmatpush1.msra.mxu0 %v3078
        %3110 = vmatprep.subr.mxu0 0.0
        %3111 = vmatpush1.msra.mxu0 %v3077
        %3112 = vmatprep.subr.mxu0 0.0
        %3113 = vmatpush1.msra.mxu0 %v3076
        %3114 = vmatprep.subr.mxu0 0.0
        %3115 = vmatpush1.msra.mxu0 %v3075
        %3116 = vmatprep.subr.mxu0 0.0
        %3117 = vmatpush2.msra.mxu0 0.0
        %3118 = vmatprep.subr.mxu0 0.0
        %3119 = vmatpush2.msra.mxu0 0.0
        %3120 = vmatprep.subr.mxu0 0.0
        %3121 = vmatpush2.msra.mxu0 0.0
        %3122 = vmatprep.subr.mxu0 0.0
        %3123 = vmatpush2.msra.mxu0 0.0
        %3124 = vmatprep.subr.mxu0 0.0
        %3125 = vmatpush2.msra.mxu0 0.0
        %3126 = vmatprep.subr.mxu0 0.0
        %3127 = vmatpush2.msra.mxu0 0.0
        %3128 = vmatprep.subr.mxu0 0.0
        %3129 = vmatpush2.msra.mxu0 0.0
        %3130 = vmatprep.subr.mxu0 0.0
        %3131 = vmatpush2.msra.mxu0 0.0
        %3132 = vmatprep.subr.mxu0 0.0
        %3133 = vmatpush2.msra.mxu0 0.0
        %3134 = vmatprep.subr.mxu0 0.0
        %3135 = vmatpush2.msra.mxu0 0.0
        %3136 = vmatprep.subr.mxu0 0.0
        %3137 = vmatpush2.msra.mxu0 0.0
        %3138 = vmatprep.subr.mxu0 0.0
        %3139 = vmatpush2.msra.mxu0 0.0
        %3140 = vmatprep.subr.mxu0 0.0
        %3141 = vmatpush2.msra.mxu0 0.0
        %3142 = vmatprep.subr.mxu0 0.0
        %3143 = vmatpush2.msra.mxu0 0.0
        %3144 = vmatprep.subr.mxu0 0.0
        %3145 = vmatpush2.msra.mxu0 0.0
        %3146 = vmatprep.subr.mxu0 0.0
        %3147 = vmatpush2.msra.mxu0 0.0
        %3148 = vmatprep.mubr.f32.mxu0 0.0
        %3149 = vmatmul.mubr.f32.gmra.mxu0 %v3082
        %v3150 = vpop.f32.mrf.mxu0
        %v3151 = vadd.f32 %v3079, %v3150
        %v3152 = vpop.f32.mrf.mxu0
        %3153 = vdwg.mxu0
        %v3154 = vld [vmem:[%s464] sm:$0xf]
        %v3155 = vunpack.c.l.bf16 %v3154
        %3157 = vrot.lane.b32.xlu0 %v3151, 4
        %v3158 = vpop.permute.xlu0 %3157
        %3160 = vrot.lane.b32.xlu0 %v3151, 8
        %v3161 = vpop.permute.xlu0 %3160
        %3163 = vrot.lane.b32.xlu0 %v3151, 12
        %v3164 = vpop.permute.xlu0 %3163
        %3166 = vrot.lane.b32.xlu0 %v3151, 16
        %v3167 = vpop.permute.xlu0 %3166
        %3169 = vrot.lane.b32.xlu0 %v3151, 20
        %v3170 = vpop.permute.xlu0 %3169
        %3172 = vrot.lane.b32.xlu0 %v3151, 24
        %v3173 = vpop.permute.xlu0 %3172
        %3175 = vrot.lane.b32.xlu0 %v3151, 28
        %v3176 = vpop.permute.xlu0 %3175
        %3178 = vrot.lane.b32.xlu0 %v3151, 32
        %v3179 = vpop.permute.xlu0 %3178
        %vm3181 = vcmask 31744
        %v3182 = vsel %vm3181, %v3151, %v3158
        %vm3183 = vcmask 64512
        %v3184 = vsel %vm3183, %v3182, %v3161
        %vm3185 = vcmask 97280
        %v3186 = vsel %vm3185, %v3184, %v3164
        %vm3187 = vcmask 130048
        %v3188 = vsel %vm3187, %v3186, %v3167
        %vm3189 = vcmask 162816
        %v3190 = vsel %vm3189, %v3188, %v3170
        %vm3191 = vcmask 195584
        %v3192 = vsel %vm3191, %v3190, %v3173
        %vm3193 = vcmask 228352
        %v3194 = vsel %vm3193, %v3192, %v3176
        %v3195 = vsel %vm3080, %v3194, %v3179
        %v3196 = vlaneseq
        %v3197 = vshrl.u32 %v3196, 7
        %v3198 = vsub.s32 0, %v3197
        %v3199 = vrot.slane %v3195, %v3198
        %v3200 = vmul.f32 %v3155, %v3199
        %v3201 = vld [vmem:[%s460] sm:$0xff]
        %v3202 = vmul.f32 %v3151, %v3151
        %v3203 = vlaneseq
        %v3204 = vshrl.u32 %v3203, 7
        %v3205 = vsub.s32 0, %v3204
        %v3206 = vrot.slane %v3202, %v3205
        %v3207 = vmul.f32 %v3201, %v3206
        %v3208 = vsel %vm3181, %v3207, 0.0
        %3209 = vadd.xlane.f32.xlu0 %v3208
        %v3210 = vpop.xlane.xlu0 %3209
        %v3211 = vadd.f32 %v3210, 1e-08
        %v3212 = vrsqrt.pop %v3211
        %v3213 = vmul.f32 %v3200, %v3212
        %v3214 = vpack.c.bf16 %v3213, %v3213
        %v3215 = vld [vmem:[#allocation3] sm:$0xff]
        %v3216 = vld [vmem:[#allocation3 + $0x8] sm:$0xff]
        %v3217 = vld [vmem:[#allocation3 + $0x10] sm:$0xff]
        %v3218 = vld [vmem:[#allocation3 + $0x18] sm:$0xff]
        %v3219 = vld [vmem:[#allocation3 + $0x20] sm:$0xff]
        %v3220 = vld [vmem:[#allocation3 + $0x28] sm:$0xff]
        %v3221 = vld [vmem:[#allocation3 + $0x30] sm:$0xff]
        %v3222 = vld [vmem:[#allocation3 + $0x38] sm:$0xff]
        %v3223 = vld [vmem:[#allocation3 + $0x40] sm:$0xff]
        %v3224 = vld [vmem:[#allocation3 + $0x48] sm:$0xff]
        %v3225 = vld [vmem:[#allocation3 + $0x50] sm:$0xff]
        %v3226 = vld [vmem:[#allocation3 + $0x58] sm:$0xff]
        %v3227 = vld [vmem:[#allocation3 + $0x60] sm:$0xff]
        %v3228 = vld [vmem:[#allocation3 + $0x68] sm:$0xff]
        %v3229 = vld [vmem:[#allocation3 + $0x70] sm:$0xff]
        %v3230 = vld [vmem:[#allocation3 + $0x78] sm:$0xff]
        %v3231 = vld [vmem:[#allocation3 + $0x80] sm:$0x33]
        %v3232 = vld [vmem:[#allocation3 + $0x88] sm:$0x33]
        %v3233 = vld [vmem:[#allocation3 + $0x90] sm:$0x33]
        %v3234 = vld [vmem:[#allocation3 + $0x98] sm:$0x33]
        %v3235 = vld [vmem:[%s456] sm:$0xff]
        %v3237 = vlaneseq
        %v3238 = vshrl.u32 %v3237, 7
        %v3239 = vsub.s32 0, %v3238
        %v3240 = vrot.slane %v3235, %v3239
        %v3241 = vlaneseq
        %v3242 = vshrl.u32 %v3241, 7
        %v3243 = vsub.s32 1, %v3242
        %v3244 = vrot.slane %v3235, %v3243
        %v3245 = vlaneseq
        %v3246 = vshrl.u32 %v3245, 7
        %v3247 = vsub.s32 2, %v3246
        %v3248 = vrot.slane %v3235, %v3247
        %v3249 = vlaneseq
        %v3250 = vshrl.u32 %v3249, 7
        %v3251 = vsub.s32 3, %v3250
        %v3252 = vrot.slane %v3235, %v3251
        %v3253 = vlaneseq
        %v3254 = vshrl.u32 %v3253, 7
        %v3255 = vsub.s32 4, %v3254
        %v3256 = vrot.slane %v3235, %v3255
        %v3257 = vlaneseq
        %v3258 = vshrl.u32 %v3257, 7
        %v3259 = vsub.s32 5, %v3258
        %v3260 = vrot.slane %v3235, %v3259
        %v3261 = vlaneseq
        %v3262 = vshrl.u32 %v3261, 7
        %v3263 = vsub.s32 6, %v3262
        %v3264 = vrot.slane %v3235, %v3263
        %v3265 = vlaneseq
        %v3266 = vshrl.u32 %v3265, 7
        %v3267 = vsub.s32 7, %v3266
        %v3268 = vrot.slane %v3235, %v3267
        %v3297 = vunpack.c.l.b16 %v3215
        %v3298 = vunpack.c.h.b16 %v3215
        %v3299 = vunpack.c.l.b16 %v3216
        %v3300 = vunpack.c.h.b16 %v3216
        %v3301 = vunpack.c.l.b16 %v3217
        %v3302 = vunpack.c.h.b16 %v3217
        %v3303 = vunpack.c.l.b16 %v3218
        %v3304 = vunpack.c.h.b16 %v3218
        %v3305 = vunpack.c.l.b16 %v3219
        %v3306 = vunpack.c.h.b16 %v3219
        %v3307 = vunpack.c.l.b16 %v3220
        %v3308 = vunpack.c.h.b16 %v3220
        %v3309 = vunpack.c.l.b16 %v3221
        %v3310 = vunpack.c.h.b16 %v3221
        %v3311 = vunpack.c.l.b16 %v3222
        %v3312 = vunpack.c.h.b16 %v3222
        %v3313 = vunpack.c.l.b16 %v3223
        %v3314 = vunpack.c.h.b16 %v3223
        %v3315 = vunpack.c.l.b16 %v3224
        %v3316 = vunpack.c.h.b16 %v3224
        %v3317 = vunpack.c.l.b16 %v3225
        %v3318 = vunpack.c.h.b16 %v3225
        %v3319 = vunpack.c.l.b16 %v3226
        %v3320 = vunpack.c.h.b16 %v3226
        %v3321 = vunpack.c.l.b16 %v3227
        %v3322 = vunpack.c.h.b16 %v3227
        %v3323 = vunpack.c.l.b16 %v3228
        %v3324 = vunpack.c.h.b16 %v3228
        %v3325 = vunpack.c.l.b16 %v3229
        %v3326 = vunpack.c.h.b16 %v3229
        %v3327 = vunpack.c.l.b16 %v3230
        %v3328 = vunpack.c.h.b16 %v3230
        %v3329 = vunpack.c.l.b16 %v3231
        %v3330 = vunpack.c.h.b16 %v3231
        %v3331 = vunpack.c.l.b16 %v3232
        %v3332 = vunpack.c.h.b16 %v3232
        %v3333 = vunpack.c.l.b16 %v3233
        %v3334 = vunpack.c.h.b16 %v3233
        %v3335 = vunpack.c.l.b16 %v3234
        %v3336 = vunpack.c.h.b16 %v3234
        %v3337 = vpack.c.b16 %v3305, %v3297
        %v3338 = vpack.c.b16 %v3306, %v3298
        %v3339 = vpack.c.b16 %v3307, %v3299
        %v3340 = vpack.c.b16 %v3308, %v3300
        %v3341 = vpack.c.b16 %v3309, %v3301
        %v3342 = vpack.c.b16 %v3310, %v3302
        %v3343 = vpack.c.b16 %v3311, %v3303
        %v3344 = vpack.c.b16 %v3312, %v3304
        %v3345 = vpack.c.b16 %v3321, %v3313
        %v3346 = vpack.c.b16 %v3322, %v3314
        %v3347 = vpack.c.b16 %v3323, %v3315
        %v3348 = vpack.c.b16 %v3324, %v3316
        %v3349 = vpack.c.b16 %v3325, %v3317
        %v3350 = vpack.c.b16 %v3326, %v3318
        %v3351 = vpack.c.b16 %v3327, %v3319
        %v3352 = vpack.c.b16 %v3328, %v3320
        %v3353 = vpack.c.b16 %v3329, %v3329
        %v3354 = vpack.c.b16 %v3330, %v3330
        %v3355 = vpack.c.b16 %v3331, %v3331
        %v3356 = vpack.c.b16 %v3332, %v3332
        %v3357 = vpack.c.b16 %v3333, %v3333
        %v3358 = vpack.c.b16 %v3334, %v3334
        %v3359 = vpack.c.b16 %v3335, %v3335
        %v3360 = vpack.c.b16 %v3336, %v3336
        %vm3377 = vcmask 293888
        %v3379 = vsel %vm3377, %v3214, 0
        %vm3381 = vcmask 1041408
        %v3383 = vsel %vm3381, %v3353, 0
        %v3386 = vsel %vm3381, %v3354, 0
        %v3389 = vsel %vm3381, %v3355, 0
        %v3392 = vsel %vm3381, %v3356, 0
        %v3395 = vsel %vm3381, %v3357, 0
        %v3398 = vsel %vm3381, %v3358, 0
        %v3401 = vsel %vm3381, %v3359, 0
        %v3404 = vsel %vm3381, %v3360, 0
        %3406 = vmatprep.subr.bf16.mxu0 0
        %3407 = vmatpush1.bf16.msra.mxu0 0
        %3408 = vmatprep.subr.bf16.mxu0 0
        %3409 = vmatpush1.bf16.msra.mxu0 0
        %3410 = vmatprep.subr.bf16.mxu0 0
        %3411 = vmatpush1.bf16.msra.mxu0 0
        %3412 = vmatprep.subr.bf16.mxu0 0
        %3413 = vmatpush1.bf16.msra.mxu0 0
        %3414 = vmatprep.subr.bf16.mxu0 0
        %3415 = vmatpush1.bf16.msra.mxu0 0
        %3416 = vmatprep.subr.bf16.mxu0 %v3386
        %3417 = vmatpush1.bf16.msra.mxu0 %v3383
        %3418 = vmatprep.subr.bf16.mxu0 %v3346
        %3419 = vmatpush1.bf16.msra.mxu0 %v3345
        %3420 = vmatprep.subr.bf16.mxu0 %v3338
        %3421 = vmatpush1.bf16.msra.mxu0 %v3337
        %3422 = vmatprep.subr.bf16.mxu0 0
        %3423 = vmatpush2.bf16.msra.mxu0 0
        %3424 = vmatprep.subr.bf16.mxu0 0
        %3425 = vmatpush2.bf16.msra.mxu0 0
        %3426 = vmatprep.subr.bf16.mxu0 0
        %3427 = vmatpush2.bf16.msra.mxu0 0
        %3428 = vmatprep.subr.bf16.mxu0 0
        %3429 = vmatpush2.bf16.msra.mxu0 0
        %3430 = vmatprep.subr.bf16.mxu0 0
        %3431 = vmatpush2.bf16.msra.mxu0 0
        %3432 = vmatprep.subr.bf16.mxu0 0
        %3433 = vmatpush2.bf16.msra.mxu0 0
        %3434 = vmatprep.subr.bf16.mxu0 0
        %3435 = vmatpush2.bf16.msra.mxu0 0
        %3436 = vmatprep.subr.bf16.mxu0 0
        %3437 = vmatpush2.bf16.msra.mxu0 0
        %3438 = vmatprep.mubr.bf16.mxu0 0
        %3439 = vmatmul.mubr.bf16.gmra.mxu0 %v3379
        %v3440 = vpop.f32.mrf.mxu0
        %v3441 = vadd.f32 %v3240, %v3440
        %v3442 = vpop.f32.mrf.mxu0
        %v3443 = vadd.f32 %v3244, %v3442
        %v3444 = vpop.f32.mrf.mxu0
        %v3445 = vpop.f32.mrf.mxu0
        %3446 = vdwg.mxu0
        %3447 = vmatprep.subr.bf16.mxu0 0
        %3448 = vmatpush1.bf16.msra.mxu0 0
        %3449 = vmatprep.subr.bf16.mxu0 0
        %3450 = vmatpush1.bf16.msra.mxu0 0
        %3451 = vmatprep.subr.bf16.mxu0 0
        %3452 = vmatpush1.bf16.msra.mxu0 0
        %3453 = vmatprep.subr.bf16.mxu0 0
        %3454 = vmatpush1.bf16.msra.mxu0 0
        %3455 = vmatprep.subr.bf16.mxu0 0
        %3456 = vmatpush1.bf16.msra.mxu0 0
        %3457 = vmatprep.subr.bf16.mxu0 %v3392
        %3458 = vmatpush1.bf16.msra.mxu0 %v3389
        %3459 = vmatprep.subr.bf16.mxu0 %v3348
        %3460 = vmatpush1.bf16.msra.mxu0 %v3347
        %3461 = vmatprep.subr.bf16.mxu0 %v3340
        %3462 = vmatpush1.bf16.msra.mxu0 %v3339
        %3463 = vmatprep.subr.bf16.mxu0 0
        %3464 = vmatpush2.bf16.msra.mxu0 0
        %3465 = vmatprep.subr.bf16.mxu0 0
        %3466 = vmatpush2.bf16.msra.mxu0 0
        %3467 = vmatprep.subr.bf16.mxu0 0
        %3468 = vmatpush2.bf16.msra.mxu0 0
        %3469 = vmatprep.subr.bf16.mxu0 0
        %3470 = vmatpush2.bf16.msra.mxu0 0
        %3471 = vmatprep.subr.bf16.mxu0 0
        %3472 = vmatpush2.bf16.msra.mxu0 0
        %3473 = vmatprep.subr.bf16.mxu0 0
        %3474 = vmatpush2.bf16.msra.mxu0 0
        %3475 = vmatprep.subr.bf16.mxu0 0
        %3476 = vmatpush2.bf16.msra.mxu0 0
        %3477 = vmatprep.subr.bf16.mxu0 0
        %3478 = vmatpush2.bf16.msra.mxu0 0
        %3479 = vmatprep.mubr.bf16.mxu0 0
        %3480 = vmatmul.mubr.bf16.gmra.mxu0 %v3379
        %v3481 = vpop.f32.mrf.mxu0
        %v3482 = vadd.f32 %v3248, %v3481
        %v3483 = vpop.f32.mrf.mxu0
        %v3484 = vadd.f32 %v3252, %v3483
        %v3485 = vpop.f32.mrf.mxu0
        %v3486 = vpop.f32.mrf.mxu0
        %3487 = vdwg.mxu0
        %3488 = vmatprep.subr.bf16.mxu0 0
        %3489 = vmatpush1.bf16.msra.mxu0 0
        %3490 = vmatprep.subr.bf16.mxu0 0
        %3491 = vmatpush1.bf16.msra.mxu0 0
        %3492 = vmatprep.subr.bf16.mxu0 0
        %3493 = vmatpush1.bf16.msra.mxu0 0
        %3494 = vmatprep.subr.bf16.mxu0 0
        %3495 = vmatpush1.bf16.msra.mxu0 0
        %3496 = vmatprep.subr.bf16.mxu0 0
        %3497 = vmatpush1.bf16.msra.mxu0 0
        %3498 = vmatprep.subr.bf16.mxu0 %v3398
        %3499 = vmatpush1.bf16.msra.mxu0 %v3395
        %3500 = vmatprep.subr.bf16.mxu0 %v3350
        %3501 = vmatpush1.bf16.msra.mxu0 %v3349
        %3502 = vmatprep.subr.bf16.mxu0 %v3342
        %3503 = vmatpush1.bf16.msra.mxu0 %v3341
        %3504 = vmatprep.subr.bf16.mxu0 0
        %3505 = vmatpush2.bf16.msra.mxu0 0
        %3506 = vmatprep.subr.bf16.mxu0 0
        %3507 = vmatpush2.bf16.msra.mxu0 0
        %3508 = vmatprep.subr.bf16.mxu0 0
        %3509 = vmatpush2.bf16.msra.mxu0 0
        %3510 = vmatprep.subr.bf16.mxu0 0
        %3511 = vmatpush2.bf16.msra.mxu0 0
        %3512 = vmatprep.subr.bf16.mxu0 0
        %3513 = vmatpush2.bf16.msra.mxu0 0
        %3514 = vmatprep.subr.bf16.mxu0 0
        %3515 = vmatpush2.bf16.msra.mxu0 0
        %3516 = vmatprep.subr.bf16.mxu0 0
        %3517 = vmatpush2.bf16.msra.mxu0 0
        %3518 = vmatprep.subr.bf16.mxu0 0
        %3519 = vmatpush2.bf16.msra.mxu0 0
        %3520 = vmatprep.mubr.bf16.mxu0 0
        %3521 = vmatmul.mubr.bf16.gmra.mxu0 %v3379
        %v3522 = vpop.f32.mrf.mxu0
        %v3523 = vadd.f32 %v3256, %v3522
        %v3524 = vpop.f32.mrf.mxu0
        %v3525 = vadd.f32 %v3260, %v3524
        %v3526 = vpop.f32.mrf.mxu0
        %v3527 = vpop.f32.mrf.mxu0
        %3528 = vdwg.mxu0
        %3529 = vmatprep.subr.bf16.mxu0 0
        %3530 = vmatpush1.bf16.msra.mxu0 0
        %3531 = vmatprep.subr.bf16.mxu0 0
        %3532 = vmatpush1.bf16.msra.mxu0 0
        %3533 = vmatprep.subr.bf16.mxu0 0
        %3534 = vmatpush1.bf16.msra.mxu0 0
        %3535 = vmatprep.subr.bf16.mxu0 0
        %3536 = vmatpush1.bf16.msra.mxu0 0
        %3537 = vmatprep.subr.bf16.mxu0 0
        %3538 = vmatpush1.bf16.msra.mxu0 0
        %3539 = vmatprep.subr.bf16.mxu0 %v3404
        %3540 = vmatpush1.bf16.msra.mxu0 %v3401
        %3541 = vmatprep.subr.bf16.mxu0 %v3352
        %3542 = vmatpush1.bf16.msra.mxu0 %v3351
        %3543 = vmatprep.subr.bf16.mxu0 %v3344
        %3544 = vmatpush1.bf16.msra.mxu0 %v3343
        %3545 = vmatprep.subr.bf16.mxu0 0
        %3546 = vmatpush2.bf16.msra.mxu0 0
        %3547 = vmatprep.subr.bf16.mxu0 0
        %3548 = vmatpush2.bf16.msra.mxu0 0
        %3549 = vmatprep.subr.bf16.mxu0 0
        %3550 = vmatpush2.bf16.msra.mxu0 0
        %3551 = vmatprep.subr.bf16.mxu0 0
        %3552 = vmatpush2.bf16.msra.mxu0 0
        %3553 = vmatprep.subr.bf16.mxu0 0
        %3554 = vmatpush2.bf16.msra.mxu0 0
        %3555 = vmatprep.subr.bf16.mxu0 0
        %3556 = vmatpush2.bf16.msra.mxu0 0
        %3557 = vmatprep.subr.bf16.mxu0 0
        %3558 = vmatpush2.bf16.msra.mxu0 0
        %3559 = vmatprep.subr.bf16.mxu0 0
        %3560 = vmatpush2.bf16.msra.mxu0 0
        %3561 = vmatprep.mubr.bf16.mxu0 0
        %3562 = vmatmul.mubr.bf16.gmra.mxu0 %v3379
        %v3563 = vpop.f32.mrf.mxu0
        %v3564 = vadd.f32 %v3264, %v3563
        %v3565 = vpop.f32.mrf.mxu0
        %v3566 = vadd.f32 %v3268, %v3565
        %v3567 = vpop.f32.mrf.mxu0
        %v3568 = vpop.f32.mrf.mxu0
        %3569 = vdwg.mxu0
        %v3570 = vld [vmem:[%s468] sm:$0xff]
        %3572 = vset.pattern.permute.xlu0 0
        %3573 = vperm.xlu0 %3572, %v3570
        %v3574 = vpop.permute.xlu0 %3573
        %v3576 = vadd.f32 %v3441, %v3574
        %v3577 = vadd.f32 %v3443, %v3574
        %v3578 = vadd.f32 %v3482, %v3574
        %v3579 = vadd.f32 %v3484, %v3574
        %v3580 = vadd.f32 %v3523, %v3574
        %v3581 = vadd.f32 %v3525, %v3574
        %v3582 = vadd.f32 %v3564, %v3574
        %v3583 = vadd.f32 %v3566, %v3574
        %vm3584 = vcmp.ge.f32.partialorder %v3576, 0.0
        %vm3585 = vcmp.ge.f32.partialorder %v3577, 0.0
        %vm3586 = vcmp.ge.f32.partialorder %v3578, 0.0
        %vm3587 = vcmp.ge.f32.partialorder %v3579, 0.0
        %vm3588 = vcmp.ge.f32.partialorder %v3580, 0.0
        %vm3589 = vcmp.ge.f32.partialorder %v3581, 0.0
        %vm3590 = vcmp.ge.f32.partialorder %v3582, 0.0
        %vm3591 = vcmp.ge.f32.partialorder %v3583, 0.0
        %v3592 = vmul.f32 %v3576, 0.01
        %v3593 = vmul.f32 %v3577, 0.01
        %v3594 = vmul.f32 %v3578, 0.01
        %v3595 = vmul.f32 %v3579, 0.01
        %v3596 = vmul.f32 %v3580, 0.01
        %v3597 = vmul.f32 %v3581, 0.01
        %v3598 = vmul.f32 %v3582, 0.01
        %v3599 = vmul.f32 %v3583, 0.01
        %v3600 = vsel %vm3584, %v3576, %v3592
        %v3601 = vsel %vm3585, %v3577, %v3593
        %v3602 = vsel %vm3586, %v3578, %v3594
        %v3603 = vsel %vm3587, %v3579, %v3595
        %v3604 = vsel %vm3588, %v3580, %v3596
        %v3605 = vsel %vm3589, %v3581, %v3597
        %v3606 = vsel %vm3590, %v3582, %v3598
        %v3607 = vsel %vm3591, %v3583, %v3599
        %v3608 = vmul.f32 %v3600, 1.4142135
        %v3609 = vmul.f32 %v3601, 1.4142135
        %v3610 = vmul.f32 %v3602, 1.4142135
        %v3611 = vmul.f32 %v3603, 1.4142135
        %v3612 = vmul.f32 %v3604, 1.4142135
        %v3613 = vmul.f32 %v3605, 1.4142135
        %v3614 = vmul.f32 %v3606, 1.4142135
        %v3615 = vmul.f32 %v3607, 1.4142135
        %v3616 = vpack.c.bf16 %v3608, %v3608
        %v3617 = vpack.c.bf16 %v3609, %v3609
        %v3618 = vpack.c.bf16 %v3610, %v3610
        %v3619 = vpack.c.bf16 %v3611, %v3611
        %v3620 = vpack.c.bf16 %v3612, %v3612
        %v3621 = vpack.c.bf16 %v3613, %v3613
        %v3622 = vpack.c.bf16 %v3614, %v3614
        %v3623 = vpack.c.bf16 %v3615, %v3615
        %v3632 = vunpack.c.l.b16 %v3616
        %v3633 = vunpack.c.l.b16 %v3617
        %v3634 = vunpack.c.l.b16 %v3618
        %v3635 = vunpack.c.l.b16 %v3619
        %v3636 = vunpack.c.l.b16 %v3620
        %v3637 = vunpack.c.l.b16 %v3621
        %v3638 = vunpack.c.l.b16 %v3622
        %v3639 = vunpack.c.l.b16 %v3623
        %v3640 = vpack.c.b16 %v3633, %v3632
        %v3641 = vpack.c.b16 %v3635, %v3634
        %v3642 = vpack.c.b16 %v3637, %v3636
        %v3643 = vpack.c.b16 %v3639, %v3638
        %3648 = vst [vmem:[%s444] sm:$0xff] %v3640
        %3649 = vst [vmem:[%s444 + $0x8] sm:$0xff] %v3641
        %3650 = vst [vmem:[%s444 + $0x10] sm:$0xff] %v3642
        %3651 = vst [vmem:[%s444 + $0x18] sm:$0xff] %v3643
        %s3652 = sand.u32 %s287, 1
        %s3653 = scalar_lea.sflag [#allocation6], %s3652
        %s3654 = sand.u32 %s287, 1
        %s3655 = smul.addr %s3654, 32
        %s3656 = scalar_lea.vmem [#allocation7], %s3655
        // Predicated region
        $region69: #{tpu_custom_call.1} parent=59 // pred_check
          %p3657 = pneg %p297
        $region70: #{tpu_custom_call.1} parent=59 // pred_check_branch
          %3659 = sbr.rel (%p3657) target = $region72
        $region71: #{tpu_custom_call.1} parent=59 // pred_region
          %s3661 = ssub.s32 512, 512
          %3662 = vsyncadd %s3653, %s3661
          %s3663 = smul.addr %s30, 8
          %s3664 = smul.addr %s29, 8
          %s3665 = sadd.s32 %s3663, %s3664
          %s3666 = smul.addr %s3665, 64
          %s3667 = scalar_lea.hbm %s10, %s3666
          %s3669 = sshll.u32 %s3656, 4
          %s3670 = int_to_ptr.vmem [resolvable:$true] %s3669
          %3672 = dma.vmem_to_hbm [thread:$0]  %s3670, 512, %s3667, %s3653
        $region72: #{tpu_custom_call.1} parent=59 // pred_fallthru
          _
      $region60: #{tpu_custom_call.1} parent=5 // pred_fallthru
        _
      %p3673 = scmp.le.s32.totalorder 2, %s20
      // Predicated region
      $region73: #{tpu_custom_call.1} parent=5 // pred_check
        %p3674 = pneg %p3673
      $region74: #{tpu_custom_call.1} parent=5 // pred_check_branch
        %3676 = sbr.rel (%p3674) target = $region76
      $region75: #{tpu_custom_call.1} parent=5 // pred_region
        %s3677 = ssub.s32 %s20, 2
        // Predicated region
        $region77: #{tpu_custom_call.1} parent=75 // pred_check
          %p3678 = pneg %p303
        $region78: #{tpu_custom_call.1} parent=75 // pred_check_branch
          %3680 = sbr.rel (%p3678) target = $region80
        $region79: #{tpu_custom_call.1} parent=75 // pred_region
          %s3681 = sand.u32 %s288, 1
          %s3682 = scalar_lea.sflag [#allocation6], %s3681
          %s3683 = sand.u32 %s288, 1
          %s3684 = smul.addr %s3683, 32
          %s3685 = scalar_lea.vmem [#allocation7], %s3684
          %3686 = dma.done %s3682, 512
        $region80: #{tpu_custom_call.1} parent=75 // pred_fallthru
          _
      $region76: #{tpu_custom_call.1} parent=5 // pred_fallthru
        _
    $region6: #{tpu_custom_call.1} parent=1 // loop_footer
      %s24 = sadd.s32 1, %s20
    $region7: #{tpu_custom_call.1} parent=1 // loop_footer_branch
      %19 = sbr.rel target = $region3
    $region8: #{tpu_custom_call.1} parent=1 // loop_exit
      _
    %3687 = vsyncpa [#allocation5], 1
    %s3688 = scalar_lea.sflag [#allocation5], 1
    %3689 = vsyncpa %s3688, 1
    %3690 = vsyncpa [#allocation6], 1
    %s3691 = scalar_lea.sflag [#allocation6], 1
    %3692 = vsyncpa %s3691, 1

</llo_original>
